<compile_context>
chip_gen: v7x
topology: tpu7x:2x2x1
jax: 0.10.0
libtpu: 0.0.40
codegen_flags: <defaults>
</compile_context>

<pallas_src>
import functools

import jax
import jax.numpy as jnp
from jax.experimental import pallas as pl
from jax.experimental.pallas import tpu as pltpu


_LEFT = 16    # tile-aligned interior offset in the scratch buffers (>= conv pad)
_RIGHT = 16   # right halo rows (>= conv pad), keeps the scratch time dim aligned
_T_MULT = 16  # time is padded to a multiple of this (bf16 sublane tile)


def _round_up(x, m):
    return ((x + m - 1) // m) * m


def _vmem_limit_bytes(working_set_bytes):
    cap = 64 << 20  # conservative fallback (v7x per-TC VMEM); v5e/v6e have 128 MiB
    try:
        info = pltpu.get_tpu_info()
        cap = int(getattr(info, "vmem_capacity_bytes", cap)) or cap
    except Exception:
        pass
    want = max(2 * int(working_set_bytes), 32 << 20)  # 2x headroom for temporaries
    return int(min(want, int(cap * 0.9)))


# ----------------------------------------------------------------------------
# Kernel factory: fused n_layers-deep conv/BN/tanh stack for one batch block.
# ----------------------------------------------------------------------------
def make_postnet_kernel(n_layers, kernel_size, t_pad, t_true):
    K = kernel_size
    pad = (K - 1) // 2
    left = _LEFT

    def kernel(*refs):
        x_ref = refs[0]                                   # (NB, Tp_alloc, Cin_pad)  bf16
        w_refs = refs[1:1 + n_layers]                     # (K, Cin_pad_i, Cout_pad_i) bf16
        b_refs = refs[1 + n_layers:1 + 2 * n_layers]      # (1, Cout_pad_i)            f32
        out_ref = refs[1 + 2 * n_layers]                  # (NB, T_pad, Cout_pad)      f32
        buf_a = refs[2 + 2 * n_layers]                    # (NB, Tp_alloc, Cemb_pad)   bf16
        buf_b = refs[3 + 2 * n_layers]

        NB = x_ref.shape[0]
        tp_alloc = buf_a.shape[1]
        c_emb = buf_a.shape[2]
        right = tp_alloc - left - t_pad

        # Zero the aligned 16-row halo regions of both ping-pong buffers.
        # Done every grid step (NOT under program_id==0): with the batch axis
        # marked "parallel", a second TensorCore gets its own scratch and never
        # sees program_id 0.  Cost: 4 small aligned stores per step.
        zl = jnp.zeros((NB, left, c_emb), buf_a.dtype)
        zr = jnp.zeros((NB, right, c_emb), buf_a.dtype)
        for buf in (buf_a, buf_b):
            buf[:, :left, :] = zl
            buf[:, left + t_pad:, :] = zr

        def taps(src_ref):
            base = left - pad
            def get(k):
                return src_ref[:, base + k:base + k + t_pad, :]
            return get

        def conv(get_slice, w_ref, b_ref, apply_tanh):
            cout = w_ref.shape[2]
            # Center tap first (its slice is tile-aligned); the accumulator is
            # initialized from its matmul: K matmuls + (K-1) adds, no zero temp.
            order = [pad] + [k for k in range(K) if k != pad]
            acc = None
            for k in order:
                xs = get_slice(k).reshape(NB * t_pad, -1)           # bf16
                p = jnp.dot(xs, w_ref[k], preferred_element_type=jnp.float32)
                acc = p if acc is None else acc + p
            acc = acc + b_ref[...]                                  # folded BN bias, f32
            if apply_tanh:
                acc = jnp.tanh(acc)
            return acc.reshape(NB, t_pad, cout)

        def write_hidden(dst, h):
            # Aligned full-interior store (T_pad multiple of 16, offset 16).
            dst[:, left:left + t_pad, :] = h.astype(dst.dtype)
            if t_pad != t_true:
                # Re-zero ghost rows so the next layer sees the exact zero
                # padding PyTorch's Conv1d would see beyond the true length.
                dst[:, left + t_true:left + t_pad, :] = jnp.zeros(
                    (NB, t_pad - t_true, h.shape[2]), dst.dtype)

        bufs = (buf_a, buf_b)

        # Layer 0: input block -> buf_a interior (conv + folded BN + tanh).
        write_hidden(bufs[0], conv(taps(x_ref), w_refs[0], b_refs[0], True))

        # Middle layers ping-pong between the two haloed VMEM buffers.
        for i in range(1, n_layers - 1):
            src, dst = bufs[(i - 1) % 2], bufs[i % 2]
            write_hidden(dst, conv(taps(src), w_refs[i], b_refs[i], True))

        # Last layer: conv + folded BN, no tanh, lane-dense f32 output block.
        src = bufs[(n_layers - 2) % 2]
        out_ref[...] = conv(taps(src), w_refs[-1], b_refs[-1],
                            False).astype(out_ref.dtype)

    return kernel


# ----------------------------------------------------------------------------
# Wrapper: fold BN into conv, pad channels/time, lay out channels-last.
# ----------------------------------------------------------------------------
@functools.partial(jax.jit, static_argnames=("kernel_size", "batch_block"))
def postnet_forward(x, conv_ws, conv_bs, bn_gammas, bn_betas, bn_means,
                    bn_vars, *, kernel_size, batch_block=4):
    eps = 1e-5
    n_layers = len(conv_ws)
    assert n_layers >= 2
    B, C_in, T = x.shape
    K = kernel_size
    pad = (K - 1) // 2
    assert pad <= _LEFT and pad <= _RIGHT

    chans = [C_in] + [int(w.shape[0]) for w in conv_ws]
    chans_pad = [_round_up(c, 128) for c in chans]        # lane-dense channel dims
    C_in_pad, C_emb_pad, C_out_pad = chans_pad[0], chans_pad[1], chans_pad[-1]
    C_out = chans[-1]

    # Fold inference BatchNorm into conv weight/bias, transpose to (K,Cin,Cout),
    # zero-pad channels to multiples of 128; bf16 weights (MXU), f32 bias.
    ws, bs = [], []
    for i, (w, b, g, bt, mu, var) in enumerate(
            zip(conv_ws, conv_bs, bn_gammas, bn_betas, bn_means, bn_vars)):
        scale = g / jnp.sqrt(var + eps)                               # (Cout,)
        wf = w.astype(jnp.float32) * scale[:, None, None]             # (Cout, Cin, K)
        bf = ((b - mu) * scale + bt).astype(jnp.float32)              # (Cout,)
        wt = jnp.transpose(wf, (2, 1, 0))                             # (K, Cin, Cout)
        wt = jnp.pad(wt, ((0, 0), (0, chans_pad[i] - chans[i]),
                          (0, chans_pad[i + 1] - chans[i + 1])))
        ws.append(wt.astype(jnp.bfloat16))
        bs.append(jnp.pad(bf, (0, chans_pad[i + 1] - chans[i + 1])).reshape(1, -1))

    # Time padded to a multiple of 16: layout-preserving (NB,T)->NB*T fold and
    # tile-aligned interior stores.  Real data lives at [_LEFT, _LEFT+T); the
    # rest is zero (conv halo + ghost rows) = PyTorch's zero padding.
    T_pad = _round_up(T, _T_MULT)
    Tp_alloc = _LEFT + T_pad + _RIGHT

    # TODO(synk): accept channels-last I/O to drop these two HBM transposes.
    x_t = jnp.transpose(x.astype(jnp.float32), (0, 2, 1))             # (B, T, C_in)
    x_t = jnp.pad(x_t, ((0, 0), (_LEFT, (T_pad - T) + _RIGHT),
                        (0, C_in_pad - C_in))).astype(jnp.bfloat16)

    NB = max(1, min(batch_block, B))
    Bpad = _round_up(B, NB)
    if Bpad != B:
        x_t = jnp.pad(x_t, ((0, Bpad - B), (0, 0), (0, 0)))

    # VMEM budget: 2 bf16 ping-pong buffers + single-copy weights + I/O
    # double-buffers + temporaries (f32 acc + bf16 shifted-slice copies).
    scratch_b = 2 * NB * Tp_alloc * C_emb_pad * 2
    weight_b = sum(K * chans_pad[i] * chans_pad[i + 1] * 2 for i in range(n_layers))
    bias_b = sum(chans_pad[i + 1] * 4 for i in range(n_layers))
    io_b = 2 * NB * Tp_alloc * C_in_pad * 2 + 2 * NB * T_pad * C_out_pad * 4
    tmp_b = NB * T_pad * max(chans_pad) * (4 + 2 * 2)
    vmem_limit = _vmem_limit_bytes(scratch_b + weight_b + bias_b + io_b + tmp_b)

    in_specs = [pl.BlockSpec((NB, Tp_alloc, C_in_pad), lambda b: (b, 0, 0))]
    # Weights/biases: whole array resident in VMEM (single copy, never re-DMA'd,
    # no double buffering — their blocks are constant across the grid).
    in_specs += [pl.BlockSpec(memory_space=pltpu.MemorySpace.VMEM)
                 for _ in range(2 * n_layers)]

    # TODO(synk): when Bpad // NB == 1 on a 2-TC chip (v7x), add a second
    #             "parallel" grid axis (e.g. split NB) so both cores get work.
    out = pl.pallas_call(
        make_postnet_kernel(n_layers, K, T_pad, T),
        out_shape=jax.ShapeDtypeStruct((Bpad, T_pad, C_out_pad), jnp.float32),
        grid_spec=pltpu.PrefetchScalarGridSpec(
            num_scalar_prefetch=0,
            grid=(Bpad // NB,),
            in_specs=in_specs,
            out_specs=pl.BlockSpec((NB, T_pad, C_out_pad), lambda b: (b, 0, 0)),
            scratch_shapes=[pltpu.VMEM((NB, Tp_alloc, C_emb_pad), jnp.bfloat16),
                            pltpu.VMEM((NB, Tp_alloc, C_emb_pad), jnp.bfloat16)]),
        compiler_params=pltpu.CompilerParams(
            dimension_semantics=("parallel",),
            vmem_limit_bytes=vmem_limit),
    )(x_t, *ws, *bs)

    out = out[:B, :T, :C_out]                                         # (B, T, C_out)
    return jnp.transpose(out, (0, 2, 1))                              # (B, C_out, T)


# ----------------------------------------------------------------------------
# Pure-JAX reference (eval-mode Postnet) for the correctness check.
# ----------------------------------------------------------------------------
def postnet_reference(x, conv_ws, conv_bs, bn_gammas, bn_betas, bn_means,
                      bn_vars, kernel_size, eps=1e-5):
    pad = (kernel_size - 1) // 2
    h = x.astype(jnp.float32)
    n = len(conv_ws)
    for i in range(n):
        h = jax.lax.conv_general_dilated(
            h, conv_ws[i].astype(jnp.float32), window_strides=(1,),
            padding=[(pad, pad)], dimension_numbers=("NCH", "OIH", "NCH"))
        h = h + conv_bs[i][None, :, None]
        h = (h - bn_means[i][None, :, None]) / jnp.sqrt(
            bn_vars[i][None, :, None] + eps)
        h = h * bn_gammas[i][None, :, None] + bn_betas[i][None, :, None]
        if i < n - 1:
            h = jnp.tanh(h)
        # dropout: identity in eval mode
    return h


if __name__ == "__main__":
    # Small hparams consistent with the module (real: n_mel=80, emb=512, K=5).
    N_MEL = 8
    EMB = 32
    KSIZE = 5
    N_CONV = 5

    key = jax.random.PRNGKey(0)

    def xavier_uniform(k, shape, gain):
        cout, cin, ksz = shape
        fan_in, fan_out = cin * ksz, cout * ksz
        bound = gain * (6.0 / (fan_in + fan_out)) ** 0.5
        return jax.random.uniform(k, shape, jnp.float32, -bound, bound)

    gain_tanh = 5.0 / 3.0
    channels = [N_MEL] + [EMB] * (N_CONV - 1) + [N_MEL]
    conv_ws, conv_bs, gammas, betas, means, variances = [], [], [], [], [], []
    for i in range(N_CONV):
        key, k1, k2, k3, k4, k5, k6 = jax.random.split(key, 7)
        cin, cout = channels[i], channels[i + 1]
        gain = gain_tanh if i < N_CONV - 1 else 1.0
        conv_ws.append(xavier_uniform(k1, (cout, cin, KSIZE), gain))
        conv_bs.append(0.1 * jax.random.normal(k2, (cout,), jnp.float32))
        gammas.append(1.0 + 0.1 * jax.random.normal(k3, (cout,), jnp.float32))
        betas.append(0.1 * jax.random.normal(k4, (cout,), jnp.float32))
        means.append(0.1 * jax.random.normal(k5, (cout,), jnp.float32))
        variances.append(
            jnp.abs(1.0 + 0.1 * jax.random.normal(k6, (cout,), jnp.float32)))

    # Case 1: aligned T, single grid step.
    # Case 2: unaligned T (exercises ghost-row zeroing) + batch padding,
    #         multi-step grid.
    for (B, T, bb) in [(2, 16, 4), (3, 13, 2)]:
        key, kx = jax.random.split(key)
        x = jax.random.normal(kx, (B, N_MEL, T), jnp.float32)

        y = postnet_forward(x, conv_ws, conv_bs, gammas, betas, means,
                            variances, kernel_size=KSIZE, batch_block=bb)
        jax.block_until_ready(y)

        y_ref = postnet_reference(x, conv_ws, conv_bs, gammas, betas, means,
                                  variances, KSIZE)
        assert y.shape == (B, N_MEL, T)
        max_err = float(jnp.max(jnp.abs(y - y_ref)))
        # bf16 matmul inputs / bf16 intermediate storage => loose tolerance.
        assert jnp.allclose(y, y_ref, atol=5e-2, rtol=5e-2), max_err

    print("KERNEL_OK")
</pallas_src>

<mosaic_0001>
module attributes {stable_mosaic.version = 11 : i64} {
  func.func @kernel(%arg0: i32, %arg1: memref<2x48x128xbf16, #tpu.memory_space<vmem>>, %arg2: memref<5x128x128xbf16, #tpu.memory_space<vmem>>, %arg3: memref<5x128x128xbf16, #tpu.memory_space<vmem>>, %arg4: memref<5x128x128xbf16, #tpu.memory_space<vmem>>, %arg5: memref<5x128x128xbf16, #tpu.memory_space<vmem>>, %arg6: memref<5x128x128xbf16, #tpu.memory_space<vmem>>, %arg7: memref<1x128xf32, #tpu.memory_space<vmem>>, %arg8: memref<1x128xf32, #tpu.memory_space<vmem>>, %arg9: memref<1x128xf32, #tpu.memory_space<vmem>>, %arg10: memref<1x128xf32, #tpu.memory_space<vmem>>, %arg11: memref<1x128xf32, #tpu.memory_space<vmem>>, %arg12: memref<2x16x128xf32, #tpu.memory_space<vmem>>, %arg13: memref<2x48x128xbf16, #tpu.memory_space<vmem>>, %arg14: memref<2x48x128xbf16, #tpu.memory_space<vmem>>) attributes {dimension_semantics = [#tpu.dimension_semantics<parallel>], iteration_bounds = array<i64: 1>, scalar_prefetch = 0 : i64, scratch_operands = 2 : i64, tpu.core_type = #tpu.core_type<tc>, window_params = [{transform_indices = @transform_0, window_bounds = array<i64: 2, 48, 128>}, {pipeline_mode = #tpu.pipeline_mode<synchronous>, transform_indices = @transform_1, window_bounds = array<i64: 5, 128, 128>}, {pipeline_mode = #tpu.pipeline_mode<synchronous>, transform_indices = @transform_2, window_bounds = array<i64: 5, 128, 128>}, {pipeline_mode = #tpu.pipeline_mode<synchronous>, transform_indices = @transform_3, window_bounds = array<i64: 5, 128, 128>}, {pipeline_mode = #tpu.pipeline_mode<synchronous>, transform_indices = @transform_4, window_bounds = array<i64: 5, 128, 128>}, {pipeline_mode = #tpu.pipeline_mode<synchronous>, transform_indices = @transform_5, window_bounds = array<i64: 5, 128, 128>}, {pipeline_mode = #tpu.pipeline_mode<synchronous>, transform_indices = @transform_6, window_bounds = array<i64: 1, 128>}, {pipeline_mode = #tpu.pipeline_mode<synchronous>, transform_indices = @transform_7, window_bounds = array<i64: 1, 128>}, {pipeline_mode = #tpu.pipeline_mode<synchronous>, transform_indices = @transform_8, window_bounds = array<i64: 1, 128>}, {pipeline_mode = #tpu.pipeline_mode<synchronous>, transform_indices = @transform_9, window_bounds = array<i64: 1, 128>}, {pipeline_mode = #tpu.pipeline_mode<synchronous>, transform_indices = @transform_10, window_bounds = array<i64: 1, 128>}, {transform_indices = @transform_11, window_bounds = array<i64: 2, 16, 128>}]} {
    %cst = arith.constant 0.000000e+00 : bf16
    %0 = vector.broadcast %cst : bf16 to vector<2x16x128xbf16>
    %cst_0 = arith.constant 0.000000e+00 : bf16
    %1 = vector.broadcast %cst_0 : bf16 to vector<2x16x128xbf16>
    %c0 = arith.constant 0 : index
    %c0_1 = arith.constant 0 : index
    %c0_2 = arith.constant 0 : index
    %2 = vector.load %arg13[%c0, %c0_1, %c0_2] : memref<2x48x128xbf16, #tpu.memory_space<vmem>>, vector<2x16x128xbf16>
    tpu.vector_store %arg13[%c0, %c0_1, %c0_2], %0 {strides = array<i32>} : memref<2x48x128xbf16, #tpu.memory_space<vmem>>, vector<2x16x128xbf16>,
    %c0_3 = arith.constant 0 : index
    %c32 = arith.constant 32 : index
    %c0_4 = arith.constant 0 : index
    %3 = vector.load %arg13[%c0_3, %c32, %c0_4] : memref<2x48x128xbf16, #tpu.memory_space<vmem>>, vector<2x16x128xbf16>
    tpu.vector_store %arg13[%c0_3, %c32, %c0_4], %1 {strides = array<i32>} : memref<2x48x128xbf16, #tpu.memory_space<vmem>>, vector<2x16x128xbf16>,
    %c0_5 = arith.constant 0 : index
    %c0_6 = arith.constant 0 : index
    %c0_7 = arith.constant 0 : index
    %4 = vector.load %arg14[%c0_5, %c0_6, %c0_7] : memref<2x48x128xbf16, #tpu.memory_space<vmem>>, vector<2x16x128xbf16>
    tpu.vector_store %arg14[%c0_5, %c0_6, %c0_7], %0 {strides = array<i32>} : memref<2x48x128xbf16, #tpu.memory_space<vmem>>, vector<2x16x128xbf16>,
    %c0_8 = arith.constant 0 : index
    %c32_9 = arith.constant 32 : index
    %c0_10 = arith.constant 0 : index
    %5 = vector.load %arg14[%c0_8, %c32_9, %c0_10] : memref<2x48x128xbf16, #tpu.memory_space<vmem>>, vector<2x16x128xbf16>
    tpu.vector_store %arg14[%c0_8, %c32_9, %c0_10], %1 {strides = array<i32>} : memref<2x48x128xbf16, #tpu.memory_space<vmem>>, vector<2x16x128xbf16>,
    %c0_11 = arith.constant 0 : index
    %c16 = arith.constant 16 : index
    %c0_12 = arith.constant 0 : index
    %6 = vector.load %arg1[%c0_11, %c16, %c0_12] : memref<2x48x128xbf16, #tpu.memory_space<vmem>>, vector<2x16x128xbf16>
    %7 = vector.shape_cast %6 : vector<2x16x128xbf16> to vector<32x128xbf16>
    %c2 = arith.constant 2 : index
    %c0_13 = arith.constant 0 : index
    %c0_14 = arith.constant 0 : index
    %8 = vector.load %arg2[%c2, %c0_13, %c0_14] : memref<5x128x128xbf16, #tpu.memory_space<vmem>>, vector<1x128x128xbf16>
    %9 = vector.shape_cast %8 : vector<1x128x128xbf16> to vector<128x128xbf16>
    %cst_15 = arith.constant dense<0.000000e+00> : vector<32x128xf32>
    %10 = tpu.matmul %7, %9, %cst_15 {dimension_numbers = #tpu.dot_dimension_numbers<[1], [0], [0], [1], [0, 0, 1, 1], [], []>} : vector<32x128xbf16>, vector<128x128xbf16>, vector<32x128xf32> -> vector<32x128xf32>
    %c0_16 = arith.constant 0 : index
    %c14 = arith.constant 14 : index
    %c0_17 = arith.constant 0 : index
    %11 = vector.load %arg1[%c0_16, %c14, %c0_17] : memref<2x48x128xbf16, #tpu.memory_space<vmem>>, vector<2x16x128xbf16>
    %12 = vector.shape_cast %11 : vector<2x16x128xbf16> to vector<32x128xbf16>
    %c0_18 = arith.constant 0 : index
    %c0_19 = arith.constant 0 : index
    %c0_20 = arith.constant 0 : index
    %13 = vector.load %arg2[%c0_18, %c0_19, %c0_20] : memref<5x128x128xbf16, #tpu.memory_space<vmem>>, vector<1x128x128xbf16>
    %14 = vector.shape_cast %13 : vector<1x128x128xbf16> to vector<128x128xbf16>
    %cst_21 = arith.constant dense<0.000000e+00> : vector<32x128xf32>
    %15 = tpu.matmul %12, %14, %cst_21 {dimension_numbers = #tpu.dot_dimension_numbers<[1], [0], [0], [1], [0, 0, 1, 1], [], []>} : vector<32x128xbf16>, vector<128x128xbf16>, vector<32x128xf32> -> vector<32x128xf32>
    %16 = arith.addf %10, %15 : vector<32x128xf32>
    %c0_22 = arith.constant 0 : index
    %c15 = arith.constant 15 : index
    %c0_23 = arith.constant 0 : index
    %17 = vector.load %arg1[%c0_22, %c15, %c0_23] : memref<2x48x128xbf16, #tpu.memory_space<vmem>>, vector<2x16x128xbf16>
    %18 = vector.shape_cast %17 : vector<2x16x128xbf16> to vector<32x128xbf16>
    %c1 = arith.constant 1 : index
    %c0_24 = arith.constant 0 : index
    %c0_25 = arith.constant 0 : index
    %19 = vector.load %arg2[%c1, %c0_24, %c0_25] : memref<5x128x128xbf16, #tpu.memory_space<vmem>>, vector<1x128x128xbf16>
    %20 = vector.shape_cast %19 : vector<1x128x128xbf16> to vector<128x128xbf16>
    %cst_26 = arith.constant dense<0.000000e+00> : vector<32x128xf32>
    %21 = tpu.matmul %18, %20, %cst_26 {dimension_numbers = #tpu.dot_dimension_numbers<[1], [0], [0], [1], [0, 0, 1, 1], [], []>} : vector<32x128xbf16>, vector<128x128xbf16>, vector<32x128xf32> -> vector<32x128xf32>
    %22 = arith.addf %16, %21 : vector<32x128xf32>
    %c0_27 = arith.constant 0 : index
    %c17 = arith.constant 17 : index
    %c0_28 = arith.constant 0 : index
    %23 = vector.load %arg1[%c0_27, %c17, %c0_28] : memref<2x48x128xbf16, #tpu.memory_space<vmem>>, vector<2x16x128xbf16>
    %24 = vector.shape_cast %23 : vector<2x16x128xbf16> to vector<32x128xbf16>
    %c3 = arith.constant 3 : index
    %c0_29 = arith.constant 0 : index
    %c0_30 = arith.constant 0 : index
    %25 = vector.load %arg2[%c3, %c0_29, %c0_30] : memref<5x128x128xbf16, #tpu.memory_space<vmem>>, vector<1x128x128xbf16>
    %26 = vector.shape_cast %25 : vector<1x128x128xbf16> to vector<128x128xbf16>
    %cst_31 = arith.constant dense<0.000000e+00> : vector<32x128xf32>
    %27 = tpu.matmul %24, %26, %cst_31 {dimension_numbers = #tpu.dot_dimension_numbers<[1], [0], [0], [1], [0, 0, 1, 1], [], []>} : vector<32x128xbf16>, vector<128x128xbf16>, vector<32x128xf32> -> vector<32x128xf32>
    %28 = arith.addf %22, %27 : vector<32x128xf32>
    %c0_32 = arith.constant 0 : index
    %c18 = arith.constant 18 : index
    %c0_33 = arith.constant 0 : index
    %29 = vector.load %arg1[%c0_32, %c18, %c0_33] : memref<2x48x128xbf16, #tpu.memory_space<vmem>>, vector<2x16x128xbf16>
    %30 = vector.shape_cast %29 : vector<2x16x128xbf16> to vector<32x128xbf16>
    %c4 = arith.constant 4 : index
    %c0_34 = arith.constant 0 : index
    %c0_35 = arith.constant 0 : index
    %31 = vector.load %arg2[%c4, %c0_34, %c0_35] : memref<5x128x128xbf16, #tpu.memory_space<vmem>>, vector<1x128x128xbf16>
    %32 = vector.shape_cast %31 : vector<1x128x128xbf16> to vector<128x128xbf16>
    %cst_36 = arith.constant dense<0.000000e+00> : vector<32x128xf32>
    %33 = tpu.matmul %30, %32, %cst_36 {dimension_numbers = #tpu.dot_dimension_numbers<[1], [0], [0], [1], [0, 0, 1, 1], [], []>} : vector<32x128xbf16>, vector<128x128xbf16>, vector<32x128xf32> -> vector<32x128xf32>
    %34 = arith.addf %28, %33 : vector<32x128xf32>
    %c0_37 = arith.constant 0 : index
    %c0_38 = arith.constant 0 : index
    %35 = vector.load %arg7[%c0_37, %c0_38] : memref<1x128xf32, #tpu.memory_space<vmem>>, vector<1x128xf32>
    %36 = vector.broadcast %35 : vector<1x128xf32> to vector<32x128xf32>
    %37 = arith.addf %34, %36 : vector<32x128xf32>
    %38 = math.tanh %37 : vector<32x128xf32>
    %39 = vector.shape_cast %38 : vector<32x128xf32> to vector<2x16x128xf32>
    %40 = arith.truncf %39 : vector<2x16x128xf32> to vector<2x16x128xbf16>
    %c0_39 = arith.constant 0 : index
    %c16_40 = arith.constant 16 : index
    %c0_41 = arith.constant 0 : index
    %41 = vector.load %arg13[%c0_39, %c16_40, %c0_41] : memref<2x48x128xbf16, #tpu.memory_space<vmem>>, vector<2x16x128xbf16>
    tpu.vector_store %arg13[%c0_39, %c16_40, %c0_41], %40 {strides = array<i32>} : memref<2x48x128xbf16, #tpu.memory_space<vmem>>, vector<2x16x128xbf16>,
    %c0_42 = arith.constant 0 : index
    %c16_43 = arith.constant 16 : index
    %c0_44 = arith.constant 0 : index
    %42 = vector.load %arg13[%c0_42, %c16_43, %c0_44] : memref<2x48x128xbf16, #tpu.memory_space<vmem>>, vector<2x16x128xbf16>
    %43 = vector.shape_cast %42 : vector<2x16x128xbf16> to vector<32x128xbf16>
    %c2_45 = arith.constant 2 : index
    %c0_46 = arith.constant 0 : index
    %c0_47 = arith.constant 0 : index
    %44 = vector.load %arg3[%c2_45, %c0_46, %c0_47] : memref<5x128x128xbf16, #tpu.memory_space<vmem>>, vector<1x128x128xbf16>
    %45 = vector.shape_cast %44 : vector<1x128x128xbf16> to vector<128x128xbf16>
    %cst_48 = arith.constant dense<0.000000e+00> : vector<32x128xf32>
    %46 = tpu.matmul %43, %45, %cst_48 {dimension_numbers = #tpu.dot_dimension_numbers<[1], [0], [0], [1], [0, 0, 1, 1], [], []>} : vector<32x128xbf16>, vector<128x128xbf16>, vector<32x128xf32> -> vector<32x128xf32>
    %c0_49 = arith.constant 0 : index
    %c14_50 = arith.constant 14 : index
    %c0_51 = arith.constant 0 : index
    %47 = vector.load %arg13[%c0_49, %c14_50, %c0_51] : memref<2x48x128xbf16, #tpu.memory_space<vmem>>, vector<2x16x128xbf16>
    %48 = vector.shape_cast %47 : vector<2x16x128xbf16> to vector<32x128xbf16>
    %c0_52 = arith.constant 0 : index
    %c0_53 = arith.constant 0 : index
    %c0_54 = arith.constant 0 : index
    %49 = vector.load %arg3[%c0_52, %c0_53, %c0_54] : memref<5x128x128xbf16, #tpu.memory_space<vmem>>, vector<1x128x128xbf16>
    %50 = vector.shape_cast %49 : vector<1x128x128xbf16> to vector<128x128xbf16>
    %cst_55 = arith.constant dense<0.000000e+00> : vector<32x128xf32>
    %51 = tpu.matmul %48, %50, %cst_55 {dimension_numbers = #tpu.dot_dimension_numbers<[1], [0], [0], [1], [0, 0, 1, 1], [], []>} : vector<32x128xbf16>, vector<128x128xbf16>, vector<32x128xf32> -> vector<32x128xf32>
    %52 = arith.addf %46, %51 : vector<32x128xf32>
    %c0_56 = arith.constant 0 : index
    %c15_57 = arith.constant 15 : index
    %c0_58 = arith.constant 0 : index
    %53 = vector.load %arg13[%c0_56, %c15_57, %c0_58] : memref<2x48x128xbf16, #tpu.memory_space<vmem>>, vector<2x16x128xbf16>
    %54 = vector.shape_cast %53 : vector<2x16x128xbf16> to vector<32x128xbf16>
    %c1_59 = arith.constant 1 : index
    %c0_60 = arith.constant 0 : index
    %c0_61 = arith.constant 0 : index
    %55 = vector.load %arg3[%c1_59, %c0_60, %c0_61] : memref<5x128x128xbf16, #tpu.memory_space<vmem>>, vector<1x128x128xbf16>
    %56 = vector.shape_cast %55 : vector<1x128x128xbf16> to vector<128x128xbf16>
    %cst_62 = arith.constant dense<0.000000e+00> : vector<32x128xf32>
    %57 = tpu.matmul %54, %56, %cst_62 {dimension_numbers = #tpu.dot_dimension_numbers<[1], [0], [0], [1], [0, 0, 1, 1], [], []>} : vector<32x128xbf16>, vector<128x128xbf16>, vector<32x128xf32> -> vector<32x128xf32>
    %58 = arith.addf %52, %57 : vector<32x128xf32>
    %c0_63 = arith.constant 0 : index
    %c17_64 = arith.constant 17 : index
    %c0_65 = arith.constant 0 : index
    %59 = vector.load %arg13[%c0_63, %c17_64, %c0_65] : memref<2x48x128xbf16, #tpu.memory_space<vmem>>, vector<2x16x128xbf16>
    %60 = vector.shape_cast %59 : vector<2x16x128xbf16> to vector<32x128xbf16>
    %c3_66 = arith.constant 3 : index
    %c0_67 = arith.constant 0 : index
    %c0_68 = arith.constant 0 : index
    %61 = vector.load %arg3[%c3_66, %c0_67, %c0_68] : memref<5x128x128xbf16, #tpu.memory_space<vmem>>, vector<1x128x128xbf16>
    %62 = vector.shape_cast %61 : vector<1x128x128xbf16> to vector<128x128xbf16>
    %cst_69 = arith.constant dense<0.000000e+00> : vector<32x128xf32>
    %63 = tpu.matmul %60, %62, %cst_69 {dimension_numbers = #tpu.dot_dimension_numbers<[1], [0], [0], [1], [0, 0, 1, 1], [], []>} : vector<32x128xbf16>, vector<128x128xbf16>, vector<32x128xf32> -> vector<32x128xf32>
    %64 = arith.addf %58, %63 : vector<32x128xf32>
    %c0_70 = arith.constant 0 : index
    %c18_71 = arith.constant 18 : index
    %c0_72 = arith.constant 0 : index
    %65 = vector.load %arg13[%c0_70, %c18_71, %c0_72] : memref<2x48x128xbf16, #tpu.memory_space<vmem>>, vector<2x16x128xbf16>
    %66 = vector.shape_cast %65 : vector<2x16x128xbf16> to vector<32x128xbf16>
    %c4_73 = arith.constant 4 : index
    %c0_74 = arith.constant 0 : index
    %c0_75 = arith.constant 0 : index
    %67 = vector.load %arg3[%c4_73, %c0_74, %c0_75] : memref<5x128x128xbf16, #tpu.memory_space<vmem>>, vector<1x128x128xbf16>
    %68 = vector.shape_cast %67 : vector<1x128x128xbf16> to vector<128x128xbf16>
    %cst_76 = arith.constant dense<0.000000e+00> : vector<32x128xf32>
    %69 = tpu.matmul %66, %68, %cst_76 {dimension_numbers = #tpu.dot_dimension_numbers<[1], [0], [0], [1], [0, 0, 1, 1], [], []>} : vector<32x128xbf16>, vector<128x128xbf16>, vector<32x128xf32> -> vector<32x128xf32>
    %70 = arith.addf %64, %69 : vector<32x128xf32>
    %c0_77 = arith.constant 0 : index
    %c0_78 = arith.constant 0 : index
    %71 = vector.load %arg8[%c0_77, %c0_78] : memref<1x128xf32, #tpu.memory_space<vmem>>, vector<1x128xf32>
    %72 = vector.broadcast %71 : vector<1x128xf32> to vector<32x128xf32>
    %73 = arith.addf %70, %72 : vector<32x128xf32>
    %74 = math.tanh %73 : vector<32x128xf32>
    %75 = vector.shape_cast %74 : vector<32x128xf32> to vector<2x16x128xf32>
    %76 = arith.truncf %75 : vector<2x16x128xf32> to vector<2x16x128xbf16>
    %c0_79 = arith.constant 0 : index
    %c16_80 = arith.constant 16 : index
    %c0_81 = arith.constant 0 : index
    %77 = vector.load %arg14[%c0_79, %c16_80, %c0_81] : memref<2x48x128xbf16, #tpu.memory_space<vmem>>, vector<2x16x128xbf16>
    tpu.vector_store %arg14[%c0_79, %c16_80, %c0_81], %76 {strides = array<i32>} : memref<2x48x128xbf16, #tpu.memory_space<vmem>>, vector<2x16x128xbf16>,
    %c0_82 = arith.constant 0 : index
    %c16_83 = arith.constant 16 : index
    %c0_84 = arith.constant 0 : index
    %78 = vector.load %arg14[%c0_82, %c16_83, %c0_84] : memref<2x48x128xbf16, #tpu.memory_space<vmem>>, vector<2x16x128xbf16>
    %79 = vector.shape_cast %78 : vector<2x16x128xbf16> to vector<32x128xbf16>
    %c2_85 = arith.constant 2 : index
    %c0_86 = arith.constant 0 : index
    %c0_87 = arith.constant 0 : index
    %80 = vector.load %arg4[%c2_85, %c0_86, %c0_87] : memref<5x128x128xbf16, #tpu.memory_space<vmem>>, vector<1x128x128xbf16>
    %81 = vector.shape_cast %80 : vector<1x128x128xbf16> to vector<128x128xbf16>
    %cst_88 = arith.constant dense<0.000000e+00> : vector<32x128xf32>
    %82 = tpu.matmul %79, %81, %cst_88 {dimension_numbers = #tpu.dot_dimension_numbers<[1], [0], [0], [1], [0, 0, 1, 1], [], []>} : vector<32x128xbf16>, vector<128x128xbf16>, vector<32x128xf32> -> vector<32x128xf32>
    %c0_89 = arith.constant 0 : index
    %c14_90 = arith.constant 14 : index
    %c0_91 = arith.constant 0 : index
    %83 = vector.load %arg14[%c0_89, %c14_90, %c0_91] : memref<2x48x128xbf16, #tpu.memory_space<vmem>>, vector<2x16x128xbf16>
    %84 = vector.shape_cast %83 : vector<2x16x128xbf16> to vector<32x128xbf16>
    %c0_92 = arith.constant 0 : index
    %c0_93 = arith.constant 0 : index
    %c0_94 = arith.constant 0 : index
    %85 = vector.load %arg4[%c0_92, %c0_93, %c0_94] : memref<5x128x128xbf16, #tpu.memory_space<vmem>>, vector<1x128x128xbf16>
    %86 = vector.shape_cast %85 : vector<1x128x128xbf16> to vector<128x128xbf16>
    %cst_95 = arith.constant dense<0.000000e+00> : vector<32x128xf32>
    %87 = tpu.matmul %84, %86, %cst_95 {dimension_numbers = #tpu.dot_dimension_numbers<[1], [0], [0], [1], [0, 0, 1, 1], [], []>} : vector<32x128xbf16>, vector<128x128xbf16>, vector<32x128xf32> -> vector<32x128xf32>
    %88 = arith.addf %82, %87 : vector<32x128xf32>
    %c0_96 = arith.constant 0 : index
    %c15_97 = arith.constant 15 : index
    %c0_98 = arith.constant 0 : index
    %89 = vector.load %arg14[%c0_96, %c15_97, %c0_98] : memref<2x48x128xbf16, #tpu.memory_space<vmem>>, vector<2x16x128xbf16>
    %90 = vector.shape_cast %89 : vector<2x16x128xbf16> to vector<32x128xbf16>
    %c1_99 = arith.constant 1 : index
    %c0_100 = arith.constant 0 : index
    %c0_101 = arith.constant 0 : index
    %91 = vector.load %arg4[%c1_99, %c0_100, %c0_101] : memref<5x128x128xbf16, #tpu.memory_space<vmem>>, vector<1x128x128xbf16>
    %92 = vector.shape_cast %91 : vector<1x128x128xbf16> to vector<128x128xbf16>
    %cst_102 = arith.constant dense<0.000000e+00> : vector<32x128xf32>
    %93 = tpu.matmul %90, %92, %cst_102 {dimension_numbers = #tpu.dot_dimension_numbers<[1], [0], [0], [1], [0, 0, 1, 1], [], []>} : vector<32x128xbf16>, vector<128x128xbf16>, vector<32x128xf32> -> vector<32x128xf32>
    %94 = arith.addf %88, %93 : vector<32x128xf32>
    %c0_103 = arith.constant 0 : index
    %c17_104 = arith.constant 17 : index
    %c0_105 = arith.constant 0 : index
    %95 = vector.load %arg14[%c0_103, %c17_104, %c0_105] : memref<2x48x128xbf16, #tpu.memory_space<vmem>>, vector<2x16x128xbf16>
    %96 = vector.shape_cast %95 : vector<2x16x128xbf16> to vector<32x128xbf16>
    %c3_106 = arith.constant 3 : index
    %c0_107 = arith.constant 0 : index
    %c0_108 = arith.constant 0 : index
    %97 = vector.load %arg4[%c3_106, %c0_107, %c0_108] : memref<5x128x128xbf16, #tpu.memory_space<vmem>>, vector<1x128x128xbf16>
    %98 = vector.shape_cast %97 : vector<1x128x128xbf16> to vector<128x128xbf16>
    %cst_109 = arith.constant dense<0.000000e+00> : vector<32x128xf32>
    %99 = tpu.matmul %96, %98, %cst_109 {dimension_numbers = #tpu.dot_dimension_numbers<[1], [0], [0], [1], [0, 0, 1, 1], [], []>} : vector<32x128xbf16>, vector<128x128xbf16>, vector<32x128xf32> -> vector<32x128xf32>
    %100 = arith.addf %94, %99 : vector<32x128xf32>
    %c0_110 = arith.constant 0 : index
    %c18_111 = arith.constant 18 : index
    %c0_112 = arith.constant 0 : index
    %101 = vector.load %arg14[%c0_110, %c18_111, %c0_112] : memref<2x48x128xbf16, #tpu.memory_space<vmem>>, vector<2x16x128xbf16>
    %102 = vector.shape_cast %101 : vector<2x16x128xbf16> to vector<32x128xbf16>
    %c4_113 = arith.constant 4 : index
    %c0_114 = arith.constant 0 : index
    %c0_115 = arith.constant 0 : index
    %103 = vector.load %arg4[%c4_113, %c0_114, %c0_115] : memref<5x128x128xbf16, #tpu.memory_space<vmem>>, vector<1x128x128xbf16>
    %104 = vector.shape_cast %103 : vector<1x128x128xbf16> to vector<128x128xbf16>
    %cst_116 = arith.constant dense<0.000000e+00> : vector<32x128xf32>
    %105 = tpu.matmul %102, %104, %cst_116 {dimension_numbers = #tpu.dot_dimension_numbers<[1], [0], [0], [1], [0, 0, 1, 1], [], []>} : vector<32x128xbf16>, vector<128x128xbf16>, vector<32x128xf32> -> vector<32x128xf32>
    %106 = arith.addf %100, %105 : vector<32x128xf32>
    %c0_117 = arith.constant 0 : index
    %c0_118 = arith.constant 0 : index
    %107 = vector.load %arg9[%c0_117, %c0_118] : memref<1x128xf32, #tpu.memory_space<vmem>>, vector<1x128xf32>
    %108 = vector.broadcast %107 : vector<1x128xf32> to vector<32x128xf32>
    %109 = arith.addf %106, %108 : vector<32x128xf32>
    %110 = math.tanh %109 : vector<32x128xf32>
    %111 = vector.shape_cast %110 : vector<32x128xf32> to vector<2x16x128xf32>
    %112 = arith.truncf %111 : vector<2x16x128xf32> to vector<2x16x128xbf16>
    %c0_119 = arith.constant 0 : index
    %c16_120 = arith.constant 16 : index
    %c0_121 = arith.constant 0 : index
    %113 = vector.load %arg13[%c0_119, %c16_120, %c0_121] : memref<2x48x128xbf16, #tpu.memory_space<vmem>>, vector<2x16x128xbf16>
    tpu.vector_store %arg13[%c0_119, %c16_120, %c0_121], %112 {strides = array<i32>} : memref<2x48x128xbf16, #tpu.memory_space<vmem>>, vector<2x16x128xbf16>,
    %c0_122 = arith.constant 0 : index
    %c16_123 = arith.constant 16 : index
    %c0_124 = arith.constant 0 : index
    %114 = vector.load %arg13[%c0_122, %c16_123, %c0_124] : memref<2x48x128xbf16, #tpu.memory_space<vmem>>, vector<2x16x128xbf16>
    %115 = vector.shape_cast %114 : vector<2x16x128xbf16> to vector<32x128xbf16>
    %c2_125 = arith.constant 2 : index
    %c0_126 = arith.constant 0 : index
    %c0_127 = arith.constant 0 : index
    %116 = vector.load %arg5[%c2_125, %c0_126, %c0_127] : memref<5x128x128xbf16, #tpu.memory_space<vmem>>, vector<1x128x128xbf16>
    %117 = vector.shape_cast %116 : vector<1x128x128xbf16> to vector<128x128xbf16>
    %cst_128 = arith.constant dense<0.000000e+00> : vector<32x128xf32>
    %118 = tpu.matmul %115, %117, %cst_128 {dimension_numbers = #tpu.dot_dimension_numbers<[1], [0], [0], [1], [0, 0, 1, 1], [], []>} : vector<32x128xbf16>, vector<128x128xbf16>, vector<32x128xf32> -> vector<32x128xf32>
    %c0_129 = arith.constant 0 : index
    %c14_130 = arith.constant 14 : index
    %c0_131 = arith.constant 0 : index
    %119 = vector.load %arg13[%c0_129, %c14_130, %c0_131] : memref<2x48x128xbf16, #tpu.memory_space<vmem>>, vector<2x16x128xbf16>
    %120 = vector.shape_cast %119 : vector<2x16x128xbf16> to vector<32x128xbf16>
    %c0_132 = arith.constant 0 : index
    %c0_133 = arith.constant 0 : index
    %c0_134 = arith.constant 0 : index
    %121 = vector.load %arg5[%c0_132, %c0_133, %c0_134] : memref<5x128x128xbf16, #tpu.memory_space<vmem>>, vector<1x128x128xbf16>
    %122 = vector.shape_cast %121 : vector<1x128x128xbf16> to vector<128x128xbf16>
    %cst_135 = arith.constant dense<0.000000e+00> : vector<32x128xf32>
    %123 = tpu.matmul %120, %122, %cst_135 {dimension_numbers = #tpu.dot_dimension_numbers<[1], [0], [0], [1], [0, 0, 1, 1], [], []>} : vector<32x128xbf16>, vector<128x128xbf16>, vector<32x128xf32> -> vector<32x128xf32>
    %124 = arith.addf %118, %123 : vector<32x128xf32>
    %c0_136 = arith.constant 0 : index
    %c15_137 = arith.constant 15 : index
    %c0_138 = arith.constant 0 : index
    %125 = vector.load %arg13[%c0_136, %c15_137, %c0_138] : memref<2x48x128xbf16, #tpu.memory_space<vmem>>, vector<2x16x128xbf16>
    %126 = vector.shape_cast %125 : vector<2x16x128xbf16> to vector<32x128xbf16>
    %c1_139 = arith.constant 1 : index
    %c0_140 = arith.constant 0 : index
    %c0_141 = arith.constant 0 : index
    %127 = vector.load %arg5[%c1_139, %c0_140, %c0_141] : memref<5x128x128xbf16, #tpu.memory_space<vmem>>, vector<1x128x128xbf16>
    %128 = vector.shape_cast %127 : vector<1x128x128xbf16> to vector<128x128xbf16>
    %cst_142 = arith.constant dense<0.000000e+00> : vector<32x128xf32>
    %129 = tpu.matmul %126, %128, %cst_142 {dimension_numbers = #tpu.dot_dimension_numbers<[1], [0], [0], [1], [0, 0, 1, 1], [], []>} : vector<32x128xbf16>, vector<128x128xbf16>, vector<32x128xf32> -> vector<32x128xf32>
    %130 = arith.addf %124, %129 : vector<32x128xf32>
    %c0_143 = arith.constant 0 : index
    %c17_144 = arith.constant 17 : index
    %c0_145 = arith.constant 0 : index
    %131 = vector.load %arg13[%c0_143, %c17_144, %c0_145] : memref<2x48x128xbf16, #tpu.memory_space<vmem>>, vector<2x16x128xbf16>
    %132 = vector.shape_cast %131 : vector<2x16x128xbf16> to vector<32x128xbf16>
    %c3_146 = arith.constant 3 : index
    %c0_147 = arith.constant 0 : index
    %c0_148 = arith.constant 0 : index
    %133 = vector.load %arg5[%c3_146, %c0_147, %c0_148] : memref<5x128x128xbf16, #tpu.memory_space<vmem>>, vector<1x128x128xbf16>
    %134 = vector.shape_cast %133 : vector<1x128x128xbf16> to vector<128x128xbf16>
    %cst_149 = arith.constant dense<0.000000e+00> : vector<32x128xf32>
    %135 = tpu.matmul %132, %134, %cst_149 {dimension_numbers = #tpu.dot_dimension_numbers<[1], [0], [0], [1], [0, 0, 1, 1], [], []>} : vector<32x128xbf16>, vector<128x128xbf16>, vector<32x128xf32> -> vector<32x128xf32>
    %136 = arith.addf %130, %135 : vector<32x128xf32>
    %c0_150 = arith.constant 0 : index
    %c18_151 = arith.constant 18 : index
    %c0_152 = arith.constant 0 : index
    %137 = vector.load %arg13[%c0_150, %c18_151, %c0_152] : memref<2x48x128xbf16, #tpu.memory_space<vmem>>, vector<2x16x128xbf16>
    %138 = vector.shape_cast %137 : vector<2x16x128xbf16> to vector<32x128xbf16>
    %c4_153 = arith.constant 4 : index
    %c0_154 = arith.constant 0 : index
    %c0_155 = arith.constant 0 : index
    %139 = vector.load %arg5[%c4_153, %c0_154, %c0_155] : memref<5x128x128xbf16, #tpu.memory_space<vmem>>, vector<1x128x128xbf16>
    %140 = vector.shape_cast %139 : vector<1x128x128xbf16> to vector<128x128xbf16>
    %cst_156 = arith.constant dense<0.000000e+00> : vector<32x128xf32>
    %141 = tpu.matmul %138, %140, %cst_156 {dimension_numbers = #tpu.dot_dimension_numbers<[1], [0], [0], [1], [0, 0, 1, 1], [], []>} : vector<32x128xbf16>, vector<128x128xbf16>, vector<32x128xf32> -> vector<32x128xf32>
    %142 = arith.addf %136, %141 : vector<32x128xf32>
    %c0_157 = arith.constant 0 : index
    %c0_158 = arith.constant 0 : index
    %143 = vector.load %arg10[%c0_157, %c0_158] : memref<1x128xf32, #tpu.memory_space<vmem>>, vector<1x128xf32>
    %144 = vector.broadcast %143 : vector<1x128xf32> to vector<32x128xf32>
    %145 = arith.addf %142, %144 : vector<32x128xf32>
    %146 = math.tanh %145 : vector<32x128xf32>
    %147 = vector.shape_cast %146 : vector<32x128xf32> to vector<2x16x128xf32>
    %148 = arith.truncf %147 : vector<2x16x128xf32> to vector<2x16x128xbf16>
    %c0_159 = arith.constant 0 : index
    %c16_160 = arith.constant 16 : index
    %c0_161 = arith.constant 0 : index
    %149 = vector.load %arg14[%c0_159, %c16_160, %c0_161] : memref<2x48x128xbf16, #tpu.memory_space<vmem>>, vector<2x16x128xbf16>
    tpu.vector_store %arg14[%c0_159, %c16_160, %c0_161], %148 {strides = array<i32>} : memref<2x48x128xbf16, #tpu.memory_space<vmem>>, vector<2x16x128xbf16>,
    %c0_162 = arith.constant 0 : index
    %c16_163 = arith.constant 16 : index
    %c0_164 = arith.constant 0 : index
    %150 = vector.load %arg14[%c0_162, %c16_163, %c0_164] : memref<2x48x128xbf16, #tpu.memory_space<vmem>>, vector<2x16x128xbf16>
    %151 = vector.shape_cast %150 : vector<2x16x128xbf16> to vector<32x128xbf16>
    %c2_165 = arith.constant 2 : index
    %c0_166 = arith.constant 0 : index
    %c0_167 = arith.constant 0 : index
    %152 = vector.load %arg6[%c2_165, %c0_166, %c0_167] : memref<5x128x128xbf16, #tpu.memory_space<vmem>>, vector<1x128x128xbf16>
    %153 = vector.shape_cast %152 : vector<1x128x128xbf16> to vector<128x128xbf16>
    %cst_168 = arith.constant dense<0.000000e+00> : vector<32x128xf32>
    %154 = tpu.matmul %151, %153, %cst_168 {dimension_numbers = #tpu.dot_dimension_numbers<[1], [0], [0], [1], [0, 0, 1, 1], [], []>} : vector<32x128xbf16>, vector<128x128xbf16>, vector<32x128xf32> -> vector<32x128xf32>
    %c0_169 = arith.constant 0 : index
    %c14_170 = arith.constant 14 : index
    %c0_171 = arith.constant 0 : index
    %155 = vector.load %arg14[%c0_169, %c14_170, %c0_171] : memref<2x48x128xbf16, #tpu.memory_space<vmem>>, vector<2x16x128xbf16>
    %156 = vector.shape_cast %155 : vector<2x16x128xbf16> to vector<32x128xbf16>
    %c0_172 = arith.constant 0 : index
    %c0_173 = arith.constant 0 : index
    %c0_174 = arith.constant 0 : index
    %157 = vector.load %arg6[%c0_172, %c0_173, %c0_174] : memref<5x128x128xbf16, #tpu.memory_space<vmem>>, vector<1x128x128xbf16>
    %158 = vector.shape_cast %157 : vector<1x128x128xbf16> to vector<128x128xbf16>
    %cst_175 = arith.constant dense<0.000000e+00> : vector<32x128xf32>
    %159 = tpu.matmul %156, %158, %cst_175 {dimension_numbers = #tpu.dot_dimension_numbers<[1], [0], [0], [1], [0, 0, 1, 1], [], []>} : vector<32x128xbf16>, vector<128x128xbf16>, vector<32x128xf32> -> vector<32x128xf32>
    %160 = arith.addf %154, %159 : vector<32x128xf32>
    %c0_176 = arith.constant 0 : index
    %c15_177 = arith.constant 15 : index
    %c0_178 = arith.constant 0 : index
    %161 = vector.load %arg14[%c0_176, %c15_177, %c0_178] : memref<2x48x128xbf16, #tpu.memory_space<vmem>>, vector<2x16x128xbf16>
    %162 = vector.shape_cast %161 : vector<2x16x128xbf16> to vector<32x128xbf16>
    %c1_179 = arith.constant 1 : index
    %c0_180 = arith.constant 0 : index
    %c0_181 = arith.constant 0 : index
    %163 = vector.load %arg6[%c1_179, %c0_180, %c0_181] : memref<5x128x128xbf16, #tpu.memory_space<vmem>>, vector<1x128x128xbf16>
    %164 = vector.shape_cast %163 : vector<1x128x128xbf16> to vector<128x128xbf16>
    %cst_182 = arith.constant dense<0.000000e+00> : vector<32x128xf32>
    %165 = tpu.matmul %162, %164, %cst_182 {dimension_numbers = #tpu.dot_dimension_numbers<[1], [0], [0], [1], [0, 0, 1, 1], [], []>} : vector<32x128xbf16>, vector<128x128xbf16>, vector<32x128xf32> -> vector<32x128xf32>
    %166 = arith.addf %160, %165 : vector<32x128xf32>
    %c0_183 = arith.constant 0 : index
    %c17_184 = arith.constant 17 : index
    %c0_185 = arith.constant 0 : index
    %167 = vector.load %arg14[%c0_183, %c17_184, %c0_185] : memref<2x48x128xbf16, #tpu.memory_space<vmem>>, vector<2x16x128xbf16>
    %168 = vector.shape_cast %167 : vector<2x16x128xbf16> to vector<32x128xbf16>
    %c3_186 = arith.constant 3 : index
    %c0_187 = arith.constant 0 : index
    %c0_188 = arith.constant 0 : index
    %169 = vector.load %arg6[%c3_186, %c0_187, %c0_188] : memref<5x128x128xbf16, #tpu.memory_space<vmem>>, vector<1x128x128xbf16>
    %170 = vector.shape_cast %169 : vector<1x128x128xbf16> to vector<128x128xbf16>
    %cst_189 = arith.constant dense<0.000000e+00> : vector<32x128xf32>
    %171 = tpu.matmul %168, %170, %cst_189 {dimension_numbers = #tpu.dot_dimension_numbers<[1], [0], [0], [1], [0, 0, 1, 1], [], []>} : vector<32x128xbf16>, vector<128x128xbf16>, vector<32x128xf32> -> vector<32x128xf32>
    %172 = arith.addf %166, %171 : vector<32x128xf32>
    %c0_190 = arith.constant 0 : index
    %c18_191 = arith.constant 18 : index
    %c0_192 = arith.constant 0 : index
    %173 = vector.load %arg14[%c0_190, %c18_191, %c0_192] : memref<2x48x128xbf16, #tpu.memory_space<vmem>>, vector<2x16x128xbf16>
    %174 = vector.shape_cast %173 : vector<2x16x128xbf16> to vector<32x128xbf16>
    %c4_193 = arith.constant 4 : index
    %c0_194 = arith.constant 0 : index
    %c0_195 = arith.constant 0 : index
    %175 = vector.load %arg6[%c4_193, %c0_194, %c0_195] : memref<5x128x128xbf16, #tpu.memory_space<vmem>>, vector<1x128x128xbf16>
    %176 = vector.shape_cast %175 : vector<1x128x128xbf16> to vector<128x128xbf16>
    %cst_196 = arith.constant dense<0.000000e+00> : vector<32x128xf32>
    %177 = tpu.matmul %174, %176, %cst_196 {dimension_numbers = #tpu.dot_dimension_numbers<[1], [0], [0], [1], [0, 0, 1, 1], [], []>} : vector<32x128xbf16>, vector<128x128xbf16>, vector<32x128xf32> -> vector<32x128xf32>
    %178 = arith.addf %172, %177 : vector<32x128xf32>
    %c0_197 = arith.constant 0 : index
    %c0_198 = arith.constant 0 : index
    %179 = vector.load %arg11[%c0_197, %c0_198] : memref<1x128xf32, #tpu.memory_space<vmem>>, vector<1x128xf32>
    %180 = vector.broadcast %179 : vector<1x128xf32> to vector<32x128xf32>
    %181 = arith.addf %178, %180 : vector<32x128xf32>
    %182 = vector.shape_cast %181 : vector<32x128xf32> to vector<2x16x128xf32>
    %c0_199 = arith.constant 0 : index
    %c0_200 = arith.constant 0 : index
    %c0_201 = arith.constant 0 : index
    %183 = vector.load %arg12[%c0_199, %c0_200, %c0_201] : memref<2x16x128xf32, #tpu.memory_space<vmem>>, vector<2x16x128xf32>
    tpu.vector_store %arg12[%c0_199, %c0_200, %c0_201], %182 {strides = array<i32>} : memref<2x16x128xf32, #tpu.memory_space<vmem>>, vector<2x16x128xf32>,
    return
  }
  func.func @transform_0(%arg0: i32) -> (i32, i32, i32) {
    %c0_i32 = arith.constant 0 : i32
    %c0_i32_0 = arith.constant 0 : i32
    %c0_i32_1 = arith.constant 0 : i32
    return %arg0, %c0_i32, %c0_i32_0 : i32, i32, i32
  }
  func.func @transform_1(%arg0: i32) -> (i32, i32, i32) {
    %c0_i32 = arith.constant 0 : i32
    %c0_i32_0 = arith.constant 0 : i32
    %c0_i32_1 = arith.constant 0 : i32
    %c0_i32_2 = arith.constant 0 : i32
    return %c0_i32, %c0_i32_0, %c0_i32_1 : i32, i32, i32
  }
  func.func @transform_2(%arg0: i32) -> (i32, i32, i32) {
    %c0_i32 = arith.constant 0 : i32
    %c0_i32_0 = arith.constant 0 : i32
    %c0_i32_1 = arith.constant 0 : i32
    %c0_i32_2 = arith.constant 0 : i32
    return %c0_i32, %c0_i32_0, %c0_i32_1 : i32, i32, i32
  }
  func.func @transform_3(%arg0: i32) -> (i32, i32, i32) {
    %c0_i32 = arith.constant 0 : i32
    %c0_i32_0 = arith.constant 0 : i32
    %c0_i32_1 = arith.constant 0 : i32
    %c0_i32_2 = arith.constant 0 : i32
    return %c0_i32, %c0_i32_0, %c0_i32_1 : i32, i32, i32
  }
  func.func @transform_4(%arg0: i32) -> (i32, i32, i32) {
    %c0_i32 = arith.constant 0 : i32
    %c0_i32_0 = arith.constant 0 : i32
    %c0_i32_1 = arith.constant 0 : i32
    %c0_i32_2 = arith.constant 0 : i32
    return %c0_i32, %c0_i32_0, %c0_i32_1 : i32, i32, i32
  }
  func.func @transform_5(%arg0: i32) -> (i32, i32, i32) {
    %c0_i32 = arith.constant 0 : i32
    %c0_i32_0 = arith.constant 0 : i32
    %c0_i32_1 = arith.constant 0 : i32
    %c0_i32_2 = arith.constant 0 : i32
    return %c0_i32, %c0_i32_0, %c0_i32_1 : i32, i32, i32
  }
  func.func @transform_6(%arg0: i32) -> (i32, i32) {
    %c0_i32 = arith.constant 0 : i32
    %c0_i32_0 = arith.constant 0 : i32
    %c0_i32_1 = arith.constant 0 : i32
    return %c0_i32, %c0_i32_0 : i32, i32
  }
  func.func @transform_7(%arg0: i32) -> (i32, i32) {
    %c0_i32 = arith.constant 0 : i32
    %c0_i32_0 = arith.constant 0 : i32
    %c0_i32_1 = arith.constant 0 : i32
    return %c0_i32, %c0_i32_0 : i32, i32
  }
  func.func @transform_8(%arg0: i32) -> (i32, i32) {
    %c0_i32 = arith.constant 0 : i32
    %c0_i32_0 = arith.constant 0 : i32
    %c0_i32_1 = arith.constant 0 : i32
    return %c0_i32, %c0_i32_0 : i32, i32
  }
  func.func @transform_9(%arg0: i32) -> (i32, i32) {
    %c0_i32 = arith.constant 0 : i32
    %c0_i32_0 = arith.constant 0 : i32
    %c0_i32_1 = arith.constant 0 : i32
    return %c0_i32, %c0_i32_0 : i32, i32
  }
  func.func @transform_10(%arg0: i32) -> (i32, i32) {
    %c0_i32 = arith.constant 0 : i32
    %c0_i32_0 = arith.constant 0 : i32
    %c0_i32_1 = arith.constant 0 : i32
    return %c0_i32, %c0_i32_0 : i32, i32
  }
  func.func @transform_11(%arg0: i32) -> (i32, i32, i32) {
    %c0_i32 = arith.constant 0 : i32
    %c0_i32_0 = arith.constant 0 : i32
    %c0_i32_1 = arith.constant 0 : i32
    return %arg0, %c0_i32, %c0_i32_0 : i32, i32, i32
  }
}

</mosaic_0001>

<llo_original>
// kernel: postnet_forward.1
$region0: #{postnet_forward.1}
  #allocation0 [shape = 'u32[]', space=smem, size = 0x4, offset = 0x4, fixed_abs, tag = 'smem constant byte address 0x4 - core index']
  #allocation1 [shape = 'u32[144,128]{1,0:T(1,128)}', space=vmem, size = 0x12000, scoped, tag = 'internal scratch']
  #allocation2 [shape = 'bf16[2,48,128]{2,1,0:T(16,128)(2,1)}', space=vmem, size = 0x6000, scoped, tag = 'scratch operand']
  #allocation3 [shape = 'bf16[2,48,128]{2,1,0:T(16,128)(2,1)}', space=vmem, size = 0x6000, scoped, tag = 'scratch operand']
  %s0 = inlined_call_operand.vmem [shape: bf16[2,48,128], index: 0, kind: input, shape index: {}]
  %s1 = inlined_call_operand.vmem [shape: bf16[5,128,128], index: 1, kind: input, shape index: {}]
  %s2 = inlined_call_operand.vmem [shape: bf16[5,128,128], index: 2, kind: input, shape index: {}]
  %s3 = inlined_call_operand.vmem [shape: bf16[5,128,128], index: 3, kind: input, shape index: {}]
  %s4 = inlined_call_operand.vmem [shape: bf16[5,128,128], index: 4, kind: input, shape index: {}]
  %s5 = inlined_call_operand.vmem [shape: bf16[5,128,128], index: 5, kind: input, shape index: {}]
  %s6 = inlined_call_operand.vmem [shape: f32[1,128], index: 6, kind: input, shape index: {}]
  %s7 = inlined_call_operand.vmem [shape: f32[1,128], index: 7, kind: input, shape index: {}]
  %s8 = inlined_call_operand.vmem [shape: f32[1,128], index: 8, kind: input, shape index: {}]
  %s9 = inlined_call_operand.vmem [shape: f32[1,128], index: 9, kind: input, shape index: {}]
  %s10 = inlined_call_operand.vmem [shape: f32[1,128], index: 10, kind: input, shape index: {}]
  %s11 = inlined_call_operand.vmem [shape: f32[2,16,128], index: 11, kind: output, shape index: {}]
  %s12 = sld [smem:[#allocation0]]
  $region54: #{postnet_forward.1} parent=0
    _
  %s14 = ssub.s32 1, %s12
  %s15 = scalar_select 0, %s14, %s12
  // Predicated region
  $region2: #{postnet_forward.1} parent=0 // pred_check
    _
  $region3: #{postnet_forward.1} parent=0 // pred_check_branch
    %17 = sbr.rel (0) target = $region5
  $region4: #{postnet_forward.1} parent=0 // pred_region
    _
  $region5: #{postnet_forward.1} parent=0 // pred_fallthru
    _
  // Predicated region
  $region6: #{postnet_forward.1} parent=0 // pred_check
    _
  $region7: #{postnet_forward.1} parent=0 // pred_check_branch
    %19 = sbr.rel (0) target = $region9
  $region8: #{postnet_forward.1} parent=0 // pred_region
    _
  $region9: #{postnet_forward.1} parent=0 // pred_fallthru
    _
  // Predicated region
  $region10: #{postnet_forward.1} parent=0 // pred_check
    _
  $region11: #{postnet_forward.1} parent=0 // pred_check_branch
    %21 = sbr.rel (0) target = $region13
  $region12: #{postnet_forward.1} parent=0 // pred_region
    _
  $region13: #{postnet_forward.1} parent=0 // pred_fallthru
    _
  // Predicated region
  $region14: #{postnet_forward.1} parent=0 // pred_check
    _
  $region15: #{postnet_forward.1} parent=0 // pred_check_branch
    %23 = sbr.rel (0) target = $region17
  $region16: #{postnet_forward.1} parent=0 // pred_region
    _
  $region17: #{postnet_forward.1} parent=0 // pred_fallthru
    _
  // Predicated region
  $region18: #{postnet_forward.1} parent=0 // pred_check
    _
  $region19: #{postnet_forward.1} parent=0 // pred_check_branch
    %25 = sbr.rel (0) target = $region21
  $region20: #{postnet_forward.1} parent=0 // pred_region
    _
  $region21: #{postnet_forward.1} parent=0 // pred_fallthru
    _
  // Predicated region
  $region22: #{postnet_forward.1} parent=0 // pred_check
    _
  $region23: #{postnet_forward.1} parent=0 // pred_check_branch
    %27 = sbr.rel (0) target = $region25
  $region24: #{postnet_forward.1} parent=0 // pred_region
    _
  $region25: #{postnet_forward.1} parent=0 // pred_fallthru
    _
  // Predicated region
  $region26: #{postnet_forward.1} parent=0 // pred_check
    _
  $region27: #{postnet_forward.1} parent=0 // pred_check_branch
    %29 = sbr.rel (0) target = $region29
  $region28: #{postnet_forward.1} parent=0 // pred_region
    _
  $region29: #{postnet_forward.1} parent=0 // pred_fallthru
    _
  // Predicated region
  $region30: #{postnet_forward.1} parent=0 // pred_check
    _
  $region31: #{postnet_forward.1} parent=0 // pred_check_branch
    %31 = sbr.rel (0) target = $region33
  $region32: #{postnet_forward.1} parent=0 // pred_region
    _
  $region33: #{postnet_forward.1} parent=0 // pred_fallthru
    _
  // Predicated region
  $region34: #{postnet_forward.1} parent=0 // pred_check
    _
  $region35: #{postnet_forward.1} parent=0 // pred_check_branch
    %33 = sbr.rel (0) target = $region37
  $region36: #{postnet_forward.1} parent=0 // pred_region
    _
  $region37: #{postnet_forward.1} parent=0 // pred_fallthru
    _
  // Predicated region
  $region38: #{postnet_forward.1} parent=0 // pred_check
    _
  $region39: #{postnet_forward.1} parent=0 // pred_check_branch
    %35 = sbr.rel (0) target = $region41
  $region40: #{postnet_forward.1} parent=0 // pred_region
    _
  $region41: #{postnet_forward.1} parent=0 // pred_fallthru
    _
  // Predicated region
  $region42: #{postnet_forward.1} parent=0 // pred_check
    _
  $region43: #{postnet_forward.1} parent=0 // pred_check_branch
    %37 = sbr.rel (0) target = $region45
  $region44: #{postnet_forward.1} parent=0 // pred_region
    _
  $region45: #{postnet_forward.1} parent=0 // pred_fallthru
    _
  %39 = vst [vmem:[#allocation2] sm:$0xff] 0
  %40 = vst [vmem:[#allocation2 + $0x18] sm:$0xff] 0
  %41 = vst [vmem:[#allocation2 + $0x10] sm:$0xff] 0
  %42 = vst [vmem:[#allocation2 + $0x28] sm:$0xff] 0
  %43 = vst [vmem:[#allocation3] sm:$0xff] 0
  %44 = vst [vmem:[#allocation3 + $0x18] sm:$0xff] 0
  %45 = vst [vmem:[#allocation3 + $0x10] sm:$0xff] 0
  %46 = vst [vmem:[#allocation3 + $0x28] sm:$0xff] 0
  %v47 = vld [vmem:[%s0 + $0x8] sm:$0xf]
  %v48 = vld [vmem:[%s0 + $0xc] sm:$0xf]
  %v49 = vld [vmem:[%s0 + $0x20] sm:$0xf]
  %v50 = vld [vmem:[%s0 + $0x24] sm:$0xf]
  %s51 = scalar_lea.vmem %s1, 128
  %v52 = vld [vmem:[%s51] sm:$0xf]
  %v53 = vld [vmem:[%s51 + $0x4] sm:$0xf]
  %v54 = vld [vmem:[%s51 + $0x8] sm:$0xf]
  %v55 = vld [vmem:[%s51 + $0xc] sm:$0xf]
  %v56 = vld [vmem:[%s51 + $0x10] sm:$0xf]
  %v57 = vld [vmem:[%s51 + $0x14] sm:$0xf]
  %v58 = vld [vmem:[%s51 + $0x18] sm:$0xf]
  %v59 = vld [vmem:[%s51 + $0x1c] sm:$0xf]
  %v60 = vld [vmem:[%s51 + $0x20] sm:$0xf]
  %v61 = vld [vmem:[%s51 + $0x24] sm:$0xf]
  %v62 = vld [vmem:[%s51 + $0x28] sm:$0xf]
  %v63 = vld [vmem:[%s51 + $0x2c] sm:$0xf]
  %v64 = vld [vmem:[%s51 + $0x30] sm:$0xf]
  %v65 = vld [vmem:[%s51 + $0x34] sm:$0xf]
  %v66 = vld [vmem:[%s51 + $0x38] sm:$0xf]
  %v67 = vld [vmem:[%s51 + $0x3c] sm:$0xf]
  %v68 = vld [vmem:[%s0 + $0x4] sm:$0x8]
  %v69 = vld [vmem:[%s0 + $0xc] sm:$0x7]
  %v70 = vld [vmem:[%s0 + $0x1c] sm:$0x8]
  %v71 = vld [vmem:[%s0 + $0x24] sm:$0x7]
  %vm78 = vcmask 1040384
  %vm79 = vcmask 1044484
  %vm80 = vmor %vm78, %vm79
  %v81 = vrot.slane %v68, 7
  %v82 = vrot.slane %v81, 4
  %v83 = vrot.slane %v47, 7
  %v84 = vsel %vm80, %v82, %v83
  %v85 = vrot.slane %v83, 4
  %v86 = vrot.slane %v69, 7
  %v87 = vsel %vm80, %v85, %v86
  %v88 = vrot.slane %v70, 7
  %v89 = vrot.slane %v88, 4
  %v90 = vrot.slane %v49, 7
  %v91 = vsel %vm80, %v89, %v90
  %v92 = vrot.slane %v90, 4
  %v93 = vrot.slane %v71, 7
  %v94 = vsel %vm80, %v92, %v93
  %v95 = vld [vmem:[%s1] sm:$0xf]
  %v96 = vld [vmem:[%s1 + $0x4] sm:$0xf]
  %v97 = vld [vmem:[%s1 + $0x8] sm:$0xf]
  %v98 = vld [vmem:[%s1 + $0xc] sm:$0xf]
  %v99 = vld [vmem:[%s1 + $0x10] sm:$0xf]
  %v100 = vld [vmem:[%s1 + $0x14] sm:$0xf]
  %v101 = vld [vmem:[%s1 + $0x18] sm:$0xf]
  %v102 = vld [vmem:[%s1 + $0x1c] sm:$0xf]
  %v103 = vld [vmem:[%s1 + $0x20] sm:$0xf]
  %v104 = vld [vmem:[%s1 + $0x24] sm:$0xf]
  %v105 = vld [vmem:[%s1 + $0x28] sm:$0xf]
  %v106 = vld [vmem:[%s1 + $0x2c] sm:$0xf]
  %v107 = vld [vmem:[%s1 + $0x30] sm:$0xf]
  %v108 = vld [vmem:[%s1 + $0x34] sm:$0xf]
  %v109 = vld [vmem:[%s1 + $0x38] sm:$0xf]
  %v110 = vld [vmem:[%s1 + $0x3c] sm:$0xf]
  %v111 = vunpack.c.l.b16 %v84
  %v112 = vunpack.c.l.b16 %v87
  %v113 = vunpack.c.l.b16 %v91
  %v114 = vunpack.c.l.b16 %v94
  %v115 = vpack.c.b16 %v112, %v111
  %v116 = vpack.c.b16 %v114, %v113
  %v135 = vunpack.c.l.b16 %v95
  %v136 = vunpack.c.l.b16 %v96
  %v137 = vunpack.c.l.b16 %v97
  %v138 = vunpack.c.l.b16 %v98
  %v139 = vunpack.c.l.b16 %v99
  %v140 = vunpack.c.l.b16 %v100
  %v141 = vunpack.c.l.b16 %v101
  %v142 = vunpack.c.l.b16 %v102
  %v143 = vunpack.c.l.b16 %v103
  %v144 = vunpack.c.l.b16 %v104
  %v145 = vunpack.c.l.b16 %v105
  %v146 = vunpack.c.l.b16 %v106
  %v147 = vunpack.c.l.b16 %v107
  %v148 = vunpack.c.l.b16 %v108
  %v149 = vunpack.c.l.b16 %v109
  %v150 = vunpack.c.l.b16 %v110
  %v151 = vpack.c.b16 %v136, %v135
  %v152 = vpack.c.b16 %v138, %v137
  %v153 = vpack.c.b16 %v140, %v139
  %v154 = vpack.c.b16 %v142, %v141
  %v155 = vpack.c.b16 %v144, %v143
  %v156 = vpack.c.b16 %v146, %v145
  %v157 = vpack.c.b16 %v148, %v147
  %v158 = vpack.c.b16 %v150, %v149
  %167 = vmatprep.subr.bf16.mxu0 0
  %168 = vmatpush1.bf16.msra.mxu0 %v151
  %169 = vmatprep.subr.bf16.mxu0 0
  %170 = vmatpush1.bf16.msra.mxu0 %v152
  %171 = vmatprep.subr.bf16.mxu0 0
  %172 = vmatpush1.bf16.msra.mxu0 %v153
  %173 = vmatprep.subr.bf16.mxu0 0
  %174 = vmatpush1.bf16.msra.mxu0 %v154
  %175 = vmatprep.subr.bf16.mxu0 0
  %176 = vmatpush1.bf16.msra.mxu0 %v155
  %177 = vmatprep.subr.bf16.mxu0 0
  %178 = vmatpush1.bf16.msra.mxu0 %v156
  %179 = vmatprep.subr.bf16.mxu0 0
  %180 = vmatpush1.bf16.msra.mxu0 %v157
  %181 = vmatprep.subr.bf16.mxu0 0
  %182 = vmatpush1.bf16.msra.mxu0 %v158
  %183 = vmatprep.subr.bf16.mxu0 0
  %184 = vmatpush1.bf16.msra.mxu0 0
  %185 = vmatprep.subr.bf16.mxu0 0
  %186 = vmatpush1.bf16.msra.mxu0 0
  %187 = vmatprep.subr.bf16.mxu0 0
  %188 = vmatpush1.bf16.msra.mxu0 0
  %189 = vmatprep.subr.bf16.mxu0 0
  %190 = vmatpush1.bf16.msra.mxu0 0
  %191 = vmatprep.subr.bf16.mxu0 0
  %192 = vmatpush1.bf16.msra.mxu0 0
  %193 = vmatprep.subr.bf16.mxu0 0
  %194 = vmatpush1.bf16.msra.mxu0 0
  %195 = vmatprep.subr.bf16.mxu0 0
  %196 = vmatpush1.bf16.msra.mxu0 0
  %197 = vmatprep.subr.bf16.mxu0 0
  %198 = vmatpush1.bf16.msra.mxu0 0
  %199 = vmatprep.mubr.bf16.mxu0 0
  %200 = vmatmul.mubr.bf16.gmra.mrb[0].mxu0 %v115
  %v201 = vpop.f32.mrb[0].mxu0
  %v202 = vadd.f32 0.0, %v201
  %v203 = vpop.f32.mrb[0].mxu0
  %v204 = vpop.f32.mrb[0].mxu0
  %v205 = vadd.f32 0.0, %v204
  %v206 = vpop.f32.mrb[0].mxu0
  %207 = vmatprep.mubr.bf16.mxu0 0
  %208 = vmatmul.mubr.bf16.gmra.mrb[0].mxu0 %v116
  %v209 = vpop.f32.mrb[0].mxu0
  %v210 = vadd.f32 0.0, %v209
  %v211 = vpop.f32.mrb[0].mxu0
  %v212 = vpop.f32.mrb[0].mxu0
  %v213 = vadd.f32 0.0, %v212
  %v214 = vpop.f32.mrb[0].mxu0
  %215 = vdwg.mxu0
  %v218 = vunpack.c.l.b16 %v47
  %v219 = vunpack.c.l.b16 %v48
  %v220 = vunpack.c.l.b16 %v49
  %v221 = vunpack.c.l.b16 %v50
  %v222 = vpack.c.b16 %v219, %v218
  %v223 = vpack.c.b16 %v221, %v220
  %v242 = vunpack.c.l.b16 %v52
  %v243 = vunpack.c.l.b16 %v53
  %v244 = vunpack.c.l.b16 %v54
  %v245 = vunpack.c.l.b16 %v55
  %v246 = vunpack.c.l.b16 %v56
  %v247 = vunpack.c.l.b16 %v57
  %v248 = vunpack.c.l.b16 %v58
  %v249 = vunpack.c.l.b16 %v59
  %v250 = vunpack.c.l.b16 %v60
  %v251 = vunpack.c.l.b16 %v61
  %v252 = vunpack.c.l.b16 %v62
  %v253 = vunpack.c.l.b16 %v63
  %v254 = vunpack.c.l.b16 %v64
  %v255 = vunpack.c.l.b16 %v65
  %v256 = vunpack.c.l.b16 %v66
  %v257 = vunpack.c.l.b16 %v67
  %v258 = vpack.c.b16 %v243, %v242
  %v259 = vpack.c.b16 %v245, %v244
  %v260 = vpack.c.b16 %v247, %v246
  %v261 = vpack.c.b16 %v249, %v248
  %v262 = vpack.c.b16 %v251, %v250
  %v263 = vpack.c.b16 %v253, %v252
  %v264 = vpack.c.b16 %v255, %v254
  %v265 = vpack.c.b16 %v257, %v256
  %274 = vmatprep.subr.bf16.mxu0 0
  %275 = vmatpush1.bf16.msra.mxu0 %v258
  %276 = vmatprep.subr.bf16.mxu0 0
  %277 = vmatpush1.bf16.msra.mxu0 %v259
  %278 = vmatprep.subr.bf16.mxu0 0
  %279 = vmatpush1.bf16.msra.mxu0 %v260
  %280 = vmatprep.subr.bf16.mxu0 0
  %281 = vmatpush1.bf16.msra.mxu0 %v261
  %282 = vmatprep.subr.bf16.mxu0 0
  %283 = vmatpush1.bf16.msra.mxu0 %v262
  %284 = vmatprep.subr.bf16.mxu0 0
  %285 = vmatpush1.bf16.msra.mxu0 %v263
  %286 = vmatprep.subr.bf16.mxu0 0
  %287 = vmatpush1.bf16.msra.mxu0 %v264
  %288 = vmatprep.subr.bf16.mxu0 0
  %289 = vmatpush1.bf16.msra.mxu0 %v265
  %290 = vmatprep.subr.bf16.mxu0 0
  %291 = vmatpush1.bf16.msra.mxu0 0
  %292 = vmatprep.subr.bf16.mxu0 0
  %293 = vmatpush1.bf16.msra.mxu0 0
  %294 = vmatprep.subr.bf16.mxu0 0
  %295 = vmatpush1.bf16.msra.mxu0 0
  %296 = vmatprep.subr.bf16.mxu0 0
  %297 = vmatpush1.bf16.msra.mxu0 0
  %298 = vmatprep.subr.bf16.mxu0 0
  %299 = vmatpush1.bf16.msra.mxu0 0
  %300 = vmatprep.subr.bf16.mxu0 0
  %301 = vmatpush1.bf16.msra.mxu0 0
  %302 = vmatprep.subr.bf16.mxu0 0
  %303 = vmatpush1.bf16.msra.mxu0 0
  %304 = vmatprep.subr.bf16.mxu0 0
  %305 = vmatpush1.bf16.msra.mxu0 0
  %306 = vmatprep.mubr.bf16.mxu0 0
  %307 = vmatmul.mubr.bf16.gmra.mrb[0].mxu0 %v222
  %v308 = vpop.f32.mrb[0].mxu0
  %v309 = vadd.f32 %v202, %v308
  %v310 = vpop.f32.mrb[0].mxu0
  %v311 = vpop.f32.mrb[0].mxu0
  %v312 = vadd.f32 %v205, %v311
  %v313 = vpop.f32.mrb[0].mxu0
  %314 = vmatprep.mubr.bf16.mxu0 0
  %315 = vmatmul.mubr.bf16.gmra.mrb[0].mxu0 %v223
  %v316 = vpop.f32.mrb[0].mxu0
  %v317 = vadd.f32 %v210, %v316
  %v318 = vpop.f32.mrb[0].mxu0
  %v319 = vpop.f32.mrb[0].mxu0
  %v320 = vadd.f32 %v213, %v319
  %v321 = vpop.f32.mrb[0].mxu0
  %322 = vdwg.mxu0
  %vm323 = vsmask.f32 256
  %vm324 = vsmask.f32 4368
  %vm325 = vmor %vm323, %vm324
  %v327 = vshrl.u32 %v68, 16
  %v329 = vrot.slane %v327, 7
  %v330 = vrot.slane %v329, 4
  %v332 = vshrl.u32 %v47, 16
  %v334 = vrot.slane %v332, 7
  %v335 = vshll.u32 %v47, 16
  %v337 = vor.u32 %v334, %v335
  %v338 = vsel %vm325, %v330, %v337
  %v339 = vrot.slane %v334, 4
  %v341 = vshrl.u32 %v48, 16
  %v343 = vrot.slane %v341, 7
  %v344 = vshll.u32 %v48, 16
  %v346 = vor.u32 %v343, %v344
  %v347 = vsel %vm325, %v339, %v346
  %v349 = vshrl.u32 %v70, 16
  %v351 = vrot.slane %v349, 7
  %v352 = vrot.slane %v351, 4
  %v354 = vshrl.u32 %v49, 16
  %v356 = vrot.slane %v354, 7
  %v357 = vshll.u32 %v49, 16
  %v359 = vor.u32 %v356, %v357
  %v360 = vsel %vm325, %v352, %v359
  %v361 = vrot.slane %v356, 4
  %v363 = vshrl.u32 %v50, 16
  %v365 = vrot.slane %v363, 7
  %v366 = vshll.u32 %v50, 16
  %v368 = vor.u32 %v365, %v366
  %v369 = vsel %vm325, %v361, %v368
  %s370 = scalar_lea.vmem %s1, 64
  %v371 = vld [vmem:[%s370] sm:$0xf]
  %v372 = vld [vmem:[%s370 + $0x4] sm:$0xf]
  %v373 = vld [vmem:[%s370 + $0x8] sm:$0xf]
  %v374 = vld [vmem:[%s370 + $0xc] sm:$0xf]
  %v375 = vld [vmem:[%s370 + $0x10] sm:$0xf]
  %v376 = vld [vmem:[%s370 + $0x14] sm:$0xf]
  %v377 = vld [vmem:[%s370 + $0x18] sm:$0xf]
  %v378 = vld [vmem:[%s370 + $0x1c] sm:$0xf]
  %v379 = vld [vmem:[%s370 + $0x20] sm:$0xf]
  %v380 = vld [vmem:[%s370 + $0x24] sm:$0xf]
  %v381 = vld [vmem:[%s370 + $0x28] sm:$0xf]
  %v382 = vld [vmem:[%s370 + $0x2c] sm:$0xf]
  %v383 = vld [vmem:[%s370 + $0x30] sm:$0xf]
  %v384 = vld [vmem:[%s370 + $0x34] sm:$0xf]
  %v385 = vld [vmem:[%s370 + $0x38] sm:$0xf]
  %v386 = vld [vmem:[%s370 + $0x3c] sm:$0xf]
  %v387 = vunpack.c.l.b16 %v338
  %v388 = vunpack.c.l.b16 %v347
  %v389 = vunpack.c.l.b16 %v360
  %v390 = vunpack.c.l.b16 %v369
  %v391 = vpack.c.b16 %v388, %v387
  %v392 = vpack.c.b16 %v390, %v389
  %v411 = vunpack.c.l.b16 %v371
  %v412 = vunpack.c.l.b16 %v372
  %v413 = vunpack.c.l.b16 %v373
  %v414 = vunpack.c.l.b16 %v374
  %v415 = vunpack.c.l.b16 %v375
  %v416 = vunpack.c.l.b16 %v376
  %v417 = vunpack.c.l.b16 %v377
  %v418 = vunpack.c.l.b16 %v378
  %v419 = vunpack.c.l.b16 %v379
  %v420 = vunpack.c.l.b16 %v380
  %v421 = vunpack.c.l.b16 %v381
  %v422 = vunpack.c.l.b16 %v382
  %v423 = vunpack.c.l.b16 %v383
  %v424 = vunpack.c.l.b16 %v384
  %v425 = vunpack.c.l.b16 %v385
  %v426 = vunpack.c.l.b16 %v386
  %v427 = vpack.c.b16 %v412, %v411
  %v428 = vpack.c.b16 %v414, %v413
  %v429 = vpack.c.b16 %v416, %v415
  %v430 = vpack.c.b16 %v418, %v417
  %v431 = vpack.c.b16 %v420, %v419
  %v432 = vpack.c.b16 %v422, %v421
  %v433 = vpack.c.b16 %v424, %v423
  %v434 = vpack.c.b16 %v426, %v425
  %443 = vmatprep.subr.bf16.mxu0 0
  %444 = vmatpush1.bf16.msra.mxu0 %v427
  %445 = vmatprep.subr.bf16.mxu0 0
  %446 = vmatpush1.bf16.msra.mxu0 %v428
  %447 = vmatprep.subr.bf16.mxu0 0
  %448 = vmatpush1.bf16.msra.mxu0 %v429
  %449 = vmatprep.subr.bf16.mxu0 0
  %450 = vmatpush1.bf16.msra.mxu0 %v430
  %451 = vmatprep.subr.bf16.mxu0 0
  %452 = vmatpush1.bf16.msra.mxu0 %v431
  %453 = vmatprep.subr.bf16.mxu0 0
  %454 = vmatpush1.bf16.msra.mxu0 %v432
  %455 = vmatprep.subr.bf16.mxu0 0
  %456 = vmatpush1.bf16.msra.mxu0 %v433
  %457 = vmatprep.subr.bf16.mxu0 0
  %458 = vmatpush1.bf16.msra.mxu0 %v434
  %459 = vmatprep.subr.bf16.mxu0 0
  %460 = vmatpush1.bf16.msra.mxu0 0
  %461 = vmatprep.subr.bf16.mxu0 0
  %462 = vmatpush1.bf16.msra.mxu0 0
  %463 = vmatprep.subr.bf16.mxu0 0
  %464 = vmatpush1.bf16.msra.mxu0 0
  %465 = vmatprep.subr.bf16.mxu0 0
  %466 = vmatpush1.bf16.msra.mxu0 0
  %467 = vmatprep.subr.bf16.mxu0 0
  %468 = vmatpush1.bf16.msra.mxu0 0
  %469 = vmatprep.subr.bf16.mxu0 0
  %470 = vmatpush1.bf16.msra.mxu0 0
  %471 = vmatprep.subr.bf16.mxu0 0
  %472 = vmatpush1.bf16.msra.mxu0 0
  %473 = vmatprep.subr.bf16.mxu0 0
  %474 = vmatpush1.bf16.msra.mxu0 0
  %475 = vmatprep.mubr.bf16.mxu0 0
  %476 = vmatmul.mubr.bf16.gmra.mrb[0].mxu0 %v391
  %v477 = vpop.f32.mrb[0].mxu0
  %v478 = vadd.f32 0.0, %v477
  %v479 = vpop.f32.mrb[0].mxu0
  %v480 = vpop.f32.mrb[0].mxu0
  %v481 = vadd.f32 0.0, %v480
  %v482 = vpop.f32.mrb[0].mxu0
  %483 = vmatprep.mubr.bf16.mxu0 0
  %484 = vmatmul.mubr.bf16.gmra.mrb[0].mxu0 %v392
  %v485 = vpop.f32.mrb[0].mxu0
  %v486 = vadd.f32 0.0, %v485
  %v487 = vpop.f32.mrb[0].mxu0
  %v488 = vpop.f32.mrb[0].mxu0
  %v489 = vadd.f32 0.0, %v488
  %v490 = vpop.f32.mrb[0].mxu0
  %491 = vdwg.mxu0
  %v492 = vadd.f32 %v309, %v478
  %v493 = vadd.f32 %v312, %v481
  %v494 = vadd.f32 %v317, %v486
  %v495 = vadd.f32 %v320, %v489
  %v496 = vld [vmem:[%s0 + $0x8] sm:$0xf]
  %v497 = vld [vmem:[%s0 + $0xc] sm:$0xf]
  %v498 = vld [vmem:[%s0 + $0x10] sm:$0x1]
  %v499 = vld [vmem:[%s0 + $0x20] sm:$0xf]
  %v500 = vld [vmem:[%s0 + $0x24] sm:$0xf]
  %v501 = vld [vmem:[%s0 + $0x28] sm:$0x1]
  %vm502 = vsmask.f32 3328
  %vm503 = vsmask.f32 7440
  %vm504 = vmor %vm502, %vm503
  %v506 = vshrl.u32 %v496, 16
  %v508 = vrot.slane %v506, 4
  %v509 = vshll.u32 %v496, 16
  %v511 = vrot.slane %v509, 5
  %v512 = vor.u32 %v508, %v511
  %v513 = vrot.slane %v512, 4
  %v515 = vshll.u32 %v497, 16
  %v517 = vrot.slane %v515, 5
  %v518 = vsel %vm504, %v513, %v517
  %v519 = vshrl.u32 %v497, 16
  %v521 = vrot.slane %v519, 4
  %v522 = vor.u32 %v521, %v517
  %v523 = vrot.slane %v522, 4
  %v525 = vshll.u32 %v498, 16
  %v527 = vrot.slane %v525, 5
  %v528 = vsel %vm504, %v523, %v527
  %v530 = vshrl.u32 %v499, 16
  %v532 = vrot.slane %v530, 4
  %v533 = vshll.u32 %v499, 16
  %v535 = vrot.slane %v533, 5
  %v536 = vor.u32 %v532, %v535
  %v537 = vrot.slane %v536, 4
  %v539 = vshll.u32 %v500, 16
  %v541 = vrot.slane %v539, 5
  %v542 = vsel %vm504, %v537, %v541
  %v543 = vshrl.u32 %v500, 16
  %v545 = vrot.slane %v543, 4
  %v546 = vor.u32 %v545, %v541
  %v547 = vrot.slane %v546, 4
  %v549 = vshll.u32 %v501, 16
  %v551 = vrot.slane %v549, 5
  %v552 = vsel %vm504, %v547, %v551
  %s553 = scalar_lea.vmem %s1, 192
  %v554 = vld [vmem:[%s553] sm:$0xf]
  %v555 = vld [vmem:[%s553 + $0x4] sm:$0xf]
  %v556 = vld [vmem:[%s553 + $0x8] sm:$0xf]
  %v557 = vld [vmem:[%s553 + $0xc] sm:$0xf]
  %v558 = vld [vmem:[%s553 + $0x10] sm:$0xf]
  %v559 = vld [vmem:[%s553 + $0x14] sm:$0xf]
  %v560 = vld [vmem:[%s553 + $0x18] sm:$0xf]
  %v561 = vld [vmem:[%s553 + $0x1c] sm:$0xf]
  %v562 = vld [vmem:[%s553 + $0x20] sm:$0xf]
  %v563 = vld [vmem:[%s553 + $0x24] sm:$0xf]
  %v564 = vld [vmem:[%s553 + $0x28] sm:$0xf]
  %v565 = vld [vmem:[%s553 + $0x2c] sm:$0xf]
  %v566 = vld [vmem:[%s553 + $0x30] sm:$0xf]
  %v567 = vld [vmem:[%s553 + $0x34] sm:$0xf]
  %v568 = vld [vmem:[%s553 + $0x38] sm:$0xf]
  %v569 = vld [vmem:[%s553 + $0x3c] sm:$0xf]
  %v570 = vunpack.c.l.b16 %v518
  %v571 = vunpack.c.l.b16 %v528
  %v572 = vunpack.c.l.b16 %v542
  %v573 = vunpack.c.l.b16 %v552
  %v574 = vpack.c.b16 %v571, %v570
  %v575 = vpack.c.b16 %v573, %v572
  %v594 = vunpack.c.l.b16 %v554
  %v595 = vunpack.c.l.b16 %v555
  %v596 = vunpack.c.l.b16 %v556
  %v597 = vunpack.c.l.b16 %v557
  %v598 = vunpack.c.l.b16 %v558
  %v599 = vunpack.c.l.b16 %v559
  %v600 = vunpack.c.l.b16 %v560
  %v601 = vunpack.c.l.b16 %v561
  %v602 = vunpack.c.l.b16 %v562
  %v603 = vunpack.c.l.b16 %v563
  %v604 = vunpack.c.l.b16 %v564
  %v605 = vunpack.c.l.b16 %v565
  %v606 = vunpack.c.l.b16 %v566
  %v607 = vunpack.c.l.b16 %v567
  %v608 = vunpack.c.l.b16 %v568
  %v609 = vunpack.c.l.b16 %v569
  %v610 = vpack.c.b16 %v595, %v594
  %v611 = vpack.c.b16 %v597, %v596
  %v612 = vpack.c.b16 %v599, %v598
  %v613 = vpack.c.b16 %v601, %v600
  %v614 = vpack.c.b16 %v603, %v602
  %v615 = vpack.c.b16 %v605, %v604
  %v616 = vpack.c.b16 %v607, %v606
  %v617 = vpack.c.b16 %v609, %v608
  %626 = vmatprep.subr.bf16.mxu0 0
  %627 = vmatpush1.bf16.msra.mxu0 %v610
  %628 = vmatprep.subr.bf16.mxu0 0
  %629 = vmatpush1.bf16.msra.mxu0 %v611
  %630 = vmatprep.subr.bf16.mxu0 0
  %631 = vmatpush1.bf16.msra.mxu0 %v612
  %632 = vmatprep.subr.bf16.mxu0 0
  %633 = vmatpush1.bf16.msra.mxu0 %v613
  %634 = vmatprep.subr.bf16.mxu0 0
  %635 = vmatpush1.bf16.msra.mxu0 %v614
  %636 = vmatprep.subr.bf16.mxu0 0
  %637 = vmatpush1.bf16.msra.mxu0 %v615
  %638 = vmatprep.subr.bf16.mxu0 0
  %639 = vmatpush1.bf16.msra.mxu0 %v616
  %640 = vmatprep.subr.bf16.mxu0 0
  %641 = vmatpush1.bf16.msra.mxu0 %v617
  %642 = vmatprep.subr.bf16.mxu0 0
  %643 = vmatpush1.bf16.msra.mxu0 0
  %644 = vmatprep.subr.bf16.mxu0 0
  %645 = vmatpush1.bf16.msra.mxu0 0
  %646 = vmatprep.subr.bf16.mxu0 0
  %647 = vmatpush1.bf16.msra.mxu0 0
  %648 = vmatprep.subr.bf16.mxu0 0
  %649 = vmatpush1.bf16.msra.mxu0 0
  %650 = vmatprep.subr.bf16.mxu0 0
  %651 = vmatpush1.bf16.msra.mxu0 0
  %652 = vmatprep.subr.bf16.mxu0 0
  %653 = vmatpush1.bf16.msra.mxu0 0
  %654 = vmatprep.subr.bf16.mxu0 0
  %655 = vmatpush1.bf16.msra.mxu0 0
  %656 = vmatprep.subr.bf16.mxu0 0
  %657 = vmatpush1.bf16.msra.mxu0 0
  %658 = vmatprep.mubr.bf16.mxu0 0
  %659 = vmatmul.mubr.bf16.gmra.mrb[0].mxu0 %v574
  %v660 = vpop.f32.mrb[0].mxu0
  %v661 = vadd.f32 0.0, %v660
  %v662 = vpop.f32.mrb[0].mxu0
  %v663 = vpop.f32.mrb[0].mxu0
  %v664 = vadd.f32 0.0, %v663
  %v665 = vpop.f32.mrb[0].mxu0
  %666 = vmatprep.mubr.bf16.mxu0 0
  %667 = vmatmul.mubr.bf16.gmra.mrb[0].mxu0 %v575
  %v668 = vpop.f32.mrb[0].mxu0
  %v669 = vadd.f32 0.0, %v668
  %v670 = vpop.f32.mrb[0].mxu0
  %v671 = vpop.f32.mrb[0].mxu0
  %v672 = vadd.f32 0.0, %v671
  %v673 = vpop.f32.mrb[0].mxu0
  %674 = vdwg.mxu0
  %v675 = vadd.f32 %v492, %v661
  %v676 = vadd.f32 %v493, %v664
  %v677 = vadd.f32 %v494, %v669
  %v678 = vadd.f32 %v495, %v672
  %v679 = vld [vmem:[%s0 + $0x8] sm:$0xe]
  %v680 = vld [vmem:[%s0 + $0x20] sm:$0xe]
  %vm687 = vcmask 1042432
  %vm688 = vcmask 1046532
  %vm689 = vmor %vm687, %vm688
  %v690 = vrot.slane %v679, 5
  %v691 = vrot.slane %v690, 4
  %v692 = vrot.slane %v497, 5
  %v693 = vsel %vm689, %v691, %v692
  %v694 = vrot.slane %v692, 4
  %v695 = vrot.slane %v498, 5
  %v696 = vsel %vm689, %v694, %v695
  %v697 = vrot.slane %v680, 5
  %v698 = vrot.slane %v697, 4
  %v699 = vrot.slane %v500, 5
  %v700 = vsel %vm689, %v698, %v699
  %v701 = vrot.slane %v699, 4
  %v702 = vrot.slane %v501, 5
  %v703 = vsel %vm689, %v701, %v702
  %s704 = scalar_lea.vmem %s1, 256
  %v705 = vld [vmem:[%s704] sm:$0xf]
  %v706 = vld [vmem:[%s704 + $0x4] sm:$0xf]
  %v707 = vld [vmem:[%s704 + $0x8] sm:$0xf]
  %v708 = vld [vmem:[%s704 + $0xc] sm:$0xf]
  %v709 = vld [vmem:[%s704 + $0x10] sm:$0xf]
  %v710 = vld [vmem:[%s704 + $0x14] sm:$0xf]
  %v711 = vld [vmem:[%s704 + $0x18] sm:$0xf]
  %v712 = vld [vmem:[%s704 + $0x1c] sm:$0xf]
  %v713 = vld [vmem:[%s704 + $0x20] sm:$0xf]
  %v714 = vld [vmem:[%s704 + $0x24] sm:$0xf]
  %v715 = vld [vmem:[%s704 + $0x28] sm:$0xf]
  %v716 = vld [vmem:[%s704 + $0x2c] sm:$0xf]
  %v717 = vld [vmem:[%s704 + $0x30] sm:$0xf]
  %v718 = vld [vmem:[%s704 + $0x34] sm:$0xf]
  %v719 = vld [vmem:[%s704 + $0x38] sm:$0xf]
  %v720 = vld [vmem:[%s704 + $0x3c] sm:$0xf]
  %v721 = vunpack.c.l.b16 %v693
  %v722 = vunpack.c.l.b16 %v696
  %v723 = vunpack.c.l.b16 %v700
  %v724 = vunpack.c.l.b16 %v703
  %v725 = vpack.c.b16 %v722, %v721
  %v726 = vpack.c.b16 %v724, %v723
  %v745 = vunpack.c.l.b16 %v705
  %v746 = vunpack.c.l.b16 %v706
  %v747 = vunpack.c.l.b16 %v707
  %v748 = vunpack.c.l.b16 %v708
  %v749 = vunpack.c.l.b16 %v709
  %v750 = vunpack.c.l.b16 %v710
  %v751 = vunpack.c.l.b16 %v711
  %v752 = vunpack.c.l.b16 %v712
  %v753 = vunpack.c.l.b16 %v713
  %v754 = vunpack.c.l.b16 %v714
  %v755 = vunpack.c.l.b16 %v715
  %v756 = vunpack.c.l.b16 %v716
  %v757 = vunpack.c.l.b16 %v717
  %v758 = vunpack.c.l.b16 %v718
  %v759 = vunpack.c.l.b16 %v719
  %v760 = vunpack.c.l.b16 %v720
  %v761 = vpack.c.b16 %v746, %v745
  %v762 = vpack.c.b16 %v748, %v747
  %v763 = vpack.c.b16 %v750, %v749
  %v764 = vpack.c.b16 %v752, %v751
  %v765 = vpack.c.b16 %v754, %v753
  %v766 = vpack.c.b16 %v756, %v755
  %v767 = vpack.c.b16 %v758, %v757
  %v768 = vpack.c.b16 %v760, %v759
  %777 = vmatprep.subr.bf16.mxu0 0
  %778 = vmatpush1.bf16.msra.mxu0 %v761
  %779 = vmatprep.subr.bf16.mxu0 0
  %780 = vmatpush1.bf16.msra.mxu0 %v762
  %781 = vmatprep.subr.bf16.mxu0 0
  %782 = vmatpush1.bf16.msra.mxu0 %v763
  %783 = vmatprep.subr.bf16.mxu0 0
  %784 = vmatpush1.bf16.msra.mxu0 %v764
  %785 = vmatprep.subr.bf16.mxu0 0
  %786 = vmatpush1.bf16.msra.mxu0 %v765
  %787 = vmatprep.subr.bf16.mxu0 0
  %788 = vmatpush1.bf16.msra.mxu0 %v766
  %789 = vmatprep.subr.bf16.mxu0 0
  %790 = vmatpush1.bf16.msra.mxu0 %v767
  %791 = vmatprep.subr.bf16.mxu0 0
  %792 = vmatpush1.bf16.msra.mxu0 %v768
  %793 = vmatprep.subr.bf16.mxu0 0
  %794 = vmatpush1.bf16.msra.mxu0 0
  %795 = vmatprep.subr.bf16.mxu0 0
  %796 = vmatpush1.bf16.msra.mxu0 0
  %797 = vmatprep.subr.bf16.mxu0 0
  %798 = vmatpush1.bf16.msra.mxu0 0
  %799 = vmatprep.subr.bf16.mxu0 0
  %800 = vmatpush1.bf16.msra.mxu0 0
  %801 = vmatprep.subr.bf16.mxu0 0
  %802 = vmatpush1.bf16.msra.mxu0 0
  %803 = vmatprep.subr.bf16.mxu0 0
  %804 = vmatpush1.bf16.msra.mxu0 0
  %805 = vmatprep.subr.bf16.mxu0 0
  %806 = vmatpush1.bf16.msra.mxu0 0
  %807 = vmatprep.subr.bf16.mxu0 0
  %808 = vmatpush1.bf16.msra.mxu0 0
  %809 = vmatprep.mubr.bf16.mxu0 0
  %810 = vmatmul.mubr.bf16.gmra.mrb[0].mxu0 %v725
  %v811 = vpop.f32.mrb[0].mxu0
  %v812 = vadd.f32 0.0, %v811
  %v813 = vpop.f32.mrb[0].mxu0
  %v814 = vpop.f32.mrb[0].mxu0
  %v815 = vadd.f32 0.0, %v814
  %v816 = vpop.f32.mrb[0].mxu0
  %817 = vmatprep.mubr.bf16.mxu0 0
  %818 = vmatmul.mubr.bf16.gmra.mrb[0].mxu0 %v726
  %v819 = vpop.f32.mrb[0].mxu0
  %v820 = vadd.f32 0.0, %v819
  %v821 = vpop.f32.mrb[0].mxu0
  %v822 = vpop.f32.mrb[0].mxu0
  %v823 = vadd.f32 0.0, %v822
  %v824 = vpop.f32.mrb[0].mxu0
  %825 = vdwg.mxu0
  %v826 = vadd.f32 %v675, %v812
  %v827 = vadd.f32 %v676, %v815
  %v828 = vadd.f32 %v677, %v820
  %v829 = vadd.f32 %v678, %v823
  %v830 = vld [vmem:[%s6] sm:$0x1]
  %v832 = vlaneseq
  %v833 = vshrl.u32 %v832, 7
  %v834 = vsub.s32 0, %v833
  %v835 = vrot.slane %v830, %v834
  %v837 = vadd.f32 %v826, %v835
  %v838 = vadd.f32 %v827, %v835
  %v839 = vadd.f32 %v828, %v835
  %v840 = vadd.f32 %v829, %v835
  %v841 = vtanh.pop %v837
  %v842 = vtanh.pop %v838
  %v843 = vtanh.pop %v839
  %v844 = vtanh.pop %v840
  %v845 = vpack.c.bf16 %v842, %v841
  %v846 = vpack.c.bf16 %v844, %v843
  %847 = vst [vmem:[#allocation2 + $0x8] sm:$0xff] %v845
  %848 = vst [vmem:[#allocation2 + $0x20] sm:$0xff] %v846
  %v849 = vld [vmem:[#allocation2 + $0x8] sm:$0xff]
  %v850 = vld [vmem:[#allocation2 + $0x20] sm:$0xff]
  %s851 = scalar_lea.vmem %s2, 128
  %v852 = vld [vmem:[%s851] sm:$0xf]
  %v853 = vld [vmem:[%s851 + $0x4] sm:$0xf]
  %v854 = vld [vmem:[%s851 + $0x8] sm:$0xf]
  %v855 = vld [vmem:[%s851 + $0xc] sm:$0xf]
  %v856 = vld [vmem:[%s851 + $0x10] sm:$0xf]
  %v857 = vld [vmem:[%s851 + $0x14] sm:$0xf]
  %v858 = vld [vmem:[%s851 + $0x18] sm:$0xf]
  %v859 = vld [vmem:[%s851 + $0x1c] sm:$0xf]
  %v860 = vld [vmem:[%s851 + $0x20] sm:$0xf]
  %v861 = vld [vmem:[%s851 + $0x24] sm:$0xf]
  %v862 = vld [vmem:[%s851 + $0x28] sm:$0xf]
  %v863 = vld [vmem:[%s851 + $0x2c] sm:$0xf]
  %v864 = vld [vmem:[%s851 + $0x30] sm:$0xf]
  %v865 = vld [vmem:[%s851 + $0x34] sm:$0xf]
  %v866 = vld [vmem:[%s851 + $0x38] sm:$0xf]
  %v867 = vld [vmem:[%s851 + $0x3c] sm:$0xf]
  %v868 = vld [vmem:[#allocation2] sm:$0x80]
  %v869 = vld [vmem:[#allocation2 + $0x8] sm:$0x7f]
  %v870 = vld [vmem:[#allocation2 + $0x18] sm:$0x80]
  %v871 = vld [vmem:[#allocation2 + $0x20] sm:$0x7f]
  %v876 = vrot.slane %v868, 7
  %v877 = vrot.slane %v869, 7
  %v878 = vsel %vm78, %v876, %v877
  %v879 = vrot.slane %v870, 7
  %v880 = vrot.slane %v871, 7
  %v881 = vsel %vm78, %v879, %v880
  %v884 = vld [vmem:[%s2] sm:$0xf]
  %v885 = vld [vmem:[%s2 + $0x4] sm:$0xf]
  %v886 = vld [vmem:[%s2 + $0x8] sm:$0xf]
  %v887 = vld [vmem:[%s2 + $0xc] sm:$0xf]
  %v888 = vld [vmem:[%s2 + $0x10] sm:$0xf]
  %v889 = vld [vmem:[%s2 + $0x14] sm:$0xf]
  %v890 = vld [vmem:[%s2 + $0x18] sm:$0xf]
  %v891 = vld [vmem:[%s2 + $0x1c] sm:$0xf]
  %v892 = vld [vmem:[%s2 + $0x20] sm:$0xf]
  %v893 = vld [vmem:[%s2 + $0x24] sm:$0xf]
  %v894 = vld [vmem:[%s2 + $0x28] sm:$0xf]
  %v895 = vld [vmem:[%s2 + $0x2c] sm:$0xf]
  %v896 = vld [vmem:[%s2 + $0x30] sm:$0xf]
  %v897 = vld [vmem:[%s2 + $0x34] sm:$0xf]
  %v898 = vld [vmem:[%s2 + $0x38] sm:$0xf]
  %v899 = vld [vmem:[%s2 + $0x3c] sm:$0xf]
  %v916 = vunpack.c.l.b16 %v884
  %v917 = vunpack.c.l.b16 %v885
  %v918 = vunpack.c.l.b16 %v886
  %v919 = vunpack.c.l.b16 %v887
  %v920 = vunpack.c.l.b16 %v888
  %v921 = vunpack.c.l.b16 %v889
  %v922 = vunpack.c.l.b16 %v890
  %v923 = vunpack.c.l.b16 %v891
  %v924 = vunpack.c.l.b16 %v892
  %v925 = vunpack.c.l.b16 %v893
  %v926 = vunpack.c.l.b16 %v894
  %v927 = vunpack.c.l.b16 %v895
  %v928 = vunpack.c.l.b16 %v896
  %v929 = vunpack.c.l.b16 %v897
  %v930 = vunpack.c.l.b16 %v898
  %v931 = vunpack.c.l.b16 %v899
  %v932 = vpack.c.b16 %v917, %v916
  %v933 = vpack.c.b16 %v919, %v918
  %v934 = vpack.c.b16 %v921, %v920
  %v935 = vpack.c.b16 %v923, %v922
  %v936 = vpack.c.b16 %v925, %v924
  %v937 = vpack.c.b16 %v927, %v926
  %v938 = vpack.c.b16 %v929, %v928
  %v939 = vpack.c.b16 %v931, %v930
  %948 = vmatprep.subr.bf16.mxu0 0
  %949 = vmatpush1.bf16.msra.mxu0 %v932
  %950 = vmatprep.subr.bf16.mxu0 0
  %951 = vmatpush1.bf16.msra.mxu0 %v933
  %952 = vmatprep.subr.bf16.mxu0 0
  %953 = vmatpush1.bf16.msra.mxu0 %v934
  %954 = vmatprep.subr.bf16.mxu0 0
  %955 = vmatpush1.bf16.msra.mxu0 %v935
  %956 = vmatprep.subr.bf16.mxu0 0
  %957 = vmatpush1.bf16.msra.mxu0 %v936
  %958 = vmatprep.subr.bf16.mxu0 0
  %959 = vmatpush1.bf16.msra.mxu0 %v937
  %960 = vmatprep.subr.bf16.mxu0 0
  %961 = vmatpush1.bf16.msra.mxu0 %v938
  %962 = vmatprep.subr.bf16.mxu0 0
  %963 = vmatpush1.bf16.msra.mxu0 %v939
  %964 = vmatprep.subr.bf16.mxu0 0
  %965 = vmatpush1.bf16.msra.mxu0 0
  %966 = vmatprep.subr.bf16.mxu0 0
  %967 = vmatpush1.bf16.msra.mxu0 0
  %968 = vmatprep.subr.bf16.mxu0 0
  %969 = vmatpush1.bf16.msra.mxu0 0
  %970 = vmatprep.subr.bf16.mxu0 0
  %971 = vmatpush1.bf16.msra.mxu0 0
  %972 = vmatprep.subr.bf16.mxu0 0
  %973 = vmatpush1.bf16.msra.mxu0 0
  %974 = vmatprep.subr.bf16.mxu0 0
  %975 = vmatpush1.bf16.msra.mxu0 0
  %976 = vmatprep.subr.bf16.mxu0 0
  %977 = vmatpush1.bf16.msra.mxu0 0
  %978 = vmatprep.subr.bf16.mxu0 0
  %979 = vmatpush1.bf16.msra.mxu0 0
  %980 = vmatprep.mubr.bf16.mxu0 0
  %981 = vmatmul.mubr.bf16.gmra.mrb[0].mxu0 %v878
  %v982 = vpop.f32.mrb[0].mxu0
  %v983 = vadd.f32 0.0, %v982
  %v984 = vpop.f32.mrb[0].mxu0
  %v985 = vpop.f32.mrb[0].mxu0
  %v986 = vadd.f32 0.0, %v985
  %v987 = vpop.f32.mrb[0].mxu0
  %988 = vmatprep.mubr.bf16.mxu0 0
  %989 = vmatmul.mubr.bf16.gmra.mrb[0].mxu0 %v881
  %v990 = vpop.f32.mrb[0].mxu0
  %v991 = vadd.f32 0.0, %v990
  %v992 = vpop.f32.mrb[0].mxu0
  %v993 = vpop.f32.mrb[0].mxu0
  %v994 = vadd.f32 0.0, %v993
  %v995 = vpop.f32.mrb[0].mxu0
  %996 = vdwg.mxu0
  %v1013 = vunpack.c.l.b16 %v852
  %v1014 = vunpack.c.l.b16 %v853
  %v1015 = vunpack.c.l.b16 %v854
  %v1016 = vunpack.c.l.b16 %v855
  %v1017 = vunpack.c.l.b16 %v856
  %v1018 = vunpack.c.l.b16 %v857
  %v1019 = vunpack.c.l.b16 %v858
  %v1020 = vunpack.c.l.b16 %v859
  %v1021 = vunpack.c.l.b16 %v860
  %v1022 = vunpack.c.l.b16 %v861
  %v1023 = vunpack.c.l.b16 %v862
  %v1024 = vunpack.c.l.b16 %v863
  %v1025 = vunpack.c.l.b16 %v864
  %v1026 = vunpack.c.l.b16 %v865
  %v1027 = vunpack.c.l.b16 %v866
  %v1028 = vunpack.c.l.b16 %v867
  %v1029 = vpack.c.b16 %v1014, %v1013
  %v1030 = vpack.c.b16 %v1016, %v1015
  %v1031 = vpack.c.b16 %v1018, %v1017
  %v1032 = vpack.c.b16 %v1020, %v1019
  %v1033 = vpack.c.b16 %v1022, %v1021
  %v1034 = vpack.c.b16 %v1024, %v1023
  %v1035 = vpack.c.b16 %v1026, %v1025
  %v1036 = vpack.c.b16 %v1028, %v1027
  %1045 = vmatprep.subr.bf16.mxu0 0
  %1046 = vmatpush1.bf16.msra.mxu0 %v1029
  %1047 = vmatprep.subr.bf16.mxu0 0
  %1048 = vmatpush1.bf16.msra.mxu0 %v1030
  %1049 = vmatprep.subr.bf16.mxu0 0
  %1050 = vmatpush1.bf16.msra.mxu0 %v1031
  %1051 = vmatprep.subr.bf16.mxu0 0
  %1052 = vmatpush1.bf16.msra.mxu0 %v1032
  %1053 = vmatprep.subr.bf16.mxu0 0
  %1054 = vmatpush1.bf16.msra.mxu0 %v1033
  %1055 = vmatprep.subr.bf16.mxu0 0
  %1056 = vmatpush1.bf16.msra.mxu0 %v1034
  %1057 = vmatprep.subr.bf16.mxu0 0
  %1058 = vmatpush1.bf16.msra.mxu0 %v1035
  %1059 = vmatprep.subr.bf16.mxu0 0
  %1060 = vmatpush1.bf16.msra.mxu0 %v1036
  %1061 = vmatprep.subr.bf16.mxu0 0
  %1062 = vmatpush1.bf16.msra.mxu0 0
  %1063 = vmatprep.subr.bf16.mxu0 0
  %1064 = vmatpush1.bf16.msra.mxu0 0
  %1065 = vmatprep.subr.bf16.mxu0 0
  %1066 = vmatpush1.bf16.msra.mxu0 0
  %1067 = vmatprep.subr.bf16.mxu0 0
  %1068 = vmatpush1.bf16.msra.mxu0 0
  %1069 = vmatprep.subr.bf16.mxu0 0
  %1070 = vmatpush1.bf16.msra.mxu0 0
  %1071 = vmatprep.subr.bf16.mxu0 0
  %1072 = vmatpush1.bf16.msra.mxu0 0
  %1073 = vmatprep.subr.bf16.mxu0 0
  %1074 = vmatpush1.bf16.msra.mxu0 0
  %1075 = vmatprep.subr.bf16.mxu0 0
  %1076 = vmatpush1.bf16.msra.mxu0 0
  %1077 = vmatprep.mubr.bf16.mxu0 0
  %1078 = vmatmul.mubr.bf16.gmra.mrb[0].mxu0 %v849
  %v1079 = vpop.f32.mrb[0].mxu0
  %v1080 = vadd.f32 %v983, %v1079
  %v1081 = vpop.f32.mrb[0].mxu0
  %v1082 = vpop.f32.mrb[0].mxu0
  %v1083 = vadd.f32 %v986, %v1082
  %v1084 = vpop.f32.mrb[0].mxu0
  %1085 = vmatprep.mubr.bf16.mxu0 0
  %1086 = vmatmul.mubr.bf16.gmra.mrb[0].mxu0 %v850
  %v1087 = vpop.f32.mrb[0].mxu0
  %v1088 = vadd.f32 %v991, %v1087
  %v1089 = vpop.f32.mrb[0].mxu0
  %v1090 = vpop.f32.mrb[0].mxu0
  %v1091 = vadd.f32 %v994, %v1090
  %v1092 = vpop.f32.mrb[0].mxu0
  %1093 = vdwg.mxu0
  %v1095 = vshrl.u32 %v868, 16
  %v1097 = vrot.slane %v1095, 7
  %v1099 = vshrl.u32 %v849, 16
  %v1101 = vrot.slane %v1099, 7
  %v1102 = vshll.u32 %v849, 16
  %v1104 = vor.u32 %v1101, %v1102
  %v1105 = vsel %vm323, %v1097, %v1104
  %v1107 = vshrl.u32 %v870, 16
  %v1109 = vrot.slane %v1107, 7
  %v1111 = vshrl.u32 %v850, 16
  %v1113 = vrot.slane %v1111, 7
  %v1114 = vshll.u32 %v850, 16
  %v1116 = vor.u32 %v1113, %v1114
  %v1117 = vsel %vm323, %v1109, %v1116
  %s1120 = scalar_lea.vmem %s2, 64
  %v1121 = vld [vmem:[%s1120] sm:$0xf]
  %v1122 = vld [vmem:[%s1120 + $0x4] sm:$0xf]
  %v1123 = vld [vmem:[%s1120 + $0x8] sm:$0xf]
  %v1124 = vld [vmem:[%s1120 + $0xc] sm:$0xf]
  %v1125 = vld [vmem:[%s1120 + $0x10] sm:$0xf]
  %v1126 = vld [vmem:[%s1120 + $0x14] sm:$0xf]
  %v1127 = vld [vmem:[%s1120 + $0x18] sm:$0xf]
  %v1128 = vld [vmem:[%s1120 + $0x1c] sm:$0xf]
  %v1129 = vld [vmem:[%s1120 + $0x20] sm:$0xf]
  %v1130 = vld [vmem:[%s1120 + $0x24] sm:$0xf]
  %v1131 = vld [vmem:[%s1120 + $0x28] sm:$0xf]
  %v1132 = vld [vmem:[%s1120 + $0x2c] sm:$0xf]
  %v1133 = vld [vmem:[%s1120 + $0x30] sm:$0xf]
  %v1134 = vld [vmem:[%s1120 + $0x34] sm:$0xf]
  %v1135 = vld [vmem:[%s1120 + $0x38] sm:$0xf]
  %v1136 = vld [vmem:[%s1120 + $0x3c] sm:$0xf]
  %v1153 = vunpack.c.l.b16 %v1121
  %v1154 = vunpack.c.l.b16 %v1122
  %v1155 = vunpack.c.l.b16 %v1123
  %v1156 = vunpack.c.l.b16 %v1124
  %v1157 = vunpack.c.l.b16 %v1125
  %v1158 = vunpack.c.l.b16 %v1126
  %v1159 = vunpack.c.l.b16 %v1127
  %v1160 = vunpack.c.l.b16 %v1128
  %v1161 = vunpack.c.l.b16 %v1129
  %v1162 = vunpack.c.l.b16 %v1130
  %v1163 = vunpack.c.l.b16 %v1131
  %v1164 = vunpack.c.l.b16 %v1132
  %v1165 = vunpack.c.l.b16 %v1133
  %v1166 = vunpack.c.l.b16 %v1134
  %v1167 = vunpack.c.l.b16 %v1135
  %v1168 = vunpack.c.l.b16 %v1136
  %v1169 = vpack.c.b16 %v1154, %v1153
  %v1170 = vpack.c.b16 %v1156, %v1155
  %v1171 = vpack.c.b16 %v1158, %v1157
  %v1172 = vpack.c.b16 %v1160, %v1159
  %v1173 = vpack.c.b16 %v1162, %v1161
  %v1174 = vpack.c.b16 %v1164, %v1163
  %v1175 = vpack.c.b16 %v1166, %v1165
  %v1176 = vpack.c.b16 %v1168, %v1167
  %1185 = vmatprep.subr.bf16.mxu0 0
  %1186 = vmatpush1.bf16.msra.mxu0 %v1169
  %1187 = vmatprep.subr.bf16.mxu0 0
  %1188 = vmatpush1.bf16.msra.mxu0 %v1170
  %1189 = vmatprep.subr.bf16.mxu0 0
  %1190 = vmatpush1.bf16.msra.mxu0 %v1171
  %1191 = vmatprep.subr.bf16.mxu0 0
  %1192 = vmatpush1.bf16.msra.mxu0 %v1172
  %1193 = vmatprep.subr.bf16.mxu0 0
  %1194 = vmatpush1.bf16.msra.mxu0 %v1173
  %1195 = vmatprep.subr.bf16.mxu0 0
  %1196 = vmatpush1.bf16.msra.mxu0 %v1174
  %1197 = vmatprep.subr.bf16.mxu0 0
  %1198 = vmatpush1.bf16.msra.mxu0 %v1175
  %1199 = vmatprep.subr.bf16.mxu0 0
  %1200 = vmatpush1.bf16.msra.mxu0 %v1176
  %1201 = vmatprep.subr.bf16.mxu0 0
  %1202 = vmatpush1.bf16.msra.mxu0 0
  %1203 = vmatprep.subr.bf16.mxu0 0
  %1204 = vmatpush1.bf16.msra.mxu0 0
  %1205 = vmatprep.subr.bf16.mxu0 0
  %1206 = vmatpush1.bf16.msra.mxu0 0
  %1207 = vmatprep.subr.bf16.mxu0 0
  %1208 = vmatpush1.bf16.msra.mxu0 0
  %1209 = vmatprep.subr.bf16.mxu0 0
  %1210 = vmatpush1.bf16.msra.mxu0 0
  %1211 = vmatprep.subr.bf16.mxu0 0
  %1212 = vmatpush1.bf16.msra.mxu0 0
  %1213 = vmatprep.subr.bf16.mxu0 0
  %1214 = vmatpush1.bf16.msra.mxu0 0
  %1215 = vmatprep.subr.bf16.mxu0 0
  %1216 = vmatpush1.bf16.msra.mxu0 0
  %1217 = vmatprep.mubr.bf16.mxu0 0
  %1218 = vmatmul.mubr.bf16.gmra.mrb[0].mxu0 %v1105
  %v1219 = vpop.f32.mrb[0].mxu0
  %v1220 = vadd.f32 0.0, %v1219
  %v1221 = vpop.f32.mrb[0].mxu0
  %v1222 = vpop.f32.mrb[0].mxu0
  %v1223 = vadd.f32 0.0, %v1222
  %v1224 = vpop.f32.mrb[0].mxu0
  %1225 = vmatprep.mubr.bf16.mxu0 0
  %1226 = vmatmul.mubr.bf16.gmra.mrb[0].mxu0 %v1117
  %v1227 = vpop.f32.mrb[0].mxu0
  %v1228 = vadd.f32 0.0, %v1227
  %v1229 = vpop.f32.mrb[0].mxu0
  %v1230 = vpop.f32.mrb[0].mxu0
  %v1231 = vadd.f32 0.0, %v1230
  %v1232 = vpop.f32.mrb[0].mxu0
  %1233 = vdwg.mxu0
  %v1234 = vadd.f32 %v1080, %v1220
  %v1235 = vadd.f32 %v1083, %v1223
  %v1236 = vadd.f32 %v1088, %v1228
  %v1237 = vadd.f32 %v1091, %v1231
  %v1238 = vld [vmem:[#allocation2 + $0x8] sm:$0xff]
  %v1239 = vld [vmem:[#allocation2 + $0x10] sm:$0x1]
  %v1240 = vld [vmem:[#allocation2 + $0x20] sm:$0xff]
  %v1241 = vld [vmem:[#allocation2 + $0x28] sm:$0x1]
  %vm1242 = vsmask.f32 7424
  %v1244 = vshrl.u32 %v1238, 16
  %v1246 = vshll.u32 %v1238, 16
  %v1248 = vrot.slane %v1246, 1
  %v1249 = vor.u32 %v1244, %v1248
  %v1251 = vshll.u32 %v1239, 16
  %v1253 = vrot.slane %v1251, 1
  %v1254 = vsel %vm1242, %v1249, %v1253
  %v1256 = vshrl.u32 %v1240, 16
  %v1258 = vshll.u32 %v1240, 16
  %v1260 = vrot.slane %v1258, 1
  %v1261 = vor.u32 %v1256, %v1260
  %v1263 = vshll.u32 %v1241, 16
  %v1265 = vrot.slane %v1263, 1
  %v1266 = vsel %vm1242, %v1261, %v1265
  %s1269 = scalar_lea.vmem %s2, 192
  %v1270 = vld [vmem:[%s1269] sm:$0xf]
  %v1271 = vld [vmem:[%s1269 + $0x4] sm:$0xf]
  %v1272 = vld [vmem:[%s1269 + $0x8] sm:$0xf]
  %v1273 = vld [vmem:[%s1269 + $0xc] sm:$0xf]
  %v1274 = vld [vmem:[%s1269 + $0x10] sm:$0xf]
  %v1275 = vld [vmem:[%s1269 + $0x14] sm:$0xf]
  %v1276 = vld [vmem:[%s1269 + $0x18] sm:$0xf]
  %v1277 = vld [vmem:[%s1269 + $0x1c] sm:$0xf]
  %v1278 = vld [vmem:[%s1269 + $0x20] sm:$0xf]
  %v1279 = vld [vmem:[%s1269 + $0x24] sm:$0xf]
  %v1280 = vld [vmem:[%s1269 + $0x28] sm:$0xf]
  %v1281 = vld [vmem:[%s1269 + $0x2c] sm:$0xf]
  %v1282 = vld [vmem:[%s1269 + $0x30] sm:$0xf]
  %v1283 = vld [vmem:[%s1269 + $0x34] sm:$0xf]
  %v1284 = vld [vmem:[%s1269 + $0x38] sm:$0xf]
  %v1285 = vld [vmem:[%s1269 + $0x3c] sm:$0xf]
  %v1302 = vunpack.c.l.b16 %v1270
  %v1303 = vunpack.c.l.b16 %v1271
  %v1304 = vunpack.c.l.b16 %v1272
  %v1305 = vunpack.c.l.b16 %v1273
  %v1306 = vunpack.c.l.b16 %v1274
  %v1307 = vunpack.c.l.b16 %v1275
  %v1308 = vunpack.c.l.b16 %v1276
  %v1309 = vunpack.c.l.b16 %v1277
  %v1310 = vunpack.c.l.b16 %v1278
  %v1311 = vunpack.c.l.b16 %v1279
  %v1312 = vunpack.c.l.b16 %v1280
  %v1313 = vunpack.c.l.b16 %v1281
  %v1314 = vunpack.c.l.b16 %v1282
  %v1315 = vunpack.c.l.b16 %v1283
  %v1316 = vunpack.c.l.b16 %v1284
  %v1317 = vunpack.c.l.b16 %v1285
  %v1318 = vpack.c.b16 %v1303, %v1302
  %v1319 = vpack.c.b16 %v1305, %v1304
  %v1320 = vpack.c.b16 %v1307, %v1306
  %v1321 = vpack.c.b16 %v1309, %v1308
  %v1322 = vpack.c.b16 %v1311, %v1310
  %v1323 = vpack.c.b16 %v1313, %v1312
  %v1324 = vpack.c.b16 %v1315, %v1314
  %v1325 = vpack.c.b16 %v1317, %v1316
  %1334 = vmatprep.subr.bf16.mxu0 0
  %1335 = vmatpush1.bf16.msra.mxu0 %v1318
  %1336 = vmatprep.subr.bf16.mxu0 0
  %1337 = vmatpush1.bf16.msra.mxu0 %v1319
  %1338 = vmatprep.subr.bf16.mxu0 0
  %1339 = vmatpush1.bf16.msra.mxu0 %v1320
  %1340 = vmatprep.subr.bf16.mxu0 0
  %1341 = vmatpush1.bf16.msra.mxu0 %v1321
  %1342 = vmatprep.subr.bf16.mxu0 0
  %1343 = vmatpush1.bf16.msra.mxu0 %v1322
  %1344 = vmatprep.subr.bf16.mxu0 0
  %1345 = vmatpush1.bf16.msra.mxu0 %v1323
  %1346 = vmatprep.subr.bf16.mxu0 0
  %1347 = vmatpush1.bf16.msra.mxu0 %v1324
  %1348 = vmatprep.subr.bf16.mxu0 0
  %1349 = vmatpush1.bf16.msra.mxu0 %v1325
  %1350 = vmatprep.subr.bf16.mxu0 0
  %1351 = vmatpush1.bf16.msra.mxu0 0
  %1352 = vmatprep.subr.bf16.mxu0 0
  %1353 = vmatpush1.bf16.msra.mxu0 0
  %1354 = vmatprep.subr.bf16.mxu0 0
  %1355 = vmatpush1.bf16.msra.mxu0 0
  %1356 = vmatprep.subr.bf16.mxu0 0
  %1357 = vmatpush1.bf16.msra.mxu0 0
  %1358 = vmatprep.subr.bf16.mxu0 0
  %1359 = vmatpush1.bf16.msra.mxu0 0
  %1360 = vmatprep.subr.bf16.mxu0 0
  %1361 = vmatpush1.bf16.msra.mxu0 0
  %1362 = vmatprep.subr.bf16.mxu0 0
  %1363 = vmatpush1.bf16.msra.mxu0 0
  %1364 = vmatprep.subr.bf16.mxu0 0
  %1365 = vmatpush1.bf16.msra.mxu0 0
  %1366 = vmatprep.mubr.bf16.mxu0 0
  %1367 = vmatmul.mubr.bf16.gmra.mrb[0].mxu0 %v1254
  %v1368 = vpop.f32.mrb[0].mxu0
  %v1369 = vadd.f32 0.0, %v1368
  %v1370 = vpop.f32.mrb[0].mxu0
  %v1371 = vpop.f32.mrb[0].mxu0
  %v1372 = vadd.f32 0.0, %v1371
  %v1373 = vpop.f32.mrb[0].mxu0
  %1374 = vmatprep.mubr.bf16.mxu0 0
  %1375 = vmatmul.mubr.bf16.gmra.mrb[0].mxu0 %v1266
  %v1376 = vpop.f32.mrb[0].mxu0
  %v1377 = vadd.f32 0.0, %v1376
  %v1378 = vpop.f32.mrb[0].mxu0
  %v1379 = vpop.f32.mrb[0].mxu0
  %v1380 = vadd.f32 0.0, %v1379
  %v1381 = vpop.f32.mrb[0].mxu0
  %1382 = vdwg.mxu0
  %v1383 = vadd.f32 %v1234, %v1369
  %v1384 = vadd.f32 %v1235, %v1372
  %v1385 = vadd.f32 %v1236, %v1377
  %v1386 = vadd.f32 %v1237, %v1380
  %v1387 = vld [vmem:[#allocation2 + $0x8] sm:$0xfe]
  %v1388 = vld [vmem:[#allocation2 + $0x20] sm:$0xfe]
  %vm1393 = vcmask 1046528
  %v1394 = vrot.slane %v1387, 1
  %v1395 = vrot.slane %v1239, 1
  %v1396 = vsel %vm1393, %v1394, %v1395
  %v1397 = vrot.slane %v1388, 1
  %v1398 = vrot.slane %v1241, 1
  %v1399 = vsel %vm1393, %v1397, %v1398
  %s1402 = scalar_lea.vmem %s2, 256
  %v1403 = vld [vmem:[%s1402] sm:$0xf]
  %v1404 = vld [vmem:[%s1402 + $0x4] sm:$0xf]
  %v1405 = vld [vmem:[%s1402 + $0x8] sm:$0xf]
  %v1406 = vld [vmem:[%s1402 + $0xc] sm:$0xf]
  %v1407 = vld [vmem:[%s1402 + $0x10] sm:$0xf]
  %v1408 = vld [vmem:[%s1402 + $0x14] sm:$0xf]
  %v1409 = vld [vmem:[%s1402 + $0x18] sm:$0xf]
  %v1410 = vld [vmem:[%s1402 + $0x1c] sm:$0xf]
  %v1411 = vld [vmem:[%s1402 + $0x20] sm:$0xf]
  %v1412 = vld [vmem:[%s1402 + $0x24] sm:$0xf]
  %v1413 = vld [vmem:[%s1402 + $0x28] sm:$0xf]
  %v1414 = vld [vmem:[%s1402 + $0x2c] sm:$0xf]
  %v1415 = vld [vmem:[%s1402 + $0x30] sm:$0xf]
  %v1416 = vld [vmem:[%s1402 + $0x34] sm:$0xf]
  %v1417 = vld [vmem:[%s1402 + $0x38] sm:$0xf]
  %v1418 = vld [vmem:[%s1402 + $0x3c] sm:$0xf]
  %v1435 = vunpack.c.l.b16 %v1403
  %v1436 = vunpack.c.l.b16 %v1404
  %v1437 = vunpack.c.l.b16 %v1405
  %v1438 = vunpack.c.l.b16 %v1406
  %v1439 = vunpack.c.l.b16 %v1407
  %v1440 = vunpack.c.l.b16 %v1408
  %v1441 = vunpack.c.l.b16 %v1409
  %v1442 = vunpack.c.l.b16 %v1410
  %v1443 = vunpack.c.l.b16 %v1411
  %v1444 = vunpack.c.l.b16 %v1412
  %v1445 = vunpack.c.l.b16 %v1413
  %v1446 = vunpack.c.l.b16 %v1414
  %v1447 = vunpack.c.l.b16 %v1415
  %v1448 = vunpack.c.l.b16 %v1416
  %v1449 = vunpack.c.l.b16 %v1417
  %v1450 = vunpack.c.l.b16 %v1418
  %v1451 = vpack.c.b16 %v1436, %v1435
  %v1452 = vpack.c.b16 %v1438, %v1437
  %v1453 = vpack.c.b16 %v1440, %v1439
  %v1454 = vpack.c.b16 %v1442, %v1441
  %v1455 = vpack.c.b16 %v1444, %v1443
  %v1456 = vpack.c.b16 %v1446, %v1445
  %v1457 = vpack.c.b16 %v1448, %v1447
  %v1458 = vpack.c.b16 %v1450, %v1449
  %1467 = vmatprep.subr.bf16.mxu0 0
  %1468 = vmatpush1.bf16.msra.mxu0 %v1451
  %1469 = vmatprep.subr.bf16.mxu0 0
  %1470 = vmatpush1.bf16.msra.mxu0 %v1452
  %1471 = vmatprep.subr.bf16.mxu0 0
  %1472 = vmatpush1.bf16.msra.mxu0 %v1453
  %1473 = vmatprep.subr.bf16.mxu0 0
  %1474 = vmatpush1.bf16.msra.mxu0 %v1454
  %1475 = vmatprep.subr.bf16.mxu0 0
  %1476 = vmatpush1.bf16.msra.mxu0 %v1455
  %1477 = vmatprep.subr.bf16.mxu0 0
  %1478 = vmatpush1.bf16.msra.mxu0 %v1456
  %1479 = vmatprep.subr.bf16.mxu0 0
  %1480 = vmatpush1.bf16.msra.mxu0 %v1457
  %1481 = vmatprep.subr.bf16.mxu0 0
  %1482 = vmatpush1.bf16.msra.mxu0 %v1458
  %1483 = vmatprep.subr.bf16.mxu0 0
  %1484 = vmatpush1.bf16.msra.mxu0 0
  %1485 = vmatprep.subr.bf16.mxu0 0
  %1486 = vmatpush1.bf16.msra.mxu0 0
  %1487 = vmatprep.subr.bf16.mxu0 0
  %1488 = vmatpush1.bf16.msra.mxu0 0
  %1489 = vmatprep.subr.bf16.mxu0 0
  %1490 = vmatpush1.bf16.msra.mxu0 0
  %1491 = vmatprep.subr.bf16.mxu0 0
  %1492 = vmatpush1.bf16.msra.mxu0 0
  %1493 = vmatprep.subr.bf16.mxu0 0
  %1494 = vmatpush1.bf16.msra.mxu0 0
  %1495 = vmatprep.subr.bf16.mxu0 0
  %1496 = vmatpush1.bf16.msra.mxu0 0
  %1497 = vmatprep.subr.bf16.mxu0 0
  %1498 = vmatpush1.bf16.msra.mxu0 0
  %1499 = vmatprep.mubr.bf16.mxu0 0
  %1500 = vmatmul.mubr.bf16.gmra.mrb[0].mxu0 %v1396
  %v1501 = vpop.f32.mrb[0].mxu0
  %v1502 = vadd.f32 0.0, %v1501
  %v1503 = vpop.f32.mrb[0].mxu0
  %v1504 = vpop.f32.mrb[0].mxu0
  %v1505 = vadd.f32 0.0, %v1504
  %v1506 = vpop.f32.mrb[0].mxu0
  %1507 = vmatprep.mubr.bf16.mxu0 0
  %1508 = vmatmul.mubr.bf16.gmra.mrb[0].mxu0 %v1399
  %v1509 = vpop.f32.mrb[0].mxu0
  %v1510 = vadd.f32 0.0, %v1509
  %v1511 = vpop.f32.mrb[0].mxu0
  %v1512 = vpop.f32.mrb[0].mxu0
  %v1513 = vadd.f32 0.0, %v1512
  %v1514 = vpop.f32.mrb[0].mxu0
  %1515 = vdwg.mxu0
  %v1516 = vadd.f32 %v1383, %v1502
  %v1517 = vadd.f32 %v1384, %v1505
  %v1518 = vadd.f32 %v1385, %v1510
  %v1519 = vadd.f32 %v1386, %v1513
  %v1520 = vld [vmem:[%s7] sm:$0x1]
  %v1522 = vlaneseq
  %v1523 = vshrl.u32 %v1522, 7
  %v1524 = vsub.s32 0, %v1523
  %v1525 = vrot.slane %v1520, %v1524
  %v1527 = vadd.f32 %v1516, %v1525
  %v1528 = vadd.f32 %v1517, %v1525
  %v1529 = vadd.f32 %v1518, %v1525
  %v1530 = vadd.f32 %v1519, %v1525
  %v1531 = vtanh.pop %v1527
  %v1532 = vtanh.pop %v1528
  %v1533 = vtanh.pop %v1529
  %v1534 = vtanh.pop %v1530
  %v1535 = vpack.c.bf16 %v1532, %v1531
  %v1536 = vpack.c.bf16 %v1534, %v1533
  %1537 = vst [vmem:[#allocation3 + $0x8] sm:$0xff] %v1535
  %1538 = vst [vmem:[#allocation3 + $0x20] sm:$0xff] %v1536
  %v1539 = vld [vmem:[#allocation3 + $0x8] sm:$0xff]
  %v1540 = vld [vmem:[#allocation3 + $0x20] sm:$0xff]
  %s1541 = scalar_lea.vmem %s3, 128
  %v1542 = vld [vmem:[%s1541] sm:$0xf]
  %v1543 = vld [vmem:[%s1541 + $0x4] sm:$0xf]
  %v1544 = vld [vmem:[%s1541 + $0x8] sm:$0xf]
  %v1545 = vld [vmem:[%s1541 + $0xc] sm:$0xf]
  %v1546 = vld [vmem:[%s1541 + $0x10] sm:$0xf]
  %v1547 = vld [vmem:[%s1541 + $0x14] sm:$0xf]
  %v1548 = vld [vmem:[%s1541 + $0x18] sm:$0xf]
  %v1549 = vld [vmem:[%s1541 + $0x1c] sm:$0xf]
  %v1550 = vld [vmem:[%s1541 + $0x20] sm:$0xf]
  %v1551 = vld [vmem:[%s1541 + $0x24] sm:$0xf]
  %v1552 = vld [vmem:[%s1541 + $0x28] sm:$0xf]
  %v1553 = vld [vmem:[%s1541 + $0x2c] sm:$0xf]
  %v1554 = vld [vmem:[%s1541 + $0x30] sm:$0xf]
  %v1555 = vld [vmem:[%s1541 + $0x34] sm:$0xf]
  %v1556 = vld [vmem:[%s1541 + $0x38] sm:$0xf]
  %v1557 = vld [vmem:[%s1541 + $0x3c] sm:$0xf]
  %v1558 = vld [vmem:[#allocation3] sm:$0x80]
  %v1559 = vld [vmem:[#allocation3 + $0x8] sm:$0x7f]
  %v1560 = vld [vmem:[#allocation3 + $0x18] sm:$0x80]
  %v1561 = vld [vmem:[#allocation3 + $0x20] sm:$0x7f]
  %v1566 = vrot.slane %v1558, 7
  %v1567 = vrot.slane %v1559, 7
  %v1568 = vsel %vm78, %v1566, %v1567
  %v1569 = vrot.slane %v1560, 7
  %v1570 = vrot.slane %v1561, 7
  %v1571 = vsel %vm78, %v1569, %v1570
  %v1574 = vld [vmem:[%s3] sm:$0xf]
  %v1575 = vld [vmem:[%s3 + $0x4] sm:$0xf]
  %v1576 = vld [vmem:[%s3 + $0x8] sm:$0xf]
  %v1577 = vld [vmem:[%s3 + $0xc] sm:$0xf]
  %v1578 = vld [vmem:[%s3 + $0x10] sm:$0xf]
  %v1579 = vld [vmem:[%s3 + $0x14] sm:$0xf]
  %v1580 = vld [vmem:[%s3 + $0x18] sm:$0xf]
  %v1581 = vld [vmem:[%s3 + $0x1c] sm:$0xf]
  %v1582 = vld [vmem:[%s3 + $0x20] sm:$0xf]
  %v1583 = vld [vmem:[%s3 + $0x24] sm:$0xf]
  %v1584 = vld [vmem:[%s3 + $0x28] sm:$0xf]
  %v1585 = vld [vmem:[%s3 + $0x2c] sm:$0xf]
  %v1586 = vld [vmem:[%s3 + $0x30] sm:$0xf]
  %v1587 = vld [vmem:[%s3 + $0x34] sm:$0xf]
  %v1588 = vld [vmem:[%s3 + $0x38] sm:$0xf]
  %v1589 = vld [vmem:[%s3 + $0x3c] sm:$0xf]
  %v1606 = vunpack.c.l.b16 %v1574
  %v1607 = vunpack.c.l.b16 %v1575
  %v1608 = vunpack.c.l.b16 %v1576
  %v1609 = vunpack.c.l.b16 %v1577
  %v1610 = vunpack.c.l.b16 %v1578
  %v1611 = vunpack.c.l.b16 %v1579
  %v1612 = vunpack.c.l.b16 %v1580
  %v1613 = vunpack.c.l.b16 %v1581
  %v1614 = vunpack.c.l.b16 %v1582
  %v1615 = vunpack.c.l.b16 %v1583
  %v1616 = vunpack.c.l.b16 %v1584
  %v1617 = vunpack.c.l.b16 %v1585
  %v1618 = vunpack.c.l.b16 %v1586
  %v1619 = vunpack.c.l.b16 %v1587
  %v1620 = vunpack.c.l.b16 %v1588
  %v1621 = vunpack.c.l.b16 %v1589
  %v1622 = vpack.c.b16 %v1607, %v1606
  %v1623 = vpack.c.b16 %v1609, %v1608
  %v1624 = vpack.c.b16 %v1611, %v1610
  %v1625 = vpack.c.b16 %v1613, %v1612
  %v1626 = vpack.c.b16 %v1615, %v1614
  %v1627 = vpack.c.b16 %v1617, %v1616
  %v1628 = vpack.c.b16 %v1619, %v1618
  %v1629 = vpack.c.b16 %v1621, %v1620
  %1638 = vmatprep.subr.bf16.mxu0 0
  %1639 = vmatpush1.bf16.msra.mxu0 %v1622
  %1640 = vmatprep.subr.bf16.mxu0 0
  %1641 = vmatpush1.bf16.msra.mxu0 %v1623
  %1642 = vmatprep.subr.bf16.mxu0 0
  %1643 = vmatpush1.bf16.msra.mxu0 %v1624
  %1644 = vmatprep.subr.bf16.mxu0 0
  %1645 = vmatpush1.bf16.msra.mxu0 %v1625
  %1646 = vmatprep.subr.bf16.mxu0 0
  %1647 = vmatpush1.bf16.msra.mxu0 %v1626
  %1648 = vmatprep.subr.bf16.mxu0 0
  %1649 = vmatpush1.bf16.msra.mxu0 %v1627
  %1650 = vmatprep.subr.bf16.mxu0 0
  %1651 = vmatpush1.bf16.msra.mxu0 %v1628
  %1652 = vmatprep.subr.bf16.mxu0 0
  %1653 = vmatpush1.bf16.msra.mxu0 %v1629
  %1654 = vmatprep.subr.bf16.mxu0 0
  %1655 = vmatpush1.bf16.msra.mxu0 0
  %1656 = vmatprep.subr.bf16.mxu0 0
  %1657 = vmatpush1.bf16.msra.mxu0 0
  %1658 = vmatprep.subr.bf16.mxu0 0
  %1659 = vmatpush1.bf16.msra.mxu0 0
  %1660 = vmatprep.subr.bf16.mxu0 0
  %1661 = vmatpush1.bf16.msra.mxu0 0
  %1662 = vmatprep.subr.bf16.mxu0 0
  %1663 = vmatpush1.bf16.msra.mxu0 0
  %1664 = vmatprep.subr.bf16.mxu0 0
  %1665 = vmatpush1.bf16.msra.mxu0 0
  %1666 = vmatprep.subr.bf16.mxu0 0
  %1667 = vmatpush1.bf16.msra.mxu0 0
  %1668 = vmatprep.subr.bf16.mxu0 0
  %1669 = vmatpush1.bf16.msra.mxu0 0
  %1670 = vmatprep.mubr.bf16.mxu0 0
  %1671 = vmatmul.mubr.bf16.gmra.mrb[0].mxu0 %v1568
  %v1672 = vpop.f32.mrb[0].mxu0
  %v1673 = vadd.f32 0.0, %v1672
  %v1674 = vpop.f32.mrb[0].mxu0
  %v1675 = vpop.f32.mrb[0].mxu0
  %v1676 = vadd.f32 0.0, %v1675
  %v1677 = vpop.f32.mrb[0].mxu0
  %1678 = vmatprep.mubr.bf16.mxu0 0
  %1679 = vmatmul.mubr.bf16.gmra.mrb[0].mxu0 %v1571
  %v1680 = vpop.f32.mrb[0].mxu0
  %v1681 = vadd.f32 0.0, %v1680
  %v1682 = vpop.f32.mrb[0].mxu0
  %v1683 = vpop.f32.mrb[0].mxu0
  %v1684 = vadd.f32 0.0, %v1683
  %v1685 = vpop.f32.mrb[0].mxu0
  %1686 = vdwg.mxu0
  %v1703 = vunpack.c.l.b16 %v1542
  %v1704 = vunpack.c.l.b16 %v1543
  %v1705 = vunpack.c.l.b16 %v1544
  %v1706 = vunpack.c.l.b16 %v1545
  %v1707 = vunpack.c.l.b16 %v1546
  %v1708 = vunpack.c.l.b16 %v1547
  %v1709 = vunpack.c.l.b16 %v1548
  %v1710 = vunpack.c.l.b16 %v1549
  %v1711 = vunpack.c.l.b16 %v1550
  %v1712 = vunpack.c.l.b16 %v1551
  %v1713 = vunpack.c.l.b16 %v1552
  %v1714 = vunpack.c.l.b16 %v1553
  %v1715 = vunpack.c.l.b16 %v1554
  %v1716 = vunpack.c.l.b16 %v1555
  %v1717 = vunpack.c.l.b16 %v1556
  %v1718 = vunpack.c.l.b16 %v1557
  %v1719 = vpack.c.b16 %v1704, %v1703
  %v1720 = vpack.c.b16 %v1706, %v1705
  %v1721 = vpack.c.b16 %v1708, %v1707
  %v1722 = vpack.c.b16 %v1710, %v1709
  %v1723 = vpack.c.b16 %v1712, %v1711
  %v1724 = vpack.c.b16 %v1714, %v1713
  %v1725 = vpack.c.b16 %v1716, %v1715
  %v1726 = vpack.c.b16 %v1718, %v1717
  %1735 = vmatprep.subr.bf16.mxu0 0
  %1736 = vmatpush1.bf16.msra.mxu0 %v1719
  %1737 = vmatprep.subr.bf16.mxu0 0
  %1738 = vmatpush1.bf16.msra.mxu0 %v1720
  %1739 = vmatprep.subr.bf16.mxu0 0
  %1740 = vmatpush1.bf16.msra.mxu0 %v1721
  %1741 = vmatprep.subr.bf16.mxu0 0
  %1742 = vmatpush1.bf16.msra.mxu0 %v1722
  %1743 = vmatprep.subr.bf16.mxu0 0
  %1744 = vmatpush1.bf16.msra.mxu0 %v1723
  %1745 = vmatprep.subr.bf16.mxu0 0
  %1746 = vmatpush1.bf16.msra.mxu0 %v1724
  %1747 = vmatprep.subr.bf16.mxu0 0
  %1748 = vmatpush1.bf16.msra.mxu0 %v1725
  %1749 = vmatprep.subr.bf16.mxu0 0
  %1750 = vmatpush1.bf16.msra.mxu0 %v1726
  %1751 = vmatprep.subr.bf16.mxu0 0
  %1752 = vmatpush1.bf16.msra.mxu0 0
  %1753 = vmatprep.subr.bf16.mxu0 0
  %1754 = vmatpush1.bf16.msra.mxu0 0
  %1755 = vmatprep.subr.bf16.mxu0 0
  %1756 = vmatpush1.bf16.msra.mxu0 0
  %1757 = vmatprep.subr.bf16.mxu0 0
  %1758 = vmatpush1.bf16.msra.mxu0 0
  %1759 = vmatprep.subr.bf16.mxu0 0
  %1760 = vmatpush1.bf16.msra.mxu0 0
  %1761 = vmatprep.subr.bf16.mxu0 0
  %1762 = vmatpush1.bf16.msra.mxu0 0
  %1763 = vmatprep.subr.bf16.mxu0 0
  %1764 = vmatpush1.bf16.msra.mxu0 0
  %1765 = vmatprep.subr.bf16.mxu0 0
  %1766 = vmatpush1.bf16.msra.mxu0 0
  %1767 = vmatprep.mubr.bf16.mxu0 0
  %1768 = vmatmul.mubr.bf16.gmra.mrb[0].mxu0 %v1539
  %v1769 = vpop.f32.mrb[0].mxu0
  %v1770 = vadd.f32 %v1673, %v1769
  %v1771 = vpop.f32.mrb[0].mxu0
  %v1772 = vpop.f32.mrb[0].mxu0
  %v1773 = vadd.f32 %v1676, %v1772
  %v1774 = vpop.f32.mrb[0].mxu0
  %1775 = vmatprep.mubr.bf16.mxu0 0
  %1776 = vmatmul.mubr.bf16.gmra.mrb[0].mxu0 %v1540
  %v1777 = vpop.f32.mrb[0].mxu0
  %v1778 = vadd.f32 %v1681, %v1777
  %v1779 = vpop.f32.mrb[0].mxu0
  %v1780 = vpop.f32.mrb[0].mxu0
  %v1781 = vadd.f32 %v1684, %v1780
  %v1782 = vpop.f32.mrb[0].mxu0
  %1783 = vdwg.mxu0
  %v1785 = vshrl.u32 %v1558, 16
  %v1787 = vrot.slane %v1785, 7
  %v1789 = vshrl.u32 %v1539, 16
  %v1791 = vrot.slane %v1789, 7
  %v1792 = vshll.u32 %v1539, 16
  %v1794 = vor.u32 %v1791, %v1792
  %v1795 = vsel %vm323, %v1787, %v1794
  %v1797 = vshrl.u32 %v1560, 16
  %v1799 = vrot.slane %v1797, 7
  %v1801 = vshrl.u32 %v1540, 16
  %v1803 = vrot.slane %v1801, 7
  %v1804 = vshll.u32 %v1540, 16
  %v1806 = vor.u32 %v1803, %v1804
  %v1807 = vsel %vm323, %v1799, %v1806
  %s1810 = scalar_lea.vmem %s3, 64
  %v1811 = vld [vmem:[%s1810] sm:$0xf]
  %v1812 = vld [vmem:[%s1810 + $0x4] sm:$0xf]
  %v1813 = vld [vmem:[%s1810 + $0x8] sm:$0xf]
  %v1814 = vld [vmem:[%s1810 + $0xc] sm:$0xf]
  %v1815 = vld [vmem:[%s1810 + $0x10] sm:$0xf]
  %v1816 = vld [vmem:[%s1810 + $0x14] sm:$0xf]
  %v1817 = vld [vmem:[%s1810 + $0x18] sm:$0xf]
  %v1818 = vld [vmem:[%s1810 + $0x1c] sm:$0xf]
  %v1819 = vld [vmem:[%s1810 + $0x20] sm:$0xf]
  %v1820 = vld [vmem:[%s1810 + $0x24] sm:$0xf]
  %v1821 = vld [vmem:[%s1810 + $0x28] sm:$0xf]
  %v1822 = vld [vmem:[%s1810 + $0x2c] sm:$0xf]
  %v1823 = vld [vmem:[%s1810 + $0x30] sm:$0xf]
  %v1824 = vld [vmem:[%s1810 + $0x34] sm:$0xf]
  %v1825 = vld [vmem:[%s1810 + $0x38] sm:$0xf]
  %v1826 = vld [vmem:[%s1810 + $0x3c] sm:$0xf]
  %v1843 = vunpack.c.l.b16 %v1811
  %v1844 = vunpack.c.l.b16 %v1812
  %v1845 = vunpack.c.l.b16 %v1813
  %v1846 = vunpack.c.l.b16 %v1814
  %v1847 = vunpack.c.l.b16 %v1815
  %v1848 = vunpack.c.l.b16 %v1816
  %v1849 = vunpack.c.l.b16 %v1817
  %v1850 = vunpack.c.l.b16 %v1818
  %v1851 = vunpack.c.l.b16 %v1819
  %v1852 = vunpack.c.l.b16 %v1820
  %v1853 = vunpack.c.l.b16 %v1821
  %v1854 = vunpack.c.l.b16 %v1822
  %v1855 = vunpack.c.l.b16 %v1823
  %v1856 = vunpack.c.l.b16 %v1824
  %v1857 = vunpack.c.l.b16 %v1825
  %v1858 = vunpack.c.l.b16 %v1826
  %v1859 = vpack.c.b16 %v1844, %v1843
  %v1860 = vpack.c.b16 %v1846, %v1845
  %v1861 = vpack.c.b16 %v1848, %v1847
  %v1862 = vpack.c.b16 %v1850, %v1849
  %v1863 = vpack.c.b16 %v1852, %v1851
  %v1864 = vpack.c.b16 %v1854, %v1853
  %v1865 = vpack.c.b16 %v1856, %v1855
  %v1866 = vpack.c.b16 %v1858, %v1857
  %1875 = vmatprep.subr.bf16.mxu0 0
  %1876 = vmatpush1.bf16.msra.mxu0 %v1859
  %1877 = vmatprep.subr.bf16.mxu0 0
  %1878 = vmatpush1.bf16.msra.mxu0 %v1860
  %1879 = vmatprep.subr.bf16.mxu0 0
  %1880 = vmatpush1.bf16.msra.mxu0 %v1861
  %1881 = vmatprep.subr.bf16.mxu0 0
  %1882 = vmatpush1.bf16.msra.mxu0 %v1862
  %1883 = vmatprep.subr.bf16.mxu0 0
  %1884 = vmatpush1.bf16.msra.mxu0 %v1863
  %1885 = vmatprep.subr.bf16.mxu0 0
  %1886 = vmatpush1.bf16.msra.mxu0 %v1864
  %1887 = vmatprep.subr.bf16.mxu0 0
  %1888 = vmatpush1.bf16.msra.mxu0 %v1865
  %1889 = vmatprep.subr.bf16.mxu0 0
  %1890 = vmatpush1.bf16.msra.mxu0 %v1866
  %1891 = vmatprep.subr.bf16.mxu0 0
  %1892 = vmatpush1.bf16.msra.mxu0 0
  %1893 = vmatprep.subr.bf16.mxu0 0
  %1894 = vmatpush1.bf16.msra.mxu0 0
  %1895 = vmatprep.subr.bf16.mxu0 0
  %1896 = vmatpush1.bf16.msra.mxu0 0
  %1897 = vmatprep.subr.bf16.mxu0 0
  %1898 = vmatpush1.bf16.msra.mxu0 0
  %1899 = vmatprep.subr.bf16.mxu0 0
  %1900 = vmatpush1.bf16.msra.mxu0 0
  %1901 = vmatprep.subr.bf16.mxu0 0
  %1902 = vmatpush1.bf16.msra.mxu0 0
  %1903 = vmatprep.subr.bf16.mxu0 0
  %1904 = vmatpush1.bf16.msra.mxu0 0
  %1905 = vmatprep.subr.bf16.mxu0 0
  %1906 = vmatpush1.bf16.msra.mxu0 0
  %1907 = vmatprep.mubr.bf16.mxu0 0
  %1908 = vmatmul.mubr.bf16.gmra.mrb[0].mxu0 %v1795
  %v1909 = vpop.f32.mrb[0].mxu0
  %v1910 = vadd.f32 0.0, %v1909
  %v1911 = vpop.f32.mrb[0].mxu0
  %v1912 = vpop.f32.mrb[0].mxu0
  %v1913 = vadd.f32 0.0, %v1912
  %v1914 = vpop.f32.mrb[0].mxu0
  %1915 = vmatprep.mubr.bf16.mxu0 0
  %1916 = vmatmul.mubr.bf16.gmra.mrb[0].mxu0 %v1807
  %v1917 = vpop.f32.mrb[0].mxu0
  %v1918 = vadd.f32 0.0, %v1917
  %v1919 = vpop.f32.mrb[0].mxu0
  %v1920 = vpop.f32.mrb[0].mxu0
  %v1921 = vadd.f32 0.0, %v1920
  %v1922 = vpop.f32.mrb[0].mxu0
  %1923 = vdwg.mxu0
  %v1924 = vadd.f32 %v1770, %v1910
  %v1925 = vadd.f32 %v1773, %v1913
  %v1926 = vadd.f32 %v1778, %v1918
  %v1927 = vadd.f32 %v1781, %v1921
  %v1928 = vld [vmem:[#allocation3 + $0x8] sm:$0xff]
  %v1929 = vld [vmem:[#allocation3 + $0x10] sm:$0x1]
  %v1930 = vld [vmem:[#allocation3 + $0x20] sm:$0xff]
  %v1931 = vld [vmem:[#allocation3 + $0x28] sm:$0x1]
  %v1933 = vshrl.u32 %v1928, 16
  %v1935 = vshll.u32 %v1928, 16
  %v1937 = vrot.slane %v1935, 1
  %v1938 = vor.u32 %v1933, %v1937
  %v1940 = vshll.u32 %v1929, 16
  %v1942 = vrot.slane %v1940, 1
  %v1943 = vsel %vm1242, %v1938, %v1942
  %v1945 = vshrl.u32 %v1930, 16
  %v1947 = vshll.u32 %v1930, 16
  %v1949 = vrot.slane %v1947, 1
  %v1950 = vor.u32 %v1945, %v1949
  %v1952 = vshll.u32 %v1931, 16
  %v1954 = vrot.slane %v1952, 1
  %v1955 = vsel %vm1242, %v1950, %v1954
  %s1958 = scalar_lea.vmem %s3, 192
  %v1959 = vld [vmem:[%s1958] sm:$0xf]
  %v1960 = vld [vmem:[%s1958 + $0x4] sm:$0xf]
  %v1961 = vld [vmem:[%s1958 + $0x8] sm:$0xf]
  %v1962 = vld [vmem:[%s1958 + $0xc] sm:$0xf]
  %v1963 = vld [vmem:[%s1958 + $0x10] sm:$0xf]
  %v1964 = vld [vmem:[%s1958 + $0x14] sm:$0xf]
  %v1965 = vld [vmem:[%s1958 + $0x18] sm:$0xf]
  %v1966 = vld [vmem:[%s1958 + $0x1c] sm:$0xf]
  %v1967 = vld [vmem:[%s1958 + $0x20] sm:$0xf]
  %v1968 = vld [vmem:[%s1958 + $0x24] sm:$0xf]
  %v1969 = vld [vmem:[%s1958 + $0x28] sm:$0xf]
  %v1970 = vld [vmem:[%s1958 + $0x2c] sm:$0xf]
  %v1971 = vld [vmem:[%s1958 + $0x30] sm:$0xf]
  %v1972 = vld [vmem:[%s1958 + $0x34] sm:$0xf]
  %v1973 = vld [vmem:[%s1958 + $0x38] sm:$0xf]
  %v1974 = vld [vmem:[%s1958 + $0x3c] sm:$0xf]
  %v1991 = vunpack.c.l.b16 %v1959
  %v1992 = vunpack.c.l.b16 %v1960
  %v1993 = vunpack.c.l.b16 %v1961
  %v1994 = vunpack.c.l.b16 %v1962
  %v1995 = vunpack.c.l.b16 %v1963
  %v1996 = vunpack.c.l.b16 %v1964
  %v1997 = vunpack.c.l.b16 %v1965
  %v1998 = vunpack.c.l.b16 %v1966
  %v1999 = vunpack.c.l.b16 %v1967
  %v2000 = vunpack.c.l.b16 %v1968
  %v2001 = vunpack.c.l.b16 %v1969
  %v2002 = vunpack.c.l.b16 %v1970
  %v2003 = vunpack.c.l.b16 %v1971
  %v2004 = vunpack.c.l.b16 %v1972
  %v2005 = vunpack.c.l.b16 %v1973
  %v2006 = vunpack.c.l.b16 %v1974
  %v2007 = vpack.c.b16 %v1992, %v1991
  %v2008 = vpack.c.b16 %v1994, %v1993
  %v2009 = vpack.c.b16 %v1996, %v1995
  %v2010 = vpack.c.b16 %v1998, %v1997
  %v2011 = vpack.c.b16 %v2000, %v1999
  %v2012 = vpack.c.b16 %v2002, %v2001
  %v2013 = vpack.c.b16 %v2004, %v2003
  %v2014 = vpack.c.b16 %v2006, %v2005
  %2023 = vmatprep.subr.bf16.mxu0 0
  %2024 = vmatpush1.bf16.msra.mxu0 %v2007
  %2025 = vmatprep.subr.bf16.mxu0 0
  %2026 = vmatpush1.bf16.msra.mxu0 %v2008
  %2027 = vmatprep.subr.bf16.mxu0 0
  %2028 = vmatpush1.bf16.msra.mxu0 %v2009
  %2029 = vmatprep.subr.bf16.mxu0 0
  %2030 = vmatpush1.bf16.msra.mxu0 %v2010
  %2031 = vmatprep.subr.bf16.mxu0 0
  %2032 = vmatpush1.bf16.msra.mxu0 %v2011
  %2033 = vmatprep.subr.bf16.mxu0 0
  %2034 = vmatpush1.bf16.msra.mxu0 %v2012
  %2035 = vmatprep.subr.bf16.mxu0 0
  %2036 = vmatpush1.bf16.msra.mxu0 %v2013
  %2037 = vmatprep.subr.bf16.mxu0 0
  %2038 = vmatpush1.bf16.msra.mxu0 %v2014
  %2039 = vmatprep.subr.bf16.mxu0 0
  %2040 = vmatpush1.bf16.msra.mxu0 0
  %2041 = vmatprep.subr.bf16.mxu0 0
  %2042 = vmatpush1.bf16.msra.mxu0 0
  %2043 = vmatprep.subr.bf16.mxu0 0
  %2044 = vmatpush1.bf16.msra.mxu0 0
  %2045 = vmatprep.subr.bf16.mxu0 0
  %2046 = vmatpush1.bf16.msra.mxu0 0
  %2047 = vmatprep.subr.bf16.mxu0 0
  %2048 = vmatpush1.bf16.msra.mxu0 0
  %2049 = vmatprep.subr.bf16.mxu0 0
  %2050 = vmatpush1.bf16.msra.mxu0 0
  %2051 = vmatprep.subr.bf16.mxu0 0
  %2052 = vmatpush1.bf16.msra.mxu0 0
  %2053 = vmatprep.subr.bf16.mxu0 0
  %2054 = vmatpush1.bf16.msra.mxu0 0
  %2055 = vmatprep.mubr.bf16.mxu0 0
  %2056 = vmatmul.mubr.bf16.gmra.mrb[0].mxu0 %v1943
  %v2057 = vpop.f32.mrb[0].mxu0
  %v2058 = vadd.f32 0.0, %v2057
  %v2059 = vpop.f32.mrb[0].mxu0
  %v2060 = vpop.f32.mrb[0].mxu0
  %v2061 = vadd.f32 0.0, %v2060
  %v2062 = vpop.f32.mrb[0].mxu0
  %2063 = vmatprep.mubr.bf16.mxu0 0
  %2064 = vmatmul.mubr.bf16.gmra.mrb[0].mxu0 %v1955
  %v2065 = vpop.f32.mrb[0].mxu0
  %v2066 = vadd.f32 0.0, %v2065
  %v2067 = vpop.f32.mrb[0].mxu0
  %v2068 = vpop.f32.mrb[0].mxu0
  %v2069 = vadd.f32 0.0, %v2068
  %v2070 = vpop.f32.mrb[0].mxu0
  %2071 = vdwg.mxu0
  %v2072 = vadd.f32 %v1924, %v2058
  %v2073 = vadd.f32 %v1925, %v2061
  %v2074 = vadd.f32 %v1926, %v2066
  %v2075 = vadd.f32 %v1927, %v2069
  %v2076 = vld [vmem:[#allocation3 + $0x8] sm:$0xfe]
  %v2077 = vld [vmem:[#allocation3 + $0x20] sm:$0xfe]
  %v2082 = vrot.slane %v2076, 1
  %v2083 = vrot.slane %v1929, 1
  %v2084 = vsel %vm1393, %v2082, %v2083
  %v2085 = vrot.slane %v2077, 1
  %v2086 = vrot.slane %v1931, 1
  %v2087 = vsel %vm1393, %v2085, %v2086
  %s2090 = scalar_lea.vmem %s3, 256
  %v2091 = vld [vmem:[%s2090] sm:$0xf]
  %v2092 = vld [vmem:[%s2090 + $0x4] sm:$0xf]
  %v2093 = vld [vmem:[%s2090 + $0x8] sm:$0xf]
  %v2094 = vld [vmem:[%s2090 + $0xc] sm:$0xf]
  %v2095 = vld [vmem:[%s2090 + $0x10] sm:$0xf]
  %v2096 = vld [vmem:[%s2090 + $0x14] sm:$0xf]
  %v2097 = vld [vmem:[%s2090 + $0x18] sm:$0xf]
  %v2098 = vld [vmem:[%s2090 + $0x1c] sm:$0xf]
  %v2099 = vld [vmem:[%s2090 + $0x20] sm:$0xf]
  %v2100 = vld [vmem:[%s2090 + $0x24] sm:$0xf]
  %v2101 = vld [vmem:[%s2090 + $0x28] sm:$0xf]
  %v2102 = vld [vmem:[%s2090 + $0x2c] sm:$0xf]
  %v2103 = vld [vmem:[%s2090 + $0x30] sm:$0xf]
  %v2104 = vld [vmem:[%s2090 + $0x34] sm:$0xf]
  %v2105 = vld [vmem:[%s2090 + $0x38] sm:$0xf]
  %v2106 = vld [vmem:[%s2090 + $0x3c] sm:$0xf]
  %v2123 = vunpack.c.l.b16 %v2091
  %v2124 = vunpack.c.l.b16 %v2092
  %v2125 = vunpack.c.l.b16 %v2093
  %v2126 = vunpack.c.l.b16 %v2094
  %v2127 = vunpack.c.l.b16 %v2095
  %v2128 = vunpack.c.l.b16 %v2096
  %v2129 = vunpack.c.l.b16 %v2097
  %v2130 = vunpack.c.l.b16 %v2098
  %v2131 = vunpack.c.l.b16 %v2099
  %v2132 = vunpack.c.l.b16 %v2100
  %v2133 = vunpack.c.l.b16 %v2101
  %v2134 = vunpack.c.l.b16 %v2102
  %v2135 = vunpack.c.l.b16 %v2103
  %v2136 = vunpack.c.l.b16 %v2104
  %v2137 = vunpack.c.l.b16 %v2105
  %v2138 = vunpack.c.l.b16 %v2106
  %v2139 = vpack.c.b16 %v2124, %v2123
  %v2140 = vpack.c.b16 %v2126, %v2125
  %v2141 = vpack.c.b16 %v2128, %v2127
  %v2142 = vpack.c.b16 %v2130, %v2129
  %v2143 = vpack.c.b16 %v2132, %v2131
  %v2144 = vpack.c.b16 %v2134, %v2133
  %v2145 = vpack.c.b16 %v2136, %v2135
  %v2146 = vpack.c.b16 %v2138, %v2137
  %2155 = vmatprep.subr.bf16.mxu0 0
  %2156 = vmatpush1.bf16.msra.mxu0 %v2139
  %2157 = vmatprep.subr.bf16.mxu0 0
  %2158 = vmatpush1.bf16.msra.mxu0 %v2140
  %2159 = vmatprep.subr.bf16.mxu0 0
  %2160 = vmatpush1.bf16.msra.mxu0 %v2141
  %2161 = vmatprep.subr.bf16.mxu0 0
  %2162 = vmatpush1.bf16.msra.mxu0 %v2142
  %2163 = vmatprep.subr.bf16.mxu0 0
  %2164 = vmatpush1.bf16.msra.mxu0 %v2143
  %2165 = vmatprep.subr.bf16.mxu0 0
  %2166 = vmatpush1.bf16.msra.mxu0 %v2144
  %2167 = vmatprep.subr.bf16.mxu0 0
  %2168 = vmatpush1.bf16.msra.mxu0 %v2145
  %2169 = vmatprep.subr.bf16.mxu0 0
  %2170 = vmatpush1.bf16.msra.mxu0 %v2146
  %2171 = vmatprep.subr.bf16.mxu0 0
  %2172 = vmatpush1.bf16.msra.mxu0 0
  %2173 = vmatprep.subr.bf16.mxu0 0
  %2174 = vmatpush1.bf16.msra.mxu0 0
  %2175 = vmatprep.subr.bf16.mxu0 0
  %2176 = vmatpush1.bf16.msra.mxu0 0
  %2177 = vmatprep.subr.bf16.mxu0 0
  %2178 = vmatpush1.bf16.msra.mxu0 0
  %2179 = vmatprep.subr.bf16.mxu0 0
  %2180 = vmatpush1.bf16.msra.mxu0 0
  %2181 = vmatprep.subr.bf16.mxu0 0
  %2182 = vmatpush1.bf16.msra.mxu0 0
  %2183 = vmatprep.subr.bf16.mxu0 0
  %2184 = vmatpush1.bf16.msra.mxu0 0
  %2185 = vmatprep.subr.bf16.mxu0 0
  %2186 = vmatpush1.bf16.msra.mxu0 0
  %2187 = vmatprep.mubr.bf16.mxu0 0
  %2188 = vmatmul.mubr.bf16.gmra.mrb[0].mxu0 %v2084
  %v2189 = vpop.f32.mrb[0].mxu0
  %v2190 = vadd.f32 0.0, %v2189
  %v2191 = vpop.f32.mrb[0].mxu0
  %v2192 = vpop.f32.mrb[0].mxu0
  %v2193 = vadd.f32 0.0, %v2192
  %v2194 = vpop.f32.mrb[0].mxu0
  %2195 = vmatprep.mubr.bf16.mxu0 0
  %2196 = vmatmul.mubr.bf16.gmra.mrb[0].mxu0 %v2087
  %v2197 = vpop.f32.mrb[0].mxu0
  %v2198 = vadd.f32 0.0, %v2197
  %v2199 = vpop.f32.mrb[0].mxu0
  %v2200 = vpop.f32.mrb[0].mxu0
  %v2201 = vadd.f32 0.0, %v2200
  %v2202 = vpop.f32.mrb[0].mxu0
  %2203 = vdwg.mxu0
  %v2204 = vadd.f32 %v2072, %v2190
  %v2205 = vadd.f32 %v2073, %v2193
  %v2206 = vadd.f32 %v2074, %v2198
  %v2207 = vadd.f32 %v2075, %v2201
  %v2208 = vld [vmem:[%s8] sm:$0x1]
  %v2210 = vlaneseq
  %v2211 = vshrl.u32 %v2210, 7
  %v2212 = vsub.s32 0, %v2211
  %v2213 = vrot.slane %v2208, %v2212
  %v2215 = vadd.f32 %v2204, %v2213
  %v2216 = vadd.f32 %v2205, %v2213
  %v2217 = vadd.f32 %v2206, %v2213
  %v2218 = vadd.f32 %v2207, %v2213
  %v2219 = vtanh.pop %v2215
  %v2220 = vtanh.pop %v2216
  %v2221 = vtanh.pop %v2217
  %v2222 = vtanh.pop %v2218
  %v2223 = vpack.c.bf16 %v2220, %v2219
  %v2224 = vpack.c.bf16 %v2222, %v2221
  %2225 = vst [vmem:[#allocation2 + $0x8] sm:$0xff] %v2223
  %2226 = vst [vmem:[#allocation2 + $0x20] sm:$0xff] %v2224
  %v2227 = vld [vmem:[#allocation2 + $0x8] sm:$0xff]
  %v2228 = vld [vmem:[#allocation2 + $0x20] sm:$0xff]
  %s2229 = scalar_lea.vmem %s4, 128
  %v2230 = vld [vmem:[%s2229] sm:$0xf]
  %v2231 = vld [vmem:[%s2229 + $0x4] sm:$0xf]
  %v2232 = vld [vmem:[%s2229 + $0x8] sm:$0xf]
  %v2233 = vld [vmem:[%s2229 + $0xc] sm:$0xf]
  %v2234 = vld [vmem:[%s2229 + $0x10] sm:$0xf]
  %v2235 = vld [vmem:[%s2229 + $0x14] sm:$0xf]
  %v2236 = vld [vmem:[%s2229 + $0x18] sm:$0xf]
  %v2237 = vld [vmem:[%s2229 + $0x1c] sm:$0xf]
  %v2238 = vld [vmem:[%s2229 + $0x20] sm:$0xf]
  %v2239 = vld [vmem:[%s2229 + $0x24] sm:$0xf]
  %v2240 = vld [vmem:[%s2229 + $0x28] sm:$0xf]
  %v2241 = vld [vmem:[%s2229 + $0x2c] sm:$0xf]
  %v2242 = vld [vmem:[%s2229 + $0x30] sm:$0xf]
  %v2243 = vld [vmem:[%s2229 + $0x34] sm:$0xf]
  %v2244 = vld [vmem:[%s2229 + $0x38] sm:$0xf]
  %v2245 = vld [vmem:[%s2229 + $0x3c] sm:$0xf]
  %v2246 = vld [vmem:[#allocation2] sm:$0x80]
  %v2247 = vld [vmem:[#allocation2 + $0x8] sm:$0x7f]
  %v2248 = vld [vmem:[#allocation2 + $0x18] sm:$0x80]
  %v2249 = vld [vmem:[#allocation2 + $0x20] sm:$0x7f]
  %v2254 = vrot.slane %v2246, 7
  %v2255 = vrot.slane %v2247, 7
  %v2256 = vsel %vm78, %v2254, %v2255
  %v2257 = vrot.slane %v2248, 7
  %v2258 = vrot.slane %v2249, 7
  %v2259 = vsel %vm78, %v2257, %v2258
  %v2262 = vld [vmem:[%s4] sm:$0xf]
  %v2263 = vld [vmem:[%s4 + $0x4] sm:$0xf]
  %v2264 = vld [vmem:[%s4 + $0x8] sm:$0xf]
  %v2265 = vld [vmem:[%s4 + $0xc] sm:$0xf]
  %v2266 = vld [vmem:[%s4 + $0x10] sm:$0xf]
  %v2267 = vld [vmem:[%s4 + $0x14] sm:$0xf]
  %v2268 = vld [vmem:[%s4 + $0x18] sm:$0xf]
  %v2269 = vld [vmem:[%s4 + $0x1c] sm:$0xf]
  %v2270 = vld [vmem:[%s4 + $0x20] sm:$0xf]
  %v2271 = vld [vmem:[%s4 + $0x24] sm:$0xf]
  %v2272 = vld [vmem:[%s4 + $0x28] sm:$0xf]
  %v2273 = vld [vmem:[%s4 + $0x2c] sm:$0xf]
  %v2274 = vld [vmem:[%s4 + $0x30] sm:$0xf]
  %v2275 = vld [vmem:[%s4 + $0x34] sm:$0xf]
  %v2276 = vld [vmem:[%s4 + $0x38] sm:$0xf]
  %v2277 = vld [vmem:[%s4 + $0x3c] sm:$0xf]
  %v2294 = vunpack.c.l.b16 %v2262
  %v2295 = vunpack.c.l.b16 %v2263
  %v2296 = vunpack.c.l.b16 %v2264
  %v2297 = vunpack.c.l.b16 %v2265
  %v2298 = vunpack.c.l.b16 %v2266
  %v2299 = vunpack.c.l.b16 %v2267
  %v2300 = vunpack.c.l.b16 %v2268
  %v2301 = vunpack.c.l.b16 %v2269
  %v2302 = vunpack.c.l.b16 %v2270
  %v2303 = vunpack.c.l.b16 %v2271
  %v2304 = vunpack.c.l.b16 %v2272
  %v2305 = vunpack.c.l.b16 %v2273
  %v2306 = vunpack.c.l.b16 %v2274
  %v2307 = vunpack.c.l.b16 %v2275
  %v2308 = vunpack.c.l.b16 %v2276
  %v2309 = vunpack.c.l.b16 %v2277
  %v2310 = vpack.c.b16 %v2295, %v2294
  %v2311 = vpack.c.b16 %v2297, %v2296
  %v2312 = vpack.c.b16 %v2299, %v2298
  %v2313 = vpack.c.b16 %v2301, %v2300
  %v2314 = vpack.c.b16 %v2303, %v2302
  %v2315 = vpack.c.b16 %v2305, %v2304
  %v2316 = vpack.c.b16 %v2307, %v2306
  %v2317 = vpack.c.b16 %v2309, %v2308
  %2326 = vmatprep.subr.bf16.mxu0 0
  %2327 = vmatpush1.bf16.msra.mxu0 %v2310
  %2328 = vmatprep.subr.bf16.mxu0 0
  %2329 = vmatpush1.bf16.msra.mxu0 %v2311
  %2330 = vmatprep.subr.bf16.mxu0 0
  %2331 = vmatpush1.bf16.msra.mxu0 %v2312
  %2332 = vmatprep.subr.bf16.mxu0 0
  %2333 = vmatpush1.bf16.msra.mxu0 %v2313
  %2334 = vmatprep.subr.bf16.mxu0 0
  %2335 = vmatpush1.bf16.msra.mxu0 %v2314
  %2336 = vmatprep.subr.bf16.mxu0 0
  %2337 = vmatpush1.bf16.msra.mxu0 %v2315
  %2338 = vmatprep.subr.bf16.mxu0 0
  %2339 = vmatpush1.bf16.msra.mxu0 %v2316
  %2340 = vmatprep.subr.bf16.mxu0 0
  %2341 = vmatpush1.bf16.msra.mxu0 %v2317
  %2342 = vmatprep.subr.bf16.mxu0 0
  %2343 = vmatpush1.bf16.msra.mxu0 0
  %2344 = vmatprep.subr.bf16.mxu0 0
  %2345 = vmatpush1.bf16.msra.mxu0 0
  %2346 = vmatprep.subr.bf16.mxu0 0
  %2347 = vmatpush1.bf16.msra.mxu0 0
  %2348 = vmatprep.subr.bf16.mxu0 0
  %2349 = vmatpush1.bf16.msra.mxu0 0
  %2350 = vmatprep.subr.bf16.mxu0 0
  %2351 = vmatpush1.bf16.msra.mxu0 0
  %2352 = vmatprep.subr.bf16.mxu0 0
  %2353 = vmatpush1.bf16.msra.mxu0 0
  %2354 = vmatprep.subr.bf16.mxu0 0
  %2355 = vmatpush1.bf16.msra.mxu0 0
  %2356 = vmatprep.subr.bf16.mxu0 0
  %2357 = vmatpush1.bf16.msra.mxu0 0
  %2358 = vmatprep.mubr.bf16.mxu0 0
  %2359 = vmatmul.mubr.bf16.gmra.mrb[0].mxu0 %v2256
  %v2360 = vpop.f32.mrb[0].mxu0
  %v2361 = vadd.f32 0.0, %v2360
  %v2362 = vpop.f32.mrb[0].mxu0
  %v2363 = vpop.f32.mrb[0].mxu0
  %v2364 = vadd.f32 0.0, %v2363
  %v2365 = vpop.f32.mrb[0].mxu0
  %2366 = vmatprep.mubr.bf16.mxu0 0
  %2367 = vmatmul.mubr.bf16.gmra.mrb[0].mxu0 %v2259
  %v2368 = vpop.f32.mrb[0].mxu0
  %v2369 = vadd.f32 0.0, %v2368
  %v2370 = vpop.f32.mrb[0].mxu0
  %v2371 = vpop.f32.mrb[0].mxu0
  %v2372 = vadd.f32 0.0, %v2371
  %v2373 = vpop.f32.mrb[0].mxu0
  %2374 = vdwg.mxu0
  %v2391 = vunpack.c.l.b16 %v2230
  %v2392 = vunpack.c.l.b16 %v2231
  %v2393 = vunpack.c.l.b16 %v2232
  %v2394 = vunpack.c.l.b16 %v2233
  %v2395 = vunpack.c.l.b16 %v2234
  %v2396 = vunpack.c.l.b16 %v2235
  %v2397 = vunpack.c.l.b16 %v2236
  %v2398 = vunpack.c.l.b16 %v2237
  %v2399 = vunpack.c.l.b16 %v2238
  %v2400 = vunpack.c.l.b16 %v2239
  %v2401 = vunpack.c.l.b16 %v2240
  %v2402 = vunpack.c.l.b16 %v2241
  %v2403 = vunpack.c.l.b16 %v2242
  %v2404 = vunpack.c.l.b16 %v2243
  %v2405 = vunpack.c.l.b16 %v2244
  %v2406 = vunpack.c.l.b16 %v2245
  %v2407 = vpack.c.b16 %v2392, %v2391
  %v2408 = vpack.c.b16 %v2394, %v2393
  %v2409 = vpack.c.b16 %v2396, %v2395
  %v2410 = vpack.c.b16 %v2398, %v2397
  %v2411 = vpack.c.b16 %v2400, %v2399
  %v2412 = vpack.c.b16 %v2402, %v2401
  %v2413 = vpack.c.b16 %v2404, %v2403
  %v2414 = vpack.c.b16 %v2406, %v2405
  %2423 = vmatprep.subr.bf16.mxu0 0
  %2424 = vmatpush1.bf16.msra.mxu0 %v2407
  %2425 = vmatprep.subr.bf16.mxu0 0
  %2426 = vmatpush1.bf16.msra.mxu0 %v2408
  %2427 = vmatprep.subr.bf16.mxu0 0
  %2428 = vmatpush1.bf16.msra.mxu0 %v2409
  %2429 = vmatprep.subr.bf16.mxu0 0
  %2430 = vmatpush1.bf16.msra.mxu0 %v2410
  %2431 = vmatprep.subr.bf16.mxu0 0
  %2432 = vmatpush1.bf16.msra.mxu0 %v2411
  %2433 = vmatprep.subr.bf16.mxu0 0
  %2434 = vmatpush1.bf16.msra.mxu0 %v2412
  %2435 = vmatprep.subr.bf16.mxu0 0
  %2436 = vmatpush1.bf16.msra.mxu0 %v2413
  %2437 = vmatprep.subr.bf16.mxu0 0
  %2438 = vmatpush1.bf16.msra.mxu0 %v2414
  %2439 = vmatprep.subr.bf16.mxu0 0
  %2440 = vmatpush1.bf16.msra.mxu0 0
  %2441 = vmatprep.subr.bf16.mxu0 0
  %2442 = vmatpush1.bf16.msra.mxu0 0
  %2443 = vmatprep.subr.bf16.mxu0 0
  %2444 = vmatpush1.bf16.msra.mxu0 0
  %2445 = vmatprep.subr.bf16.mxu0 0
  %2446 = vmatpush1.bf16.msra.mxu0 0
  %2447 = vmatprep.subr.bf16.mxu0 0
  %2448 = vmatpush1.bf16.msra.mxu0 0
  %2449 = vmatprep.subr.bf16.mxu0 0
  %2450 = vmatpush1.bf16.msra.mxu0 0
  %2451 = vmatprep.subr.bf16.mxu0 0
  %2452 = vmatpush1.bf16.msra.mxu0 0
  %2453 = vmatprep.subr.bf16.mxu0 0
  %2454 = vmatpush1.bf16.msra.mxu0 0
  %2455 = vmatprep.mubr.bf16.mxu0 0
  %2456 = vmatmul.mubr.bf16.gmra.mrb[0].mxu0 %v2227
  %v2457 = vpop.f32.mrb[0].mxu0
  %v2458 = vadd.f32 %v2361, %v2457
  %v2459 = vpop.f32.mrb[0].mxu0
  %v2460 = vpop.f32.mrb[0].mxu0
  %v2461 = vadd.f32 %v2364, %v2460
  %v2462 = vpop.f32.mrb[0].mxu0
  %2463 = vmatprep.mubr.bf16.mxu0 0
  %2464 = vmatmul.mubr.bf16.gmra.mrb[0].mxu0 %v2228
  %v2465 = vpop.f32.mrb[0].mxu0
  %v2466 = vadd.f32 %v2369, %v2465
  %v2467 = vpop.f32.mrb[0].mxu0
  %v2468 = vpop.f32.mrb[0].mxu0
  %v2469 = vadd.f32 %v2372, %v2468
  %v2470 = vpop.f32.mrb[0].mxu0
  %2471 = vdwg.mxu0
  %v2473 = vshrl.u32 %v2246, 16
  %v2475 = vrot.slane %v2473, 7
  %v2477 = vshrl.u32 %v2227, 16
  %v2479 = vrot.slane %v2477, 7
  %v2480 = vshll.u32 %v2227, 16
  %v2482 = vor.u32 %v2479, %v2480
  %v2483 = vsel %vm323, %v2475, %v2482
  %v2485 = vshrl.u32 %v2248, 16
  %v2487 = vrot.slane %v2485, 7
  %v2489 = vshrl.u32 %v2228, 16
  %v2491 = vrot.slane %v2489, 7
  %v2492 = vshll.u32 %v2228, 16
  %v2494 = vor.u32 %v2491, %v2492
  %v2495 = vsel %vm323, %v2487, %v2494
  %s2498 = scalar_lea.vmem %s4, 64
  %v2499 = vld [vmem:[%s2498] sm:$0xf]
  %v2500 = vld [vmem:[%s2498 + $0x4] sm:$0xf]
  %v2501 = vld [vmem:[%s2498 + $0x8] sm:$0xf]
  %v2502 = vld [vmem:[%s2498 + $0xc] sm:$0xf]
  %v2503 = vld [vmem:[%s2498 + $0x10] sm:$0xf]
  %v2504 = vld [vmem:[%s2498 + $0x14] sm:$0xf]
  %v2505 = vld [vmem:[%s2498 + $0x18] sm:$0xf]
  %v2506 = vld [vmem:[%s2498 + $0x1c] sm:$0xf]
  %v2507 = vld [vmem:[%s2498 + $0x20] sm:$0xf]
  %v2508 = vld [vmem:[%s2498 + $0x24] sm:$0xf]
  %v2509 = vld [vmem:[%s2498 + $0x28] sm:$0xf]
  %v2510 = vld [vmem:[%s2498 + $0x2c] sm:$0xf]
  %v2511 = vld [vmem:[%s2498 + $0x30] sm:$0xf]
  %v2512 = vld [vmem:[%s2498 + $0x34] sm:$0xf]
  %v2513 = vld [vmem:[%s2498 + $0x38] sm:$0xf]
  %v2514 = vld [vmem:[%s2498 + $0x3c] sm:$0xf]
  %v2531 = vunpack.c.l.b16 %v2499
  %v2532 = vunpack.c.l.b16 %v2500
  %v2533 = vunpack.c.l.b16 %v2501
  %v2534 = vunpack.c.l.b16 %v2502
  %v2535 = vunpack.c.l.b16 %v2503
  %v2536 = vunpack.c.l.b16 %v2504
  %v2537 = vunpack.c.l.b16 %v2505
  %v2538 = vunpack.c.l.b16 %v2506
  %v2539 = vunpack.c.l.b16 %v2507
  %v2540 = vunpack.c.l.b16 %v2508
  %v2541 = vunpack.c.l.b16 %v2509
  %v2542 = vunpack.c.l.b16 %v2510
  %v2543 = vunpack.c.l.b16 %v2511
  %v2544 = vunpack.c.l.b16 %v2512
  %v2545 = vunpack.c.l.b16 %v2513
  %v2546 = vunpack.c.l.b16 %v2514
  %v2547 = vpack.c.b16 %v2532, %v2531
  %v2548 = vpack.c.b16 %v2534, %v2533
  %v2549 = vpack.c.b16 %v2536, %v2535
  %v2550 = vpack.c.b16 %v2538, %v2537
  %v2551 = vpack.c.b16 %v2540, %v2539
  %v2552 = vpack.c.b16 %v2542, %v2541
  %v2553 = vpack.c.b16 %v2544, %v2543
  %v2554 = vpack.c.b16 %v2546, %v2545
  %2563 = vmatprep.subr.bf16.mxu0 0
  %2564 = vmatpush1.bf16.msra.mxu0 %v2547
  %2565 = vmatprep.subr.bf16.mxu0 0
  %2566 = vmatpush1.bf16.msra.mxu0 %v2548
  %2567 = vmatprep.subr.bf16.mxu0 0
  %2568 = vmatpush1.bf16.msra.mxu0 %v2549
  %2569 = vmatprep.subr.bf16.mxu0 0
  %2570 = vmatpush1.bf16.msra.mxu0 %v2550
  %2571 = vmatprep.subr.bf16.mxu0 0
  %2572 = vmatpush1.bf16.msra.mxu0 %v2551
  %2573 = vmatprep.subr.bf16.mxu0 0
  %2574 = vmatpush1.bf16.msra.mxu0 %v2552
  %2575 = vmatprep.subr.bf16.mxu0 0
  %2576 = vmatpush1.bf16.msra.mxu0 %v2553
  %2577 = vmatprep.subr.bf16.mxu0 0
  %2578 = vmatpush1.bf16.msra.mxu0 %v2554
  %2579 = vmatprep.subr.bf16.mxu0 0
  %2580 = vmatpush1.bf16.msra.mxu0 0
  %2581 = vmatprep.subr.bf16.mxu0 0
  %2582 = vmatpush1.bf16.msra.mxu0 0
  %2583 = vmatprep.subr.bf16.mxu0 0
  %2584 = vmatpush1.bf16.msra.mxu0 0
  %2585 = vmatprep.subr.bf16.mxu0 0
  %2586 = vmatpush1.bf16.msra.mxu0 0
  %2587 = vmatprep.subr.bf16.mxu0 0
  %2588 = vmatpush1.bf16.msra.mxu0 0
  %2589 = vmatprep.subr.bf16.mxu0 0
  %2590 = vmatpush1.bf16.msra.mxu0 0
  %2591 = vmatprep.subr.bf16.mxu0 0
  %2592 = vmatpush1.bf16.msra.mxu0 0
  %2593 = vmatprep.subr.bf16.mxu0 0
  %2594 = vmatpush1.bf16.msra.mxu0 0
  %2595 = vmatprep.mubr.bf16.mxu0 0
  %2596 = vmatmul.mubr.bf16.gmra.mrb[0].mxu0 %v2483
  %v2597 = vpop.f32.mrb[0].mxu0
  %v2598 = vadd.f32 0.0, %v2597
  %v2599 = vpop.f32.mrb[0].mxu0
  %v2600 = vpop.f32.mrb[0].mxu0
  %v2601 = vadd.f32 0.0, %v2600
  %v2602 = vpop.f32.mrb[0].mxu0
  %2603 = vmatprep.mubr.bf16.mxu0 0
  %2604 = vmatmul.mubr.bf16.gmra.mrb[0].mxu0 %v2495
  %v2605 = vpop.f32.mrb[0].mxu0
  %v2606 = vadd.f32 0.0, %v2605
  %v2607 = vpop.f32.mrb[0].mxu0
  %v2608 = vpop.f32.mrb[0].mxu0
  %v2609 = vadd.f32 0.0, %v2608
  %v2610 = vpop.f32.mrb[0].mxu0
  %2611 = vdwg.mxu0
  %v2612 = vadd.f32 %v2458, %v2598
  %v2613 = vadd.f32 %v2461, %v2601
  %v2614 = vadd.f32 %v2466, %v2606
  %v2615 = vadd.f32 %v2469, %v2609
  %v2616 = vld [vmem:[#allocation2 + $0x8] sm:$0xff]
  %v2617 = vld [vmem:[#allocation2 + $0x10] sm:$0x1]
  %v2618 = vld [vmem:[#allocation2 + $0x20] sm:$0xff]
  %v2619 = vld [vmem:[#allocation2 + $0x28] sm:$0x1]
  %v2621 = vshrl.u32 %v2616, 16
  %v2623 = vshll.u32 %v2616, 16
  %v2625 = vrot.slane %v2623, 1
  %v2626 = vor.u32 %v2621, %v2625
  %v2628 = vshll.u32 %v2617, 16
  %v2630 = vrot.slane %v2628, 1
  %v2631 = vsel %vm1242, %v2626, %v2630
  %v2633 = vshrl.u32 %v2618, 16
  %v2635 = vshll.u32 %v2618, 16
  %v2637 = vrot.slane %v2635, 1
  %v2638 = vor.u32 %v2633, %v2637
  %v2640 = vshll.u32 %v2619, 16
  %v2642 = vrot.slane %v2640, 1
  %v2643 = vsel %vm1242, %v2638, %v2642
  %s2646 = scalar_lea.vmem %s4, 192
  %v2647 = vld [vmem:[%s2646] sm:$0xf]
  %v2648 = vld [vmem:[%s2646 + $0x4] sm:$0xf]
  %v2649 = vld [vmem:[%s2646 + $0x8] sm:$0xf]
  %v2650 = vld [vmem:[%s2646 + $0xc] sm:$0xf]
  %v2651 = vld [vmem:[%s2646 + $0x10] sm:$0xf]
  %v2652 = vld [vmem:[%s2646 + $0x14] sm:$0xf]
  %v2653 = vld [vmem:[%s2646 + $0x18] sm:$0xf]
  %v2654 = vld [vmem:[%s2646 + $0x1c] sm:$0xf]
  %v2655 = vld [vmem:[%s2646 + $0x20] sm:$0xf]
  %v2656 = vld [vmem:[%s2646 + $0x24] sm:$0xf]
  %v2657 = vld [vmem:[%s2646 + $0x28] sm:$0xf]
  %v2658 = vld [vmem:[%s2646 + $0x2c] sm:$0xf]
  %v2659 = vld [vmem:[%s2646 + $0x30] sm:$0xf]
  %v2660 = vld [vmem:[%s2646 + $0x34] sm:$0xf]
  %v2661 = vld [vmem:[%s2646 + $0x38] sm:$0xf]
  %v2662 = vld [vmem:[%s2646 + $0x3c] sm:$0xf]
  %v2679 = vunpack.c.l.b16 %v2647
  %v2680 = vunpack.c.l.b16 %v2648
  %v2681 = vunpack.c.l.b16 %v2649
  %v2682 = vunpack.c.l.b16 %v2650
  %v2683 = vunpack.c.l.b16 %v2651
  %v2684 = vunpack.c.l.b16 %v2652
  %v2685 = vunpack.c.l.b16 %v2653
  %v2686 = vunpack.c.l.b16 %v2654
  %v2687 = vunpack.c.l.b16 %v2655
  %v2688 = vunpack.c.l.b16 %v2656
  %v2689 = vunpack.c.l.b16 %v2657
  %v2690 = vunpack.c.l.b16 %v2658
  %v2691 = vunpack.c.l.b16 %v2659
  %v2692 = vunpack.c.l.b16 %v2660
  %v2693 = vunpack.c.l.b16 %v2661
  %v2694 = vunpack.c.l.b16 %v2662
  %v2695 = vpack.c.b16 %v2680, %v2679
  %v2696 = vpack.c.b16 %v2682, %v2681
  %v2697 = vpack.c.b16 %v2684, %v2683
  %v2698 = vpack.c.b16 %v2686, %v2685
  %v2699 = vpack.c.b16 %v2688, %v2687
  %v2700 = vpack.c.b16 %v2690, %v2689
  %v2701 = vpack.c.b16 %v2692, %v2691
  %v2702 = vpack.c.b16 %v2694, %v2693
  %2711 = vmatprep.subr.bf16.mxu0 0
  %2712 = vmatpush1.bf16.msra.mxu0 %v2695
  %2713 = vmatprep.subr.bf16.mxu0 0
  %2714 = vmatpush1.bf16.msra.mxu0 %v2696
  %2715 = vmatprep.subr.bf16.mxu0 0
  %2716 = vmatpush1.bf16.msra.mxu0 %v2697
  %2717 = vmatprep.subr.bf16.mxu0 0
  %2718 = vmatpush1.bf16.msra.mxu0 %v2698
  %2719 = vmatprep.subr.bf16.mxu0 0
  %2720 = vmatpush1.bf16.msra.mxu0 %v2699
  %2721 = vmatprep.subr.bf16.mxu0 0
  %2722 = vmatpush1.bf16.msra.mxu0 %v2700
  %2723 = vmatprep.subr.bf16.mxu0 0
  %2724 = vmatpush1.bf16.msra.mxu0 %v2701
  %2725 = vmatprep.subr.bf16.mxu0 0
  %2726 = vmatpush1.bf16.msra.mxu0 %v2702
  %2727 = vmatprep.subr.bf16.mxu0 0
  %2728 = vmatpush1.bf16.msra.mxu0 0
  %2729 = vmatprep.subr.bf16.mxu0 0
  %2730 = vmatpush1.bf16.msra.mxu0 0
  %2731 = vmatprep.subr.bf16.mxu0 0
  %2732 = vmatpush1.bf16.msra.mxu0 0
  %2733 = vmatprep.subr.bf16.mxu0 0
  %2734 = vmatpush1.bf16.msra.mxu0 0
  %2735 = vmatprep.subr.bf16.mxu0 0
  %2736 = vmatpush1.bf16.msra.mxu0 0
  %2737 = vmatprep.subr.bf16.mxu0 0
  %2738 = vmatpush1.bf16.msra.mxu0 0
  %2739 = vmatprep.subr.bf16.mxu0 0
  %2740 = vmatpush1.bf16.msra.mxu0 0
  %2741 = vmatprep.subr.bf16.mxu0 0
  %2742 = vmatpush1.bf16.msra.mxu0 0
  %2743 = vmatprep.mubr.bf16.mxu0 0
  %2744 = vmatmul.mubr.bf16.gmra.mrb[0].mxu0 %v2631
  %v2745 = vpop.f32.mrb[0].mxu0
  %v2746 = vadd.f32 0.0, %v2745
  %v2747 = vpop.f32.mrb[0].mxu0
  %v2748 = vpop.f32.mrb[0].mxu0
  %v2749 = vadd.f32 0.0, %v2748
  %v2750 = vpop.f32.mrb[0].mxu0
  %2751 = vmatprep.mubr.bf16.mxu0 0
  %2752 = vmatmul.mubr.bf16.gmra.mrb[0].mxu0 %v2643
  %v2753 = vpop.f32.mrb[0].mxu0
  %v2754 = vadd.f32 0.0, %v2753
  %v2755 = vpop.f32.mrb[0].mxu0
  %v2756 = vpop.f32.mrb[0].mxu0
  %v2757 = vadd.f32 0.0, %v2756
  %v2758 = vpop.f32.mrb[0].mxu0
  %2759 = vdwg.mxu0
  %v2760 = vadd.f32 %v2612, %v2746
  %v2761 = vadd.f32 %v2613, %v2749
  %v2762 = vadd.f32 %v2614, %v2754
  %v2763 = vadd.f32 %v2615, %v2757
  %v2764 = vld [vmem:[#allocation2 + $0x8] sm:$0xfe]
  %v2765 = vld [vmem:[#allocation2 + $0x20] sm:$0xfe]
  %v2770 = vrot.slane %v2764, 1
  %v2771 = vrot.slane %v2617, 1
  %v2772 = vsel %vm1393, %v2770, %v2771
  %v2773 = vrot.slane %v2765, 1
  %v2774 = vrot.slane %v2619, 1
  %v2775 = vsel %vm1393, %v2773, %v2774
  %s2778 = scalar_lea.vmem %s4, 256
  %v2779 = vld [vmem:[%s2778] sm:$0xf]
  %v2780 = vld [vmem:[%s2778 + $0x4] sm:$0xf]
  %v2781 = vld [vmem:[%s2778 + $0x8] sm:$0xf]
  %v2782 = vld [vmem:[%s2778 + $0xc] sm:$0xf]
  %v2783 = vld [vmem:[%s2778 + $0x10] sm:$0xf]
  %v2784 = vld [vmem:[%s2778 + $0x14] sm:$0xf]
  %v2785 = vld [vmem:[%s2778 + $0x18] sm:$0xf]
  %v2786 = vld [vmem:[%s2778 + $0x1c] sm:$0xf]
  %v2787 = vld [vmem:[%s2778 + $0x20] sm:$0xf]
  %v2788 = vld [vmem:[%s2778 + $0x24] sm:$0xf]
  %v2789 = vld [vmem:[%s2778 + $0x28] sm:$0xf]
  %v2790 = vld [vmem:[%s2778 + $0x2c] sm:$0xf]
  %v2791 = vld [vmem:[%s2778 + $0x30] sm:$0xf]
  %v2792 = vld [vmem:[%s2778 + $0x34] sm:$0xf]
  %v2793 = vld [vmem:[%s2778 + $0x38] sm:$0xf]
  %v2794 = vld [vmem:[%s2778 + $0x3c] sm:$0xf]
  %v2811 = vunpack.c.l.b16 %v2779
  %v2812 = vunpack.c.l.b16 %v2780
  %v2813 = vunpack.c.l.b16 %v2781
  %v2814 = vunpack.c.l.b16 %v2782
  %v2815 = vunpack.c.l.b16 %v2783
  %v2816 = vunpack.c.l.b16 %v2784
  %v2817 = vunpack.c.l.b16 %v2785
  %v2818 = vunpack.c.l.b16 %v2786
  %v2819 = vunpack.c.l.b16 %v2787
  %v2820 = vunpack.c.l.b16 %v2788
  %v2821 = vunpack.c.l.b16 %v2789
  %v2822 = vunpack.c.l.b16 %v2790
  %v2823 = vunpack.c.l.b16 %v2791
  %v2824 = vunpack.c.l.b16 %v2792
  %v2825 = vunpack.c.l.b16 %v2793
  %v2826 = vunpack.c.l.b16 %v2794
  %v2827 = vpack.c.b16 %v2812, %v2811
  %v2828 = vpack.c.b16 %v2814, %v2813
  %v2829 = vpack.c.b16 %v2816, %v2815
  %v2830 = vpack.c.b16 %v2818, %v2817
  %v2831 = vpack.c.b16 %v2820, %v2819
  %v2832 = vpack.c.b16 %v2822, %v2821
  %v2833 = vpack.c.b16 %v2824, %v2823
  %v2834 = vpack.c.b16 %v2826, %v2825
  %2843 = vmatprep.subr.bf16.mxu0 0
  %2844 = vmatpush1.bf16.msra.mxu0 %v2827
  %2845 = vmatprep.subr.bf16.mxu0 0
  %2846 = vmatpush1.bf16.msra.mxu0 %v2828
  %2847 = vmatprep.subr.bf16.mxu0 0
  %2848 = vmatpush1.bf16.msra.mxu0 %v2829
  %2849 = vmatprep.subr.bf16.mxu0 0
  %2850 = vmatpush1.bf16.msra.mxu0 %v2830
  %2851 = vmatprep.subr.bf16.mxu0 0
  %2852 = vmatpush1.bf16.msra.mxu0 %v2831
  %2853 = vmatprep.subr.bf16.mxu0 0
  %2854 = vmatpush1.bf16.msra.mxu0 %v2832
  %2855 = vmatprep.subr.bf16.mxu0 0
  %2856 = vmatpush1.bf16.msra.mxu0 %v2833
  %2857 = vmatprep.subr.bf16.mxu0 0
  %2858 = vmatpush1.bf16.msra.mxu0 %v2834
  %2859 = vmatprep.subr.bf16.mxu0 0
  %2860 = vmatpush1.bf16.msra.mxu0 0
  %2861 = vmatprep.subr.bf16.mxu0 0
  %2862 = vmatpush1.bf16.msra.mxu0 0
  %2863 = vmatprep.subr.bf16.mxu0 0
  %2864 = vmatpush1.bf16.msra.mxu0 0
  %2865 = vmatprep.subr.bf16.mxu0 0
  %2866 = vmatpush1.bf16.msra.mxu0 0
  %2867 = vmatprep.subr.bf16.mxu0 0
  %2868 = vmatpush1.bf16.msra.mxu0 0
  %2869 = vmatprep.subr.bf16.mxu0 0
  %2870 = vmatpush1.bf16.msra.mxu0 0
  %2871 = vmatprep.subr.bf16.mxu0 0
  %2872 = vmatpush1.bf16.msra.mxu0 0
  %2873 = vmatprep.subr.bf16.mxu0 0
  %2874 = vmatpush1.bf16.msra.mxu0 0
  %2875 = vmatprep.mubr.bf16.mxu0 0
  %2876 = vmatmul.mubr.bf16.gmra.mrb[0].mxu0 %v2772
  %v2877 = vpop.f32.mrb[0].mxu0
  %v2878 = vadd.f32 0.0, %v2877
  %v2879 = vpop.f32.mrb[0].mxu0
  %v2880 = vpop.f32.mrb[0].mxu0
  %v2881 = vadd.f32 0.0, %v2880
  %v2882 = vpop.f32.mrb[0].mxu0
  %2883 = vmatprep.mubr.bf16.mxu0 0
  %2884 = vmatmul.mubr.bf16.gmra.mrb[0].mxu0 %v2775
  %v2885 = vpop.f32.mrb[0].mxu0
  %v2886 = vadd.f32 0.0, %v2885
  %v2887 = vpop.f32.mrb[0].mxu0
  %v2888 = vpop.f32.mrb[0].mxu0
  %v2889 = vadd.f32 0.0, %v2888
  %v2890 = vpop.f32.mrb[0].mxu0
  %2891 = vdwg.mxu0
  %v2892 = vadd.f32 %v2760, %v2878
  %v2893 = vadd.f32 %v2761, %v2881
  %v2894 = vadd.f32 %v2762, %v2886
  %v2895 = vadd.f32 %v2763, %v2889
  %v2896 = vld [vmem:[%s9] sm:$0x1]
  %v2898 = vlaneseq
  %v2899 = vshrl.u32 %v2898, 7
  %v2900 = vsub.s32 0, %v2899
  %v2901 = vrot.slane %v2896, %v2900
  %v2903 = vadd.f32 %v2892, %v2901
  %v2904 = vadd.f32 %v2893, %v2901
  %v2905 = vadd.f32 %v2894, %v2901
  %v2906 = vadd.f32 %v2895, %v2901
  %v2907 = vtanh.pop %v2903
  %v2908 = vtanh.pop %v2904
  %v2909 = vtanh.pop %v2905
  %v2910 = vtanh.pop %v2906
  %v2911 = vpack.c.bf16 %v2908, %v2907
  %v2912 = vpack.c.bf16 %v2910, %v2909
  %2913 = vst [vmem:[#allocation3 + $0x8] sm:$0xff] %v2911
  %2914 = vst [vmem:[#allocation3 + $0x20] sm:$0xff] %v2912
  %v2915 = vld [vmem:[#allocation3 + $0x8] sm:$0xff]
  %v2916 = vld [vmem:[#allocation3 + $0x20] sm:$0xff]
  %s2917 = scalar_lea.vmem %s5, 128
  %v2918 = vld [vmem:[%s2917] sm:$0xf]
  %v2919 = vld [vmem:[%s2917 + $0x4] sm:$0xf]
  %v2920 = vld [vmem:[%s2917 + $0x8] sm:$0xf]
  %v2921 = vld [vmem:[%s2917 + $0xc] sm:$0xf]
  %v2922 = vld [vmem:[%s2917 + $0x10] sm:$0xf]
  %v2923 = vld [vmem:[%s2917 + $0x14] sm:$0xf]
  %v2924 = vld [vmem:[%s2917 + $0x18] sm:$0xf]
  %v2925 = vld [vmem:[%s2917 + $0x1c] sm:$0xf]
  %v2926 = vld [vmem:[%s2917 + $0x20] sm:$0xf]
  %v2927 = vld [vmem:[%s2917 + $0x24] sm:$0xf]
  %v2928 = vld [vmem:[%s2917 + $0x28] sm:$0xf]
  %v2929 = vld [vmem:[%s2917 + $0x2c] sm:$0xf]
  %v2930 = vld [vmem:[%s2917 + $0x30] sm:$0xf]
  %v2931 = vld [vmem:[%s2917 + $0x34] sm:$0xf]
  %v2932 = vld [vmem:[%s2917 + $0x38] sm:$0xf]
  %v2933 = vld [vmem:[%s2917 + $0x3c] sm:$0xf]
  %v2934 = vld [vmem:[#allocation3] sm:$0x80]
  %v2935 = vld [vmem:[#allocation3 + $0x8] sm:$0x7f]
  %v2936 = vld [vmem:[#allocation3 + $0x18] sm:$0x80]
  %v2937 = vld [vmem:[#allocation3 + $0x20] sm:$0x7f]
  %v2942 = vrot.slane %v2934, 7
  %v2943 = vrot.slane %v2935, 7
  %v2944 = vsel %vm78, %v2942, %v2943
  %v2945 = vrot.slane %v2936, 7
  %v2946 = vrot.slane %v2937, 7
  %v2947 = vsel %vm78, %v2945, %v2946
  %v2950 = vld [vmem:[%s5] sm:$0xf]
  %v2951 = vld [vmem:[%s5 + $0x4] sm:$0xf]
  %v2952 = vld [vmem:[%s5 + $0x8] sm:$0xf]
  %v2953 = vld [vmem:[%s5 + $0xc] sm:$0xf]
  %v2954 = vld [vmem:[%s5 + $0x10] sm:$0xf]
  %v2955 = vld [vmem:[%s5 + $0x14] sm:$0xf]
  %v2956 = vld [vmem:[%s5 + $0x18] sm:$0xf]
  %v2957 = vld [vmem:[%s5 + $0x1c] sm:$0xf]
  %v2958 = vld [vmem:[%s5 + $0x20] sm:$0xf]
  %v2959 = vld [vmem:[%s5 + $0x24] sm:$0xf]
  %v2960 = vld [vmem:[%s5 + $0x28] sm:$0xf]
  %v2961 = vld [vmem:[%s5 + $0x2c] sm:$0xf]
  %v2962 = vld [vmem:[%s5 + $0x30] sm:$0xf]
  %v2963 = vld [vmem:[%s5 + $0x34] sm:$0xf]
  %v2964 = vld [vmem:[%s5 + $0x38] sm:$0xf]
  %v2965 = vld [vmem:[%s5 + $0x3c] sm:$0xf]
  %v2982 = vunpack.c.l.b16 %v2950
  %v2983 = vunpack.c.l.b16 %v2951
  %v2984 = vunpack.c.l.b16 %v2952
  %v2985 = vunpack.c.l.b16 %v2953
  %v2986 = vunpack.c.l.b16 %v2954
  %v2987 = vunpack.c.l.b16 %v2955
  %v2988 = vunpack.c.l.b16 %v2956
  %v2989 = vunpack.c.l.b16 %v2957
  %v2990 = vunpack.c.l.b16 %v2958
  %v2991 = vunpack.c.l.b16 %v2959
  %v2992 = vunpack.c.l.b16 %v2960
  %v2993 = vunpack.c.l.b16 %v2961
  %v2994 = vunpack.c.l.b16 %v2962
  %v2995 = vunpack.c.l.b16 %v2963
  %v2996 = vunpack.c.l.b16 %v2964
  %v2997 = vunpack.c.l.b16 %v2965
  %v2998 = vpack.c.b16 %v2983, %v2982
  %v2999 = vpack.c.b16 %v2985, %v2984
  %v3000 = vpack.c.b16 %v2987, %v2986
  %v3001 = vpack.c.b16 %v2989, %v2988
  %v3002 = vpack.c.b16 %v2991, %v2990
  %v3003 = vpack.c.b16 %v2993, %v2992
  %v3004 = vpack.c.b16 %v2995, %v2994
  %v3005 = vpack.c.b16 %v2997, %v2996
  %3014 = vmatprep.subr.bf16.mxu0 0
  %3015 = vmatpush1.bf16.msra.mxu0 %v2998
  %3016 = vmatprep.subr.bf16.mxu0 0
  %3017 = vmatpush1.bf16.msra.mxu0 %v2999
  %3018 = vmatprep.subr.bf16.mxu0 0
  %3019 = vmatpush1.bf16.msra.mxu0 %v3000
  %3020 = vmatprep.subr.bf16.mxu0 0
  %3021 = vmatpush1.bf16.msra.mxu0 %v3001
  %3022 = vmatprep.subr.bf16.mxu0 0
  %3023 = vmatpush1.bf16.msra.mxu0 %v3002
  %3024 = vmatprep.subr.bf16.mxu0 0
  %3025 = vmatpush1.bf16.msra.mxu0 %v3003
  %3026 = vmatprep.subr.bf16.mxu0 0
  %3027 = vmatpush1.bf16.msra.mxu0 %v3004
  %3028 = vmatprep.subr.bf16.mxu0 0
  %3029 = vmatpush1.bf16.msra.mxu0 %v3005
  %3030 = vmatprep.subr.bf16.mxu0 0
  %3031 = vmatpush1.bf16.msra.mxu0 0
  %3032 = vmatprep.subr.bf16.mxu0 0
  %3033 = vmatpush1.bf16.msra.mxu0 0
  %3034 = vmatprep.subr.bf16.mxu0 0
  %3035 = vmatpush1.bf16.msra.mxu0 0
  %3036 = vmatprep.subr.bf16.mxu0 0
  %3037 = vmatpush1.bf16.msra.mxu0 0
  %3038 = vmatprep.subr.bf16.mxu0 0
  %3039 = vmatpush1.bf16.msra.mxu0 0
  %3040 = vmatprep.subr.bf16.mxu0 0
  %3041 = vmatpush1.bf16.msra.mxu0 0
  %3042 = vmatprep.subr.bf16.mxu0 0
  %3043 = vmatpush1.bf16.msra.mxu0 0
  %3044 = vmatprep.subr.bf16.mxu0 0
  %3045 = vmatpush1.bf16.msra.mxu0 0
  %3046 = vmatprep.mubr.bf16.mxu0 0
  %3047 = vmatmul.mubr.bf16.gmra.mrb[0].mxu0 %v2944
  %v3048 = vpop.f32.mrb[0].mxu0
  %v3049 = vadd.f32 0.0, %v3048
  %v3050 = vpop.f32.mrb[0].mxu0
  %v3051 = vpop.f32.mrb[0].mxu0
  %v3052 = vadd.f32 0.0, %v3051
  %v3053 = vpop.f32.mrb[0].mxu0
  %3054 = vmatprep.mubr.bf16.mxu0 0
  %3055 = vmatmul.mubr.bf16.gmra.mrb[0].mxu0 %v2947
  %v3056 = vpop.f32.mrb[0].mxu0
  %v3057 = vadd.f32 0.0, %v3056
  %v3058 = vpop.f32.mrb[0].mxu0
  %v3059 = vpop.f32.mrb[0].mxu0
  %v3060 = vadd.f32 0.0, %v3059
  %v3061 = vpop.f32.mrb[0].mxu0
  %3062 = vdwg.mxu0
  %v3079 = vunpack.c.l.b16 %v2918
  %v3080 = vunpack.c.l.b16 %v2919
  %v3081 = vunpack.c.l.b16 %v2920
  %v3082 = vunpack.c.l.b16 %v2921
  %v3083 = vunpack.c.l.b16 %v2922
  %v3084 = vunpack.c.l.b16 %v2923
  %v3085 = vunpack.c.l.b16 %v2924
  %v3086 = vunpack.c.l.b16 %v2925
  %v3087 = vunpack.c.l.b16 %v2926
  %v3088 = vunpack.c.l.b16 %v2927
  %v3089 = vunpack.c.l.b16 %v2928
  %v3090 = vunpack.c.l.b16 %v2929
  %v3091 = vunpack.c.l.b16 %v2930
  %v3092 = vunpack.c.l.b16 %v2931
  %v3093 = vunpack.c.l.b16 %v2932
  %v3094 = vunpack.c.l.b16 %v2933
  %v3095 = vpack.c.b16 %v3080, %v3079
  %v3096 = vpack.c.b16 %v3082, %v3081
  %v3097 = vpack.c.b16 %v3084, %v3083
  %v3098 = vpack.c.b16 %v3086, %v3085
  %v3099 = vpack.c.b16 %v3088, %v3087
  %v3100 = vpack.c.b16 %v3090, %v3089
  %v3101 = vpack.c.b16 %v3092, %v3091
  %v3102 = vpack.c.b16 %v3094, %v3093
  %3111 = vmatprep.subr.bf16.mxu0 0
  %3112 = vmatpush1.bf16.msra.mxu0 %v3095
  %3113 = vmatprep.subr.bf16.mxu0 0
  %3114 = vmatpush1.bf16.msra.mxu0 %v3096
  %3115 = vmatprep.subr.bf16.mxu0 0
  %3116 = vmatpush1.bf16.msra.mxu0 %v3097
  %3117 = vmatprep.subr.bf16.mxu0 0
  %3118 = vmatpush1.bf16.msra.mxu0 %v3098
  %3119 = vmatprep.subr.bf16.mxu0 0
  %3120 = vmatpush1.bf16.msra.mxu0 %v3099
  %3121 = vmatprep.subr.bf16.mxu0 0
  %3122 = vmatpush1.bf16.msra.mxu0 %v3100
  %3123 = vmatprep.subr.bf16.mxu0 0
  %3124 = vmatpush1.bf16.msra.mxu0 %v3101
  %3125 = vmatprep.subr.bf16.mxu0 0
  %3126 = vmatpush1.bf16.msra.mxu0 %v3102
  %3127 = vmatprep.subr.bf16.mxu0 0
  %3128 = vmatpush1.bf16.msra.mxu0 0
  %3129 = vmatprep.subr.bf16.mxu0 0
  %3130 = vmatpush1.bf16.msra.mxu0 0
  %3131 = vmatprep.subr.bf16.mxu0 0
  %3132 = vmatpush1.bf16.msra.mxu0 0
  %3133 = vmatprep.subr.bf16.mxu0 0
  %3134 = vmatpush1.bf16.msra.mxu0 0
  %3135 = vmatprep.subr.bf16.mxu0 0
  %3136 = vmatpush1.bf16.msra.mxu0 0
  %3137 = vmatprep.subr.bf16.mxu0 0
  %3138 = vmatpush1.bf16.msra.mxu0 0
  %3139 = vmatprep.subr.bf16.mxu0 0
  %3140 = vmatpush1.bf16.msra.mxu0 0
  %3141 = vmatprep.subr.bf16.mxu0 0
  %3142 = vmatpush1.bf16.msra.mxu0 0
  %3143 = vmatprep.mubr.bf16.mxu0 0
  %3144 = vmatmul.mubr.bf16.gmra.mrb[0].mxu0 %v2915
  %v3145 = vpop.f32.mrb[0].mxu0
  %v3146 = vadd.f32 %v3049, %v3145
  %v3147 = vpop.f32.mrb[0].mxu0
  %v3148 = vpop.f32.mrb[0].mxu0
  %v3149 = vadd.f32 %v3052, %v3148
  %v3150 = vpop.f32.mrb[0].mxu0
  %3151 = vmatprep.mubr.bf16.mxu0 0
  %3152 = vmatmul.mubr.bf16.gmra.mrb[0].mxu0 %v2916
  %v3153 = vpop.f32.mrb[0].mxu0
  %v3154 = vadd.f32 %v3057, %v3153
  %v3155 = vpop.f32.mrb[0].mxu0
  %v3156 = vpop.f32.mrb[0].mxu0
  %v3157 = vadd.f32 %v3060, %v3156
  %v3158 = vpop.f32.mrb[0].mxu0
  %3159 = vdwg.mxu0
  %v3161 = vshrl.u32 %v2934, 16
  %v3163 = vrot.slane %v3161, 7
  %v3165 = vshrl.u32 %v2915, 16
  %v3167 = vrot.slane %v3165, 7
  %v3168 = vshll.u32 %v2915, 16
  %v3170 = vor.u32 %v3167, %v3168
  %v3171 = vsel %vm323, %v3163, %v3170
  %v3173 = vshrl.u32 %v2936, 16
  %v3175 = vrot.slane %v3173, 7
  %v3177 = vshrl.u32 %v2916, 16
  %v3179 = vrot.slane %v3177, 7
  %v3180 = vshll.u32 %v2916, 16
  %v3182 = vor.u32 %v3179, %v3180
  %v3183 = vsel %vm323, %v3175, %v3182
  %s3186 = scalar_lea.vmem %s5, 64
  %v3187 = vld [vmem:[%s3186] sm:$0xf]
  %v3188 = vld [vmem:[%s3186 + $0x4] sm:$0xf]
  %v3189 = vld [vmem:[%s3186 + $0x8] sm:$0xf]
  %v3190 = vld [vmem:[%s3186 + $0xc] sm:$0xf]
  %v3191 = vld [vmem:[%s3186 + $0x10] sm:$0xf]
  %v3192 = vld [vmem:[%s3186 + $0x14] sm:$0xf]
  %v3193 = vld [vmem:[%s3186 + $0x18] sm:$0xf]
  %v3194 = vld [vmem:[%s3186 + $0x1c] sm:$0xf]
  %v3195 = vld [vmem:[%s3186 + $0x20] sm:$0xf]
  %v3196 = vld [vmem:[%s3186 + $0x24] sm:$0xf]
  %v3197 = vld [vmem:[%s3186 + $0x28] sm:$0xf]
  %v3198 = vld [vmem:[%s3186 + $0x2c] sm:$0xf]
  %v3199 = vld [vmem:[%s3186 + $0x30] sm:$0xf]
  %v3200 = vld [vmem:[%s3186 + $0x34] sm:$0xf]
  %v3201 = vld [vmem:[%s3186 + $0x38] sm:$0xf]
  %v3202 = vld [vmem:[%s3186 + $0x3c] sm:$0xf]
  %v3219 = vunpack.c.l.b16 %v3187
  %v3220 = vunpack.c.l.b16 %v3188
  %v3221 = vunpack.c.l.b16 %v3189
  %v3222 = vunpack.c.l.b16 %v3190
  %v3223 = vunpack.c.l.b16 %v3191
  %v3224 = vunpack.c.l.b16 %v3192
  %v3225 = vunpack.c.l.b16 %v3193
  %v3226 = vunpack.c.l.b16 %v3194
  %v3227 = vunpack.c.l.b16 %v3195
  %v3228 = vunpack.c.l.b16 %v3196
  %v3229 = vunpack.c.l.b16 %v3197
  %v3230 = vunpack.c.l.b16 %v3198
  %v3231 = vunpack.c.l.b16 %v3199
  %v3232 = vunpack.c.l.b16 %v3200
  %v3233 = vunpack.c.l.b16 %v3201
  %v3234 = vunpack.c.l.b16 %v3202
  %v3235 = vpack.c.b16 %v3220, %v3219
  %v3236 = vpack.c.b16 %v3222, %v3221
  %v3237 = vpack.c.b16 %v3224, %v3223
  %v3238 = vpack.c.b16 %v3226, %v3225
  %v3239 = vpack.c.b16 %v3228, %v3227
  %v3240 = vpack.c.b16 %v3230, %v3229
  %v3241 = vpack.c.b16 %v3232, %v3231
  %v3242 = vpack.c.b16 %v3234, %v3233
  %3251 = vmatprep.subr.bf16.mxu0 0
  %3252 = vmatpush1.bf16.msra.mxu0 %v3235
  %3253 = vmatprep.subr.bf16.mxu0 0
  %3254 = vmatpush1.bf16.msra.mxu0 %v3236
  %3255 = vmatprep.subr.bf16.mxu0 0
  %3256 = vmatpush1.bf16.msra.mxu0 %v3237
  %3257 = vmatprep.subr.bf16.mxu0 0
  %3258 = vmatpush1.bf16.msra.mxu0 %v3238
  %3259 = vmatprep.subr.bf16.mxu0 0
  %3260 = vmatpush1.bf16.msra.mxu0 %v3239
  %3261 = vmatprep.subr.bf16.mxu0 0
  %3262 = vmatpush1.bf16.msra.mxu0 %v3240
  %3263 = vmatprep.subr.bf16.mxu0 0
  %3264 = vmatpush1.bf16.msra.mxu0 %v3241
  %3265 = vmatprep.subr.bf16.mxu0 0
  %3266 = vmatpush1.bf16.msra.mxu0 %v3242
  %3267 = vmatprep.subr.bf16.mxu0 0
  %3268 = vmatpush1.bf16.msra.mxu0 0
  %3269 = vmatprep.subr.bf16.mxu0 0
  %3270 = vmatpush1.bf16.msra.mxu0 0
  %3271 = vmatprep.subr.bf16.mxu0 0
  %3272 = vmatpush1.bf16.msra.mxu0 0
  %3273 = vmatprep.subr.bf16.mxu0 0
  %3274 = vmatpush1.bf16.msra.mxu0 0
  %3275 = vmatprep.subr.bf16.mxu0 0
  %3276 = vmatpush1.bf16.msra.mxu0 0
  %3277 = vmatprep.subr.bf16.mxu0 0
  %3278 = vmatpush1.bf16.msra.mxu0 0
  %3279 = vmatprep.subr.bf16.mxu0 0
  %3280 = vmatpush1.bf16.msra.mxu0 0
  %3281 = vmatprep.subr.bf16.mxu0 0
  %3282 = vmatpush1.bf16.msra.mxu0 0
  %3283 = vmatprep.mubr.bf16.mxu0 0
  %3284 = vmatmul.mubr.bf16.gmra.mrb[0].mxu0 %v3171
  %v3285 = vpop.f32.mrb[0].mxu0
  %v3286 = vadd.f32 0.0, %v3285
  %v3287 = vpop.f32.mrb[0].mxu0
  %v3288 = vpop.f32.mrb[0].mxu0
  %v3289 = vadd.f32 0.0, %v3288
  %v3290 = vpop.f32.mrb[0].mxu0
  %3291 = vmatprep.mubr.bf16.mxu0 0
  %3292 = vmatmul.mubr.bf16.gmra.mrb[0].mxu0 %v3183
  %v3293 = vpop.f32.mrb[0].mxu0
  %v3294 = vadd.f32 0.0, %v3293
  %v3295 = vpop.f32.mrb[0].mxu0
  %v3296 = vpop.f32.mrb[0].mxu0
  %v3297 = vadd.f32 0.0, %v3296
  %v3298 = vpop.f32.mrb[0].mxu0
  %3299 = vdwg.mxu0
  %v3300 = vadd.f32 %v3146, %v3286
  %v3301 = vadd.f32 %v3149, %v3289
  %v3302 = vadd.f32 %v3154, %v3294
  %v3303 = vadd.f32 %v3157, %v3297
  %v3304 = vld [vmem:[#allocation3 + $0x8] sm:$0xff]
  %v3305 = vld [vmem:[#allocation3 + $0x10] sm:$0x1]
  %v3306 = vld [vmem:[#allocation3 + $0x20] sm:$0xff]
  %v3307 = vld [vmem:[#allocation3 + $0x28] sm:$0x1]
  %v3309 = vshrl.u32 %v3304, 16
  %v3311 = vshll.u32 %v3304, 16
  %v3313 = vrot.slane %v3311, 1
  %v3314 = vor.u32 %v3309, %v3313
  %v3316 = vshll.u32 %v3305, 16
  %v3318 = vrot.slane %v3316, 1
  %v3319 = vsel %vm1242, %v3314, %v3318
  %v3321 = vshrl.u32 %v3306, 16
  %v3323 = vshll.u32 %v3306, 16
  %v3325 = vrot.slane %v3323, 1
  %v3326 = vor.u32 %v3321, %v3325
  %v3328 = vshll.u32 %v3307, 16
  %v3330 = vrot.slane %v3328, 1
  %v3331 = vsel %vm1242, %v3326, %v3330
  %s3334 = scalar_lea.vmem %s5, 192
  %v3335 = vld [vmem:[%s3334] sm:$0xf]
  %v3336 = vld [vmem:[%s3334 + $0x4] sm:$0xf]
  %v3337 = vld [vmem:[%s3334 + $0x8] sm:$0xf]
  %v3338 = vld [vmem:[%s3334 + $0xc] sm:$0xf]
  %v3339 = vld [vmem:[%s3334 + $0x10] sm:$0xf]
  %v3340 = vld [vmem:[%s3334 + $0x14] sm:$0xf]
  %v3341 = vld [vmem:[%s3334 + $0x18] sm:$0xf]
  %v3342 = vld [vmem:[%s3334 + $0x1c] sm:$0xf]
  %v3343 = vld [vmem:[%s3334 + $0x20] sm:$0xf]
  %v3344 = vld [vmem:[%s3334 + $0x24] sm:$0xf]
  %v3345 = vld [vmem:[%s3334 + $0x28] sm:$0xf]
  %v3346 = vld [vmem:[%s3334 + $0x2c] sm:$0xf]
  %v3347 = vld [vmem:[%s3334 + $0x30] sm:$0xf]
  %v3348 = vld [vmem:[%s3334 + $0x34] sm:$0xf]
  %v3349 = vld [vmem:[%s3334 + $0x38] sm:$0xf]
  %v3350 = vld [vmem:[%s3334 + $0x3c] sm:$0xf]
  %v3367 = vunpack.c.l.b16 %v3335
  %v3368 = vunpack.c.l.b16 %v3336
  %v3369 = vunpack.c.l.b16 %v3337
  %v3370 = vunpack.c.l.b16 %v3338
  %v3371 = vunpack.c.l.b16 %v3339
  %v3372 = vunpack.c.l.b16 %v3340
  %v3373 = vunpack.c.l.b16 %v3341
  %v3374 = vunpack.c.l.b16 %v3342
  %v3375 = vunpack.c.l.b16 %v3343
  %v3376 = vunpack.c.l.b16 %v3344
  %v3377 = vunpack.c.l.b16 %v3345
  %v3378 = vunpack.c.l.b16 %v3346
  %v3379 = vunpack.c.l.b16 %v3347
  %v3380 = vunpack.c.l.b16 %v3348
  %v3381 = vunpack.c.l.b16 %v3349
  %v3382 = vunpack.c.l.b16 %v3350
  %v3383 = vpack.c.b16 %v3368, %v3367
  %v3384 = vpack.c.b16 %v3370, %v3369
  %v3385 = vpack.c.b16 %v3372, %v3371
  %v3386 = vpack.c.b16 %v3374, %v3373
  %v3387 = vpack.c.b16 %v3376, %v3375
  %v3388 = vpack.c.b16 %v3378, %v3377
  %v3389 = vpack.c.b16 %v3380, %v3379
  %v3390 = vpack.c.b16 %v3382, %v3381
  %3399 = vmatprep.subr.bf16.mxu0 0
  %3400 = vmatpush1.bf16.msra.mxu0 %v3383
  %3401 = vmatprep.subr.bf16.mxu0 0
  %3402 = vmatpush1.bf16.msra.mxu0 %v3384
  %3403 = vmatprep.subr.bf16.mxu0 0
  %3404 = vmatpush1.bf16.msra.mxu0 %v3385
  %3405 = vmatprep.subr.bf16.mxu0 0
  %3406 = vmatpush1.bf16.msra.mxu0 %v3386
  %3407 = vmatprep.subr.bf16.mxu0 0
  %3408 = vmatpush1.bf16.msra.mxu0 %v3387
  %3409 = vmatprep.subr.bf16.mxu0 0
  %3410 = vmatpush1.bf16.msra.mxu0 %v3388
  %3411 = vmatprep.subr.bf16.mxu0 0
  %3412 = vmatpush1.bf16.msra.mxu0 %v3389
  %3413 = vmatprep.subr.bf16.mxu0 0
  %3414 = vmatpush1.bf16.msra.mxu0 %v3390
  %3415 = vmatprep.subr.bf16.mxu0 0
  %3416 = vmatpush1.bf16.msra.mxu0 0
  %3417 = vmatprep.subr.bf16.mxu0 0
  %3418 = vmatpush1.bf16.msra.mxu0 0
  %3419 = vmatprep.subr.bf16.mxu0 0
  %3420 = vmatpush1.bf16.msra.mxu0 0
  %3421 = vmatprep.subr.bf16.mxu0 0
  %3422 = vmatpush1.bf16.msra.mxu0 0
  %3423 = vmatprep.subr.bf16.mxu0 0
  %3424 = vmatpush1.bf16.msra.mxu0 0
  %3425 = vmatprep.subr.bf16.mxu0 0
  %3426 = vmatpush1.bf16.msra.mxu0 0
  %3427 = vmatprep.subr.bf16.mxu0 0
  %3428 = vmatpush1.bf16.msra.mxu0 0
  %3429 = vmatprep.subr.bf16.mxu0 0
  %3430 = vmatpush1.bf16.msra.mxu0 0
  %3431 = vmatprep.mubr.bf16.mxu0 0
  %3432 = vmatmul.mubr.bf16.gmra.mrb[0].mxu0 %v3319
  %v3433 = vpop.f32.mrb[0].mxu0
  %v3434 = vadd.f32 0.0, %v3433
  %v3435 = vpop.f32.mrb[0].mxu0
  %v3436 = vpop.f32.mrb[0].mxu0
  %v3437 = vadd.f32 0.0, %v3436
  %v3438 = vpop.f32.mrb[0].mxu0
  %3439 = vmatprep.mubr.bf16.mxu0 0
  %3440 = vmatmul.mubr.bf16.gmra.mrb[0].mxu0 %v3331
  %v3441 = vpop.f32.mrb[0].mxu0
  %v3442 = vadd.f32 0.0, %v3441
  %v3443 = vpop.f32.mrb[0].mxu0
  %v3444 = vpop.f32.mrb[0].mxu0
  %v3445 = vadd.f32 0.0, %v3444
  %v3446 = vpop.f32.mrb[0].mxu0
  %3447 = vdwg.mxu0
  %v3448 = vadd.f32 %v3300, %v3434
  %v3449 = vadd.f32 %v3301, %v3437
  %v3450 = vadd.f32 %v3302, %v3442
  %v3451 = vadd.f32 %v3303, %v3445
  %v3452 = vld [vmem:[#allocation3 + $0x8] sm:$0xfe]
  %v3453 = vld [vmem:[#allocation3 + $0x20] sm:$0xfe]
  %v3458 = vrot.slane %v3452, 1
  %v3459 = vrot.slane %v3305, 1
  %v3460 = vsel %vm1393, %v3458, %v3459
  %v3461 = vrot.slane %v3453, 1
  %v3462 = vrot.slane %v3307, 1
  %v3463 = vsel %vm1393, %v3461, %v3462
  %s3466 = scalar_lea.vmem %s5, 256
  %v3467 = vld [vmem:[%s3466] sm:$0xf]
  %v3468 = vld [vmem:[%s3466 + $0x4] sm:$0xf]
  %v3469 = vld [vmem:[%s3466 + $0x8] sm:$0xf]
  %v3470 = vld [vmem:[%s3466 + $0xc] sm:$0xf]
  %v3471 = vld [vmem:[%s3466 + $0x10] sm:$0xf]
  %v3472 = vld [vmem:[%s3466 + $0x14] sm:$0xf]
  %v3473 = vld [vmem:[%s3466 + $0x18] sm:$0xf]
  %v3474 = vld [vmem:[%s3466 + $0x1c] sm:$0xf]
  %v3475 = vld [vmem:[%s3466 + $0x20] sm:$0xf]
  %v3476 = vld [vmem:[%s3466 + $0x24] sm:$0xf]
  %v3477 = vld [vmem:[%s3466 + $0x28] sm:$0xf]
  %v3478 = vld [vmem:[%s3466 + $0x2c] sm:$0xf]
  %v3479 = vld [vmem:[%s3466 + $0x30] sm:$0xf]
  %v3480 = vld [vmem:[%s3466 + $0x34] sm:$0xf]
  %v3481 = vld [vmem:[%s3466 + $0x38] sm:$0xf]
  %v3482 = vld [vmem:[%s3466 + $0x3c] sm:$0xf]
  %v3499 = vunpack.c.l.b16 %v3467
  %v3500 = vunpack.c.l.b16 %v3468
  %v3501 = vunpack.c.l.b16 %v3469
  %v3502 = vunpack.c.l.b16 %v3470
  %v3503 = vunpack.c.l.b16 %v3471
  %v3504 = vunpack.c.l.b16 %v3472
  %v3505 = vunpack.c.l.b16 %v3473
  %v3506 = vunpack.c.l.b16 %v3474
  %v3507 = vunpack.c.l.b16 %v3475
  %v3508 = vunpack.c.l.b16 %v3476
  %v3509 = vunpack.c.l.b16 %v3477
  %v3510 = vunpack.c.l.b16 %v3478
  %v3511 = vunpack.c.l.b16 %v3479
  %v3512 = vunpack.c.l.b16 %v3480
  %v3513 = vunpack.c.l.b16 %v3481
  %v3514 = vunpack.c.l.b16 %v3482
  %v3515 = vpack.c.b16 %v3500, %v3499
  %v3516 = vpack.c.b16 %v3502, %v3501
  %v3517 = vpack.c.b16 %v3504, %v3503
  %v3518 = vpack.c.b16 %v3506, %v3505
  %v3519 = vpack.c.b16 %v3508, %v3507
  %v3520 = vpack.c.b16 %v3510, %v3509
  %v3521 = vpack.c.b16 %v3512, %v3511
  %v3522 = vpack.c.b16 %v3514, %v3513
  %3531 = vmatprep.subr.bf16.mxu0 0
  %3532 = vmatpush1.bf16.msra.mxu0 %v3515
  %3533 = vmatprep.subr.bf16.mxu0 0
  %3534 = vmatpush1.bf16.msra.mxu0 %v3516
  %3535 = vmatprep.subr.bf16.mxu0 0
  %3536 = vmatpush1.bf16.msra.mxu0 %v3517
  %3537 = vmatprep.subr.bf16.mxu0 0
  %3538 = vmatpush1.bf16.msra.mxu0 %v3518
  %3539 = vmatprep.subr.bf16.mxu0 0
  %3540 = vmatpush1.bf16.msra.mxu0 %v3519
  %3541 = vmatprep.subr.bf16.mxu0 0
  %3542 = vmatpush1.bf16.msra.mxu0 %v3520
  %3543 = vmatprep.subr.bf16.mxu0 0
  %3544 = vmatpush1.bf16.msra.mxu0 %v3521
  %3545 = vmatprep.subr.bf16.mxu0 0
  %3546 = vmatpush1.bf16.msra.mxu0 %v3522
  %3547 = vmatprep.subr.bf16.mxu0 0
  %3548 = vmatpush1.bf16.msra.mxu0 0
  %3549 = vmatprep.subr.bf16.mxu0 0
  %3550 = vmatpush1.bf16.msra.mxu0 0
  %3551 = vmatprep.subr.bf16.mxu0 0
  %3552 = vmatpush1.bf16.msra.mxu0 0
  %3553 = vmatprep.subr.bf16.mxu0 0
  %3554 = vmatpush1.bf16.msra.mxu0 0
  %3555 = vmatprep.subr.bf16.mxu0 0
  %3556 = vmatpush1.bf16.msra.mxu0 0
  %3557 = vmatprep.subr.bf16.mxu0 0
  %3558 = vmatpush1.bf16.msra.mxu0 0
  %3559 = vmatprep.subr.bf16.mxu0 0
  %3560 = vmatpush1.bf16.msra.mxu0 0
  %3561 = vmatprep.subr.bf16.mxu0 0
  %3562 = vmatpush1.bf16.msra.mxu0 0
  %3563 = vmatprep.mubr.bf16.mxu0 0
  %3564 = vmatmul.mubr.bf16.gmra.mrb[0].mxu0 %v3460
  %v3565 = vpop.f32.mrb[0].mxu0
  %v3566 = vadd.f32 0.0, %v3565
  %v3567 = vpop.f32.mrb[0].mxu0
  %v3568 = vpop.f32.mrb[0].mxu0
  %v3569 = vadd.f32 0.0, %v3568
  %v3570 = vpop.f32.mrb[0].mxu0
  %3571 = vmatprep.mubr.bf16.mxu0 0
  %3572 = vmatmul.mubr.bf16.gmra.mrb[0].mxu0 %v3463
  %v3573 = vpop.f32.mrb[0].mxu0
  %v3574 = vadd.f32 0.0, %v3573
  %v3575 = vpop.f32.mrb[0].mxu0
  %v3576 = vpop.f32.mrb[0].mxu0
  %v3577 = vadd.f32 0.0, %v3576
  %v3578 = vpop.f32.mrb[0].mxu0
  %3579 = vdwg.mxu0
  %v3580 = vadd.f32 %v3448, %v3566
  %v3581 = vadd.f32 %v3449, %v3569
  %v3582 = vadd.f32 %v3450, %v3574
  %v3583 = vadd.f32 %v3451, %v3577
  %v3584 = vld [vmem:[%s10] sm:$0x1]
  %v3586 = vlaneseq
  %v3587 = vshrl.u32 %v3586, 7
  %v3588 = vsub.s32 0, %v3587
  %v3589 = vrot.slane %v3584, %v3588
  %v3591 = vadd.f32 %v3580, %v3589
  %v3592 = vadd.f32 %v3581, %v3589
  %v3593 = vadd.f32 %v3582, %v3589
  %v3594 = vadd.f32 %v3583, %v3589
  %3595 = vst [vmem:[%s11] sm:$0xff] %v3591
  %3596 = vst [vmem:[%s11 + $0x8] sm:$0xff] %v3592
  %3597 = vst [vmem:[%s11 + $0x10] sm:$0xff] %v3593
  %3598 = vst [vmem:[%s11 + $0x18] sm:$0xff] %v3594
  // Predicated region
  $region46: #{postnet_forward.1} parent=0 // pred_check
    _
  $region47: #{postnet_forward.1} parent=0 // pred_check_branch
    %3600 = sbr.rel (0) target = $region49
  $region48: #{postnet_forward.1} parent=0 // pred_region
    _
  $region49: #{postnet_forward.1} parent=0 // pred_fallthru
    _
  // Predicated region
  $region50: #{postnet_forward.1} parent=0 // pred_check
    _
  $region51: #{postnet_forward.1} parent=0 // pred_check_branch
    %3602 = sbr.rel (0) target = $region53
  $region52: #{postnet_forward.1} parent=0 // pred_region
    _
  $region53: #{postnet_forward.1} parent=0 // pred_fallthru
    _

</llo_original>
